<compile_context>
chip_gen: v6e
topology: v6e:2x2x1
jax: 0.10.0
libtpu: 0.0.40
codegen_flags: <defaults>
</compile_context>

<pallas_src>
import jax
import jax.numpy as jnp
from jax.experimental import pallas as pl
from jax.experimental.pallas import tpu as pltpu


def robust_bounds_kernel(x_ref, w2y_ref, w1t_ref, w1e_ref, b1_ref,
                         eps_s_ref, w2_ref, o_ref):
    f32 = jnp.float32
    tb, d_dim = x_ref.shape          # (TB, D)
    kp, h = w2_ref.shape             # (Kp, H)

    x = x_ref[...]                   # (TB, D)
    w2y = w2y_ref[...]               # (TB, H)  = W2[y_b]
    w1t = w1t_ref[...]               # (D, H)   = W1^T           (for mu)
    w1e = w1e_ref[...]               # (H, D)   = eps * W1       (for L1 term)
    b1 = b1_ref[...]                 # (1, H)
    eps_s = eps_s_ref[...]           # (1, H)   = eps * rowsum|W1|
    w2 = w2_ref[...]                 # (Kp, H)

    # --- hidden-layer pre-activation bounds under the l_inf ball ---
    mu = jnp.dot(x, w1t, preferred_element_type=f32) + b1        # (TB, H)
    l = mu - eps_s
    u = mu + eps_s
    crossing = jnp.logical_and(l < 0.0, u > 0.0)
    denom = jnp.where(crossing, u - l, jnp.ones_like(u))
    d_slope = jnp.where(
        l >= 0.0, jnp.ones_like(u),
        jnp.where(crossing, u / denom, jnp.zeros_like(u)))       # (TB, H)
    wl = jnp.where(crossing, l, jnp.zeros_like(l))               # (TB, H)

    # --- dual backward pass in (K, TB, H) order ---
    # per-example tensors broadcast along the leading class axis (free);
    # only the small (Kp, H) W2 needs cross-sublane replication.
    nu_hat2 = w2[:, None, :] - w2y[None, :, :]                   # (Kp, TB, H)
    nu2 = d_slope[None, :, :] * nu_hat2                          # (Kp, TB, H)
    # nu_hat1 * eps, flattened over (Kp*TB) rows for one MXU matmul
    nu_hat1e = jnp.dot(nu2.reshape(kp * tb, h), w1e,
                       preferred_element_type=f32)               # (Kp*TB, D)

    # --- objective (folded): nu_hat1.x + nu2.b1 == nu2.mu ---
    # eps*||nu_hat1||_1 == ||nu2 @ (eps*W1)||_1  (eps >= 0)
    term_l1 = jnp.sum(jnp.abs(nu_hat1e).reshape(kp, tb, d_dim), axis=-1)
    per_h = nu2 * mu[None, :, :] - jnp.maximum(nu2, 0.0) * wl[None, :, :]
    term_h = jnp.sum(per_h, axis=-1)                             # (Kp, TB)

    o_ref[...] = (term_l1 + term_h).astype(o_ref.dtype)          # (Kp, TB)


def robust_bounds(X, y, W1, b1, W2, b2, epsilon, *, tb=None):
    """f = RobustBounds(net, epsilon)(X, y) for net = [Linear, ReLU, Linear]."""
    B, D = X.shape
    H = W1.shape[0]
    K = W2.shape[0]
    f32 = jnp.float32
    eps = jnp.asarray(epsilon, dtype=f32)     # traced -> no recompile per eps

    # class padding (multiple of 8 sublanes) so (Kp,TB,H)->(Kp*TB,H) is free
    Kp = ((K + 7) // 8) * 8
    W2f = W2.astype(f32)
    W2p = W2f if Kp == K else jnp.pad(W2f, ((0, Kp - K), (0, 0)))

    # --- batch tile selection ---
    # Big tiles amortize per-step overhead and fill the MXU M dimension; the
    # output tile is (Kp, tb) so tb must be a multiple of 128 lanes when the
    # grid has more than one step (lane-dense, unmasked stores).  grid >= 2
    # whenever B > 128 also lets v7x shard the batch axis across its 2 TCs.
    b8 = ((B + 7) // 8) * 8
    if tb is None:
        tb = 128
    tb = int(tb)
    if b8 <= tb:
        tb = b8                               # single tile: block == full dims
    else:
        tb = max(128, (tb // 128) * 128)      # lane-dense multiple of 128
    grid = pl.cdiv(B, tb)
    b_pad = grid * tb

    # --- one-time glue outside the kernel (grid-invariant / row gathers) ---
    W1f = W1.astype(f32)
    W1T = W1f.T                               # (D, H) for mu (no in-kernel vxpose)
    W1e = eps * W1f                           # (H, D) for the L1 term
    b1r = jnp.reshape(b1, (1, H)).astype(f32)
    eps_s = (eps * jnp.sum(jnp.abs(W1f), axis=1)).reshape(1, H)
    w2y = W2f[y]                              # (B, H) = W2[y_b]
    Xp = X.astype(f32)

    if b_pad != B:
        pad = b_pad - B
        Xp = jnp.pad(Xp, ((0, pad), (0, 0)))
        w2y = jnp.pad(w2y, ((0, pad), (0, 0)))

    out = pl.pallas_call(
        robust_bounds_kernel,
        out_shape=jax.ShapeDtypeStruct((Kp, b_pad), f32),
        grid_spec=pltpu.PrefetchScalarGridSpec(
            num_scalar_prefetch=0,
            grid=(grid,),
            in_specs=[
                pl.BlockSpec((tb, D), lambda g: (g, 0)),    # X tile
                pl.BlockSpec((tb, H), lambda g: (g, 0)),    # W2[y] tile
                pl.BlockSpec((D, H), lambda g: (0, 0)),     # W1^T   (resident)
                pl.BlockSpec((H, D), lambda g: (0, 0)),     # eps*W1 (resident)
                pl.BlockSpec((1, H), lambda g: (0, 0)),     # b1
                pl.BlockSpec((1, H), lambda g: (0, 0)),     # eps*rowsum|W1|
                pl.BlockSpec((Kp, H), lambda g: (0, 0)),    # W2 (class-padded)
            ],
            out_specs=pl.BlockSpec((Kp, tb), lambda g: (0, g)),
        ),
        compiler_params=pltpu.CompilerParams(
            dimension_semantics=("parallel",),
            vmem_limit_bytes=32 * 1024 * 1024),
    )(Xp, w2y, W1T, W1e, b1r, eps_s, W2p)

    # nu3 . b2 = b2[j] - b2[y_b]  (tiny; added outside the kernel)
    term_b2 = b2.astype(f32)[None, :] - b2.astype(f32)[y][:, None]   # (B, K)
    return (out[:K, :B].T + term_b2).astype(X.dtype)


def robust_bounds_ref(X, y, W1, b1, W2, b2, epsilon):
    """Pure-JAX reference (mirrors DualNetwork math exactly)."""
    K = W2.shape[0]
    mu = X @ W1.T + b1
    s = jnp.sum(jnp.abs(W1), axis=1)
    l = mu - epsilon * s
    u = mu + epsilon * s
    crossing = (l < 0) & (u > 0)
    d = jnp.where(l >= 0, 1.0,
                  jnp.where(crossing, u / jnp.where(crossing, u - l, 1.0), 0.0))
    eye_k = jnp.eye(K, dtype=X.dtype)
    c = eye_k[y][:, None, :] - eye_k[None, :, :]
    nu3 = -c
    nu_hat2 = jnp.einsum('bij,jh->bih', nu3, W2)
    nu2 = d[:, None, :] * nu_hat2
    nu_hat1 = jnp.einsum('bih,hd->bid', nu2, W1)
    term_x = jnp.einsum('bid,bd->bi', nu_hat1, X)
    term_l1 = epsilon * jnp.sum(jnp.abs(nu_hat1), axis=-1)
    term_b1 = nu2 @ b1
    term_relu = jnp.einsum('bih,bh->bi', jnp.maximum(nu2, 0.0),
                           jnp.where(crossing, l, 0.0))
    term_b2 = nu3 @ b2
    return term_x + term_l1 + term_b1 - term_relu + term_b2


if __name__ == "__main__":
    # TODO(synk): only the Linear->ReLU->Linear dual (InfBall input set) is
    # implemented; Conv2d / BatchNorm / Dense dual layers of the generic
    # DualNetwork constructor are out of scope for this kernel.
    B, D, H, K = 256, 64, 128, 8
    epsilon = 0.1

    key = jax.random.PRNGKey(0)
    k0, k1, k2, k3, k4, k5 = jax.random.split(key, 6)
    X = jax.random.normal(k0, (B, D), jnp.float32)
    y = jax.random.randint(k1, (B,), 0, K)
    W1 = jax.random.normal(k2, (H, D), jnp.float32) / jnp.sqrt(D)
    b1 = 0.1 * jax.random.normal(k3, (H,), jnp.float32)
    W2 = jax.random.normal(k4, (K, H), jnp.float32) / jnp.sqrt(H)
    b2 = 0.1 * jax.random.normal(k5, (K,), jnp.float32)

    out = robust_bounds(X, y, W1, b1, W2, b2, epsilon)
    out = jax.block_until_ready(out)

    ref = robust_bounds_ref(X, y, W1, b1, W2, b2, epsilon)
    assert out.shape == (B, K)
    assert bool(jnp.allclose(out, ref, rtol=1e-4, atol=1e-4)), (out, ref)
    # f[b, y_b] must be exactly 0 (c row for the true class is zero)
    assert bool(jnp.allclose(out[jnp.arange(B), y], 0.0, atol=1e-5))

    print("KERNEL_OK")
</pallas_src>

<mosaic_0001>
module attributes {stable_mosaic.version = 11 : i64} {
  func.func @robust_bounds_kernel(%arg0: i32, %arg1: memref<128x64xf32, #tpu.memory_space<vmem>>, %arg2: memref<128x128xf32, #tpu.memory_space<vmem>>, %arg3: memref<64x128xf32, #tpu.memory_space<vmem>>, %arg4: memref<128x64xf32, #tpu.memory_space<vmem>>, %arg5: memref<1x128xf32, #tpu.memory_space<vmem>>, %arg6: memref<1x128xf32, #tpu.memory_space<vmem>>, %arg7: memref<8x128xf32, #tpu.memory_space<vmem>>, %arg8: memref<8x128xf32, #tpu.memory_space<vmem>>) attributes {dimension_semantics = [#tpu.dimension_semantics<parallel>], iteration_bounds = array<i64: 2>, scalar_prefetch = 0 : i64, scratch_operands = 0 : i64, tpu.core_type = #tpu.core_type<tc>, window_params = [{transform_indices = @transform_0, window_bounds = array<i64: 128, 64>}, {transform_indices = @transform_1, window_bounds = array<i64: 128, 128>}, {pipeline_mode = #tpu.pipeline_mode<synchronous>, transform_indices = @transform_2, window_bounds = array<i64: 64, 128>}, {pipeline_mode = #tpu.pipeline_mode<synchronous>, transform_indices = @transform_3, window_bounds = array<i64: 128, 64>}, {pipeline_mode = #tpu.pipeline_mode<synchronous>, transform_indices = @transform_4, window_bounds = array<i64: 1, 128>}, {pipeline_mode = #tpu.pipeline_mode<synchronous>, transform_indices = @transform_5, window_bounds = array<i64: 1, 128>}, {pipeline_mode = #tpu.pipeline_mode<synchronous>, transform_indices = @transform_6, window_bounds = array<i64: 8, 128>}, {transform_indices = @transform_7, window_bounds = array<i64: 8, 128>}]} {
    %c0 = arith.constant 0 : index
    %c0_0 = arith.constant 0 : index
    %0 = vector.load %arg1[%c0, %c0_0] : memref<128x64xf32, #tpu.memory_space<vmem>>, vector<128x64xf32>
    %c0_1 = arith.constant 0 : index
    %c0_2 = arith.constant 0 : index
    %1 = vector.load %arg2[%c0_1, %c0_2] : memref<128x128xf32, #tpu.memory_space<vmem>>, vector<128x128xf32>
    %c0_3 = arith.constant 0 : index
    %c0_4 = arith.constant 0 : index
    %2 = vector.load %arg3[%c0_3, %c0_4] : memref<64x128xf32, #tpu.memory_space<vmem>>, vector<64x128xf32>
    %c0_5 = arith.constant 0 : index
    %c0_6 = arith.constant 0 : index
    %3 = vector.load %arg4[%c0_5, %c0_6] : memref<128x64xf32, #tpu.memory_space<vmem>>, vector<128x64xf32>
    %c0_7 = arith.constant 0 : index
    %c0_8 = arith.constant 0 : index
    %4 = vector.load %arg5[%c0_7, %c0_8] : memref<1x128xf32, #tpu.memory_space<vmem>>, vector<1x128xf32>
    %c0_9 = arith.constant 0 : index
    %c0_10 = arith.constant 0 : index
    %5 = vector.load %arg6[%c0_9, %c0_10] : memref<1x128xf32, #tpu.memory_space<vmem>>, vector<1x128xf32>
    %c0_11 = arith.constant 0 : index
    %c0_12 = arith.constant 0 : index
    %6 = vector.load %arg7[%c0_11, %c0_12] : memref<8x128xf32, #tpu.memory_space<vmem>>, vector<8x128xf32>
    %cst = arith.constant dense<0.000000e+00> : vector<128x128xf32>
    %7 = tpu.matmul %0, %2, %cst {dimension_numbers = #tpu.dot_dimension_numbers<[1], [0], [0], [1], [0, 0, 1, 1], [], []>} : vector<128x64xf32>, vector<64x128xf32>, vector<128x128xf32> -> vector<128x128xf32>
    %8 = vector.broadcast %4 : vector<1x128xf32> to vector<128x128xf32>
    %9 = arith.addf %7, %8 : vector<128x128xf32>
    %10 = vector.broadcast %5 : vector<1x128xf32> to vector<128x128xf32>
    %11 = arith.subf %9, %10 : vector<128x128xf32>
    %12 = vector.broadcast %5 : vector<1x128xf32> to vector<128x128xf32>
    %13 = arith.addf %9, %12 : vector<128x128xf32>
    %cst_13 = arith.constant 0.000000e+00 : f32
    %14 = vector.broadcast %cst_13 : f32 to vector<128x128xf32>
    %15 = arith.cmpf olt, %11, %14 : vector<128x128xf32>
    %cst_14 = arith.constant 0.000000e+00 : f32
    %16 = vector.broadcast %cst_14 : f32 to vector<128x128xf32>
    %17 = arith.cmpf ogt, %13, %16 : vector<128x128xf32>
    %18 = arith.andi %15, %17 : vector<128x128xi1>
    %19 = arith.subf %13, %11 : vector<128x128xf32>
    %cst_15 = arith.constant 1.000000e+00 : f32
    %20 = vector.broadcast %cst_15 : f32 to vector<128x128xf32>
    %21 = arith.select %18, %19, %20 : vector<128x128xi1>, vector<128x128xf32>
    %cst_16 = arith.constant 0.000000e+00 : f32
    %22 = vector.broadcast %cst_16 : f32 to vector<128x128xf32>
    %23 = arith.cmpf oge, %11, %22 : vector<128x128xf32>
    %cst_17 = arith.constant 1.000000e+00 : f32
    %24 = vector.broadcast %cst_17 : f32 to vector<128x128xf32>
    %25 = arith.divf %13, %21 : vector<128x128xf32>
    %cst_18 = arith.constant 0.000000e+00 : f32
    %26 = vector.broadcast %cst_18 : f32 to vector<128x128xf32>
    %27 = arith.select %18, %25, %26 : vector<128x128xi1>, vector<128x128xf32>
    %28 = arith.select %23, %24, %27 : vector<128x128xi1>, vector<128x128xf32>
    %cst_19 = arith.constant 0.000000e+00 : f32
    %29 = vector.broadcast %cst_19 : f32 to vector<128x128xf32>
    %30 = arith.select %18, %11, %29 : vector<128x128xi1>, vector<128x128xf32>
    %31 = vector.shape_cast %6 : vector<8x128xf32> to vector<8x1x128xf32>
    %32 = vector.shape_cast %1 : vector<128x128xf32> to vector<1x128x128xf32>
    %33 = vector.broadcast %31 : vector<8x1x128xf32> to vector<8x128x128xf32>
    %34 = vector.broadcast %32 : vector<1x128x128xf32> to vector<8x128x128xf32>
    %35 = arith.subf %33, %34 : vector<8x128x128xf32>
    %36 = vector.shape_cast %28 : vector<128x128xf32> to vector<1x128x128xf32>
    %37 = vector.broadcast %36 : vector<1x128x128xf32> to vector<8x128x128xf32>
    %38 = arith.mulf %37, %35 : vector<8x128x128xf32>
    %39 = vector.shape_cast %38 : vector<8x128x128xf32> to vector<1024x128xf32>
    %cst_20 = arith.constant dense<0.000000e+00> : vector<1024x64xf32>
    %40 = tpu.matmul %39, %3, %cst_20 {dimension_numbers = #tpu.dot_dimension_numbers<[1], [0], [0], [1], [0, 0, 1, 1], [], []>} : vector<1024x128xf32>, vector<128x64xf32>, vector<1024x64xf32> -> vector<1024x64xf32>
    %41 = math.absf %40 : vector<1024x64xf32>
    %42 = vector.shape_cast %41 : vector<1024x64xf32> to vector<8x128x64xf32>
    %cst_21 = arith.constant dense<0.000000e+00> : vector<8x128xf32>
    %43 = vector.multi_reduction <add>, %42, %cst_21 [2] : vector<8x128x64xf32> to vector<8x128xf32>
    %44 = vector.shape_cast %9 : vector<128x128xf32> to vector<1x128x128xf32>
    %45 = vector.broadcast %44 : vector<1x128x128xf32> to vector<8x128x128xf32>
    %46 = arith.mulf %38, %45 : vector<8x128x128xf32>
    %cst_22 = arith.constant 0.000000e+00 : f32
    %47 = vector.broadcast %cst_22 : f32 to vector<8x128x128xf32>
    %48 = arith.maximumf %38, %47 : vector<8x128x128xf32>
    %49 = vector.shape_cast %30 : vector<128x128xf32> to vector<1x128x128xf32>
    %50 = vector.broadcast %49 : vector<1x128x128xf32> to vector<8x128x128xf32>
    %51 = arith.mulf %48, %50 : vector<8x128x128xf32>
    %52 = arith.subf %46, %51 : vector<8x128x128xf32>
    %cst_23 = arith.constant dense<0.000000e+00> : vector<8x128xf32>
    %53 = vector.multi_reduction <add>, %52, %cst_23 [2] : vector<8x128x128xf32> to vector<8x128xf32>
    %54 = arith.addf %43, %53 : vector<8x128xf32>
    %c0_24 = arith.constant 0 : index
    %c0_25 = arith.constant 0 : index
    %55 = vector.load %arg8[%c0_24, %c0_25] : memref<8x128xf32, #tpu.memory_space<vmem>>, vector<8x128xf32>
    tpu.vector_store %arg8[%c0_24, %c0_25], %54 {strides = array<i32>} : memref<8x128xf32, #tpu.memory_space<vmem>>, vector<8x128xf32>,
    return
  }
  func.func @transform_0(%arg0: i32) -> (i32, i32) {
    %c0_i32 = arith.constant 0 : i32
    %c0_i32_0 = arith.constant 0 : i32
    return %arg0, %c0_i32 : i32, i32
  }
  func.func @transform_1(%arg0: i32) -> (i32, i32) {
    %c0_i32 = arith.constant 0 : i32
    %c0_i32_0 = arith.constant 0 : i32
    return %arg0, %c0_i32 : i32, i32
  }
  func.func @transform_2(%arg0: i32) -> (i32, i32) {
    %c0_i32 = arith.constant 0 : i32
    %c0_i32_0 = arith.constant 0 : i32
    %c0_i32_1 = arith.constant 0 : i32
    return %c0_i32, %c0_i32_0 : i32, i32
  }
  func.func @transform_3(%arg0: i32) -> (i32, i32) {
    %c0_i32 = arith.constant 0 : i32
    %c0_i32_0 = arith.constant 0 : i32
    %c0_i32_1 = arith.constant 0 : i32
    return %c0_i32, %c0_i32_0 : i32, i32
  }
  func.func @transform_4(%arg0: i32) -> (i32, i32) {
    %c0_i32 = arith.constant 0 : i32
    %c0_i32_0 = arith.constant 0 : i32
    %c0_i32_1 = arith.constant 0 : i32
    return %c0_i32, %c0_i32_0 : i32, i32
  }
  func.func @transform_5(%arg0: i32) -> (i32, i32) {
    %c0_i32 = arith.constant 0 : i32
    %c0_i32_0 = arith.constant 0 : i32
    %c0_i32_1 = arith.constant 0 : i32
    return %c0_i32, %c0_i32_0 : i32, i32
  }
  func.func @transform_6(%arg0: i32) -> (i32, i32) {
    %c0_i32 = arith.constant 0 : i32
    %c0_i32_0 = arith.constant 0 : i32
    %c0_i32_1 = arith.constant 0 : i32
    return %c0_i32, %c0_i32_0 : i32, i32
  }
  func.func @transform_7(%arg0: i32) -> (i32, i32) {
    %c0_i32 = arith.constant 0 : i32
    %c0_i32_0 = arith.constant 0 : i32
    return %c0_i32, %arg0 : i32, i32
  }
}

</mosaic_0001>

<llo_original>
// kernel: tpu_custom_call.1
$region0: #{tpu_custom_call.1}
  #allocation0 [shape = 'u32[]', space=smem, size = 0x4, offset = 0x4, fixed_abs, tag = 'smem constant byte address 0x4 - core index']
  #allocation1 [shape = 'u32[144,128]{1,0:T(1,128)}', space=vmem, size = 0x12000, scoped, tag = 'internal scratch']
  %s0 = inlined_call_operand.vmem [shape: f32[256,64], index: 0, kind: input, shape index: {}]
  %s1 = inlined_call_operand.vmem [shape: f32[256,128], index: 1, kind: input, shape index: {}]
  %s2 = inlined_call_operand.vmem [shape: f32[64,128], index: 2, kind: input, shape index: {}]
  %s3 = inlined_call_operand.vmem [shape: f32[128,64], index: 3, kind: input, shape index: {}]
  %s4 = inlined_call_operand.vmem [shape: f32[1,128], index: 4, kind: input, shape index: {}]
  %s5 = inlined_call_operand.vmem [shape: f32[1,128], index: 5, kind: input, shape index: {}]
  %s6 = inlined_call_operand.vmem [shape: f32[8,128], index: 6, kind: input, shape index: {}]
  %s7 = inlined_call_operand.hbm [shape: f32[8,256], index: 7, kind: output, shape index: {}]
  %s8 = sld [smem:[#allocation0]]
  $region61: #{tpu_custom_call.1} parent=0
    _
  %s10 = ssub.s32 1, %s8
  %s11 = scalar_select 0, %s10, %s8
  $region1: #{tpu_custom_call.1} parent=0
    #allocation2 [shape = 'u8[8192]{0}', space=vmem, size = 0x2000, scoped, tag = 'output window, operand 0']
    #allocation3 [shape = 's32[2]{0}', space=sflag, size = 0x8, scoped, tag = 'scoped memory for tpu_custom_call.1']
    %12 = vsyncpa [#allocation3], 0
    %s13 = scalar_lea.sflag [#allocation3], 1
    %14 = vsyncpa %s13, 0
    loop: start=0, step=1, limit=4
    $region2: #{tpu_custom_call.1} parent=1 // loop_pre_header
      _
    $region3: #{tpu_custom_call.1} parent=1 // loop_header
      %s16 = sphi 0, %s20
      %p17 = scmp.ge.s32.totalorder %s16, 4
      %s26 = sphi 0, %s28
      %s29 = sphi 0, %s26
      %s30 = sphi 0, %s29
      %s46 = sphi 0, %s30
      %s52 = sphi 0, %s54
      %s55 = sphi 0, %s52
      %s56 = sphi 0, %s55
      %s72 = sphi 0, %s56
      %s76 = sphi 0, %s76
      %s78 = sphi 0, %s76
      %s79 = sphi 0, %s78
      %s93 = sphi 0, %s79
      %s97 = sphi 0, %s97
      %s99 = sphi 0, %s97
      %s100 = sphi 0, %s99
      %s114 = sphi 0, %s100
      %s118 = sphi 0, %s118
      %s120 = sphi 0, %s118
      %s121 = sphi 0, %s120
      %s135 = sphi 0, %s121
      %s139 = sphi 0, %s139
      %s141 = sphi 0, %s139
      %s142 = sphi 0, %s141
      %s156 = sphi 0, %s142
      %s160 = sphi 0, %s160
      %s162 = sphi 0, %s160
      %s163 = sphi 0, %s162
      %s177 = sphi 0, %s163
      %s183 = sphi 0, %s185
      %s186 = sphi 0, %s183
      %s187 = sphi 0, %s186
      %s203 = sphi 0, %s187
    $region4: #{tpu_custom_call.1} parent=1 // loop_header_branch
      %19 = sbr.rel (%p17) target = $region8
    $region5: #{tpu_custom_call.1} parent=1 // loop_body
      %s21 = ssub.s32 %s16, 1
      %s22 = ssub.s32 %s16, 2
      %s23 = sadd.s32 %s16, 1
      %s24 = ssub.s32 %s16, %s23
      %p25 = scmp.eq.s32.totalorder %s24, 0
      %s27 = sadd.s32 %s26, 1
      %s28 = scalar_select %p25, %s26, %s27
      %p31 = pneg %p25
      %p32 = scmp.eq.s32.totalorder %s16, 1
      %p33 = por %p31, %p32
      %p34 = scmp.ne.s32.totalorder %s26, %s29
      %p35 = scmp.eq.s32.totalorder %s16, 0
      %p36 = por %p34, %p35
      %p37 = scmp.ne.s32.totalorder %s26, %s29
      %p38 = scmp.eq.s32.totalorder %s21, 1
      %p39 = por %p37, %p38
      %p40 = scmp.ne.s32.totalorder %s29, %s30
      %p41 = scmp.eq.s32.totalorder %s21, 0
      %p42 = por %p40, %p41
      %p43 = scmp.ne.s32.totalorder %s29, %s30
      %p44 = scmp.eq.s32.totalorder %s22, 1
      %p45 = por %p43, %p44
      %p47 = scmp.ne.s32.totalorder %s30, %s46
      %p48 = scmp.eq.s32.totalorder %s22, 0
      %p49 = por %p47, %p48
      %s50 = ssub.s32 %s16, %s23
      %p51 = scmp.eq.s32.totalorder %s50, 0
      %s53 = sadd.s32 %s52, 1
      %s54 = scalar_select %p51, %s52, %s53
      %p57 = pneg %p51
      %p58 = scmp.eq.s32.totalorder %s16, 1
      %p59 = por %p57, %p58
      %p60 = scmp.ne.s32.totalorder %s52, %s55
      %p61 = scmp.eq.s32.totalorder %s16, 0
      %p62 = por %p60, %p61
      %p63 = scmp.ne.s32.totalorder %s52, %s55
      %p64 = scmp.eq.s32.totalorder %s21, 1
      %p65 = por %p63, %p64
      %p66 = scmp.ne.s32.totalorder %s55, %s56
      %p67 = scmp.eq.s32.totalorder %s21, 0
      %p68 = por %p66, %p67
      %p69 = scmp.ne.s32.totalorder %s55, %s56
      %p70 = scmp.eq.s32.totalorder %s22, 1
      %p71 = por %p69, %p70
      %p73 = scmp.ne.s32.totalorder %s56, %s72
      %p74 = scmp.eq.s32.totalorder %s22, 0
      %p75 = por %p73, %p74
      %s77 = sadd.s32 %s76, 1
      %p80 = scmp.eq.s32.totalorder %s16, 1
      %p81 = scmp.ne.s32.totalorder %s76, %s78
      %p82 = scmp.eq.s32.totalorder %s16, 0
      %p83 = por %p81, %p82
      %p84 = scmp.ne.s32.totalorder %s76, %s78
      %p85 = scmp.eq.s32.totalorder %s21, 1
      %p86 = por %p84, %p85
      %p87 = scmp.ne.s32.totalorder %s78, %s79
      %p88 = scmp.eq.s32.totalorder %s21, 0
      %p89 = por %p87, %p88
      %p90 = scmp.ne.s32.totalorder %s78, %s79
      %p91 = scmp.eq.s32.totalorder %s22, 1
      %p92 = por %p90, %p91
      %p94 = scmp.ne.s32.totalorder %s79, %s93
      %p95 = scmp.eq.s32.totalorder %s22, 0
      %p96 = por %p94, %p95
      %s98 = sadd.s32 %s97, 1
      %p101 = scmp.eq.s32.totalorder %s16, 1
      %p102 = scmp.ne.s32.totalorder %s97, %s99
      %p103 = scmp.eq.s32.totalorder %s16, 0
      %p104 = por %p102, %p103
      %p105 = scmp.ne.s32.totalorder %s97, %s99
      %p106 = scmp.eq.s32.totalorder %s21, 1
      %p107 = por %p105, %p106
      %p108 = scmp.ne.s32.totalorder %s99, %s100
      %p109 = scmp.eq.s32.totalorder %s21, 0
      %p110 = por %p108, %p109
      %p111 = scmp.ne.s32.totalorder %s99, %s100
      %p112 = scmp.eq.s32.totalorder %s22, 1
      %p113 = por %p111, %p112
      %p115 = scmp.ne.s32.totalorder %s100, %s114
      %p116 = scmp.eq.s32.totalorder %s22, 0
      %p117 = por %p115, %p116
      %s119 = sadd.s32 %s118, 1
      %p122 = scmp.eq.s32.totalorder %s16, 1
      %p123 = scmp.ne.s32.totalorder %s118, %s120
      %p124 = scmp.eq.s32.totalorder %s16, 0
      %p125 = por %p123, %p124
      %p126 = scmp.ne.s32.totalorder %s118, %s120
      %p127 = scmp.eq.s32.totalorder %s21, 1
      %p128 = por %p126, %p127
      %p129 = scmp.ne.s32.totalorder %s120, %s121
      %p130 = scmp.eq.s32.totalorder %s21, 0
      %p131 = por %p129, %p130
      %p132 = scmp.ne.s32.totalorder %s120, %s121
      %p133 = scmp.eq.s32.totalorder %s22, 1
      %p134 = por %p132, %p133
      %p136 = scmp.ne.s32.totalorder %s121, %s135
      %p137 = scmp.eq.s32.totalorder %s22, 0
      %p138 = por %p136, %p137
      %s140 = sadd.s32 %s139, 1
      %p143 = scmp.eq.s32.totalorder %s16, 1
      %p144 = scmp.ne.s32.totalorder %s139, %s141
      %p145 = scmp.eq.s32.totalorder %s16, 0
      %p146 = por %p144, %p145
      %p147 = scmp.ne.s32.totalorder %s139, %s141
      %p148 = scmp.eq.s32.totalorder %s21, 1
      %p149 = por %p147, %p148
      %p150 = scmp.ne.s32.totalorder %s141, %s142
      %p151 = scmp.eq.s32.totalorder %s21, 0
      %p152 = por %p150, %p151
      %p153 = scmp.ne.s32.totalorder %s141, %s142
      %p154 = scmp.eq.s32.totalorder %s22, 1
      %p155 = por %p153, %p154
      %p157 = scmp.ne.s32.totalorder %s142, %s156
      %p158 = scmp.eq.s32.totalorder %s22, 0
      %p159 = por %p157, %p158
      %s161 = sadd.s32 %s160, 1
      %p164 = scmp.eq.s32.totalorder %s16, 1
      %p165 = scmp.ne.s32.totalorder %s160, %s162
      %p166 = scmp.eq.s32.totalorder %s16, 0
      %p167 = por %p165, %p166
      %p168 = scmp.ne.s32.totalorder %s160, %s162
      %p169 = scmp.eq.s32.totalorder %s21, 1
      %p170 = por %p168, %p169
      %p171 = scmp.ne.s32.totalorder %s162, %s163
      %p172 = scmp.eq.s32.totalorder %s21, 0
      %p173 = por %p171, %p172
      %p174 = scmp.ne.s32.totalorder %s162, %s163
      %p175 = scmp.eq.s32.totalorder %s22, 1
      %p176 = por %p174, %p175
      %p178 = scmp.ne.s32.totalorder %s163, %s177
      %p179 = scmp.eq.s32.totalorder %s22, 0
      %p180 = por %p178, %p179
      %s181 = ssub.s32 %s16, %s23
      %p182 = scmp.eq.s32.totalorder %s181, 0
      %s184 = sadd.s32 %s183, 1
      %s185 = scalar_select %p182, %s183, %s184
      %p188 = pneg %p182
      %p189 = scmp.eq.s32.totalorder %s16, 1
      %p190 = por %p188, %p189
      %p191 = scmp.ne.s32.totalorder %s183, %s186
      %p192 = scmp.eq.s32.totalorder %s16, 0
      %p193 = por %p191, %p192
      %p194 = scmp.ne.s32.totalorder %s183, %s186
      %p195 = scmp.eq.s32.totalorder %s21, 1
      %p196 = por %p194, %p195
      %p197 = scmp.ne.s32.totalorder %s186, %s187
      %p198 = scmp.eq.s32.totalorder %s21, 0
      %p199 = por %p197, %p198
      %p200 = scmp.ne.s32.totalorder %s186, %s187
      %p201 = scmp.eq.s32.totalorder %s22, 1
      %p202 = por %p200, %p201
      %p204 = scmp.ne.s32.totalorder %s187, %s203
      %p205 = scmp.eq.s32.totalorder %s22, 0
      %p206 = por %p204, %p205
      %p207 = scmp.le.s32.totalorder 1, %s16
      %p208 = scmp.lt.s32.totalorder %s16, 3
      %p209 = pnand %p207, %p208
      %p210 = pneg %p209
      // Predicated region
      $region9: #{tpu_custom_call.1} parent=5 // pred_check
        _
      $region10: #{tpu_custom_call.1} parent=5 // pred_check_branch
        %212 = sbr.rel (%p209) target = $region12
      $region11: #{tpu_custom_call.1} parent=5 // pred_region
        %s213 = ssub.s32 %s16, 1
        // Predicated region
        $region13: #{tpu_custom_call.1} parent=11 // pred_check
          %p214 = pneg %p89
        $region14: #{tpu_custom_call.1} parent=11 // pred_check_branch
          %216 = sbr.rel (%p214) target = $region16
        $region15: #{tpu_custom_call.1} parent=11 // pred_region
          _
        $region16: #{tpu_custom_call.1} parent=11 // pred_fallthru
          _
        // Predicated region
        $region17: #{tpu_custom_call.1} parent=11 // pred_check
          %p217 = pneg %p110
        $region18: #{tpu_custom_call.1} parent=11 // pred_check_branch
          %219 = sbr.rel (%p217) target = $region20
        $region19: #{tpu_custom_call.1} parent=11 // pred_region
          _
        $region20: #{tpu_custom_call.1} parent=11 // pred_fallthru
          _
        // Predicated region
        $region21: #{tpu_custom_call.1} parent=11 // pred_check
          %p220 = pneg %p131
        $region22: #{tpu_custom_call.1} parent=11 // pred_check_branch
          %222 = sbr.rel (%p220) target = $region24
        $region23: #{tpu_custom_call.1} parent=11 // pred_region
          _
        $region24: #{tpu_custom_call.1} parent=11 // pred_fallthru
          _
        // Predicated region
        $region25: #{tpu_custom_call.1} parent=11 // pred_check
          %p223 = pneg %p152
        $region26: #{tpu_custom_call.1} parent=11 // pred_check_branch
          %225 = sbr.rel (%p223) target = $region28
        $region27: #{tpu_custom_call.1} parent=11 // pred_region
          _
        $region28: #{tpu_custom_call.1} parent=11 // pred_fallthru
          _
        // Predicated region
        $region29: #{tpu_custom_call.1} parent=11 // pred_check
          %p226 = pneg %p173
        $region30: #{tpu_custom_call.1} parent=11 // pred_check_branch
          %228 = sbr.rel (%p226) target = $region32
        $region31: #{tpu_custom_call.1} parent=11 // pred_region
          _
        $region32: #{tpu_custom_call.1} parent=11 // pred_fallthru
          _
      $region12: #{tpu_custom_call.1} parent=5 // pred_fallthru
        _
      %p229 = scmp.lt.s32.totalorder %s16, 2
      // Predicated region
      $region33: #{tpu_custom_call.1} parent=5 // pred_check
        %p230 = pneg %p229
      $region34: #{tpu_custom_call.1} parent=5 // pred_check_branch
        %232 = sbr.rel (%p230) target = $region36
      $region35: #{tpu_custom_call.1} parent=5 // pred_region
        // Predicated region
        $region37: #{tpu_custom_call.1} parent=35 // pred_check
          %p233 = pneg %p36
        $region38: #{tpu_custom_call.1} parent=35 // pred_check_branch
          %235 = sbr.rel (%p233) target = $region40
        $region39: #{tpu_custom_call.1} parent=35 // pred_region
          %s236 = smul.u32 16, %s16
          %p237 = scmp.lt.s32.totalorder %s236, 31
          %s238 = scalar_select %p237, %s236, 31
          %s239 = smul.addr %s238, 8
          %s240 = scalar_lea.vmem %s0, %s239
          %s241 = smul.u32 16, %s16
        $region40: #{tpu_custom_call.1} parent=35 // pred_fallthru
          _
        // Predicated region
        $region41: #{tpu_custom_call.1} parent=35 // pred_check
          %p242 = pneg %p62
        $region42: #{tpu_custom_call.1} parent=35 // pred_check_branch
          %244 = sbr.rel (%p242) target = $region44
        $region43: #{tpu_custom_call.1} parent=35 // pred_region
          %s245 = smul.u32 16, %s16
          %p246 = scmp.lt.s32.totalorder %s245, 31
          %s247 = scalar_select %p246, %s245, 31
          %s248 = smul.addr %s247, 8
          %s249 = scalar_lea.vmem %s1, %s248
          %s250 = smul.u32 16, %s16
        $region44: #{tpu_custom_call.1} parent=35 // pred_fallthru
          _
      $region36: #{tpu_custom_call.1} parent=5 // pred_fallthru
        _
      %p251 = scmp.le.s32.totalorder 1, %s16
      %p252 = scmp.lt.s32.totalorder %s16, 3
      %p253 = pnand %p251, %p252
      %p254 = pneg %p253
      // Predicated region
      $region45: #{tpu_custom_call.1} parent=5 // pred_check
        _
      $region46: #{tpu_custom_call.1} parent=5 // pred_check_branch
        %256 = sbr.rel (%p253) target = $region48
      $region47: #{tpu_custom_call.1} parent=5 // pred_region
        %s257 = ssub.s32 %s16, 1
        %s258 = smul.u32 16, %s21
        %p259 = scmp.lt.s32.totalorder %s258, 31
        %s260 = scalar_select %p259, %s258, 31
        %s261 = smul.addr %s260, 8
        %s262 = scalar_lea.vmem %s0, %s261
        %p263 = pneg %p42
        %p264 = pneg %p39
        %s265 = smul.u32 16, %s21
        %p266 = scmp.lt.s32.totalorder %s265, 31
        %s267 = scalar_select %p266, %s265, 31
        %s268 = smul.addr %s267, 8
        %s269 = scalar_lea.vmem %s1, %s268
        %p270 = pneg %p68
        %p271 = pneg %p65
        %p272 = pneg %p89
        %p273 = pneg %p86
        %p274 = pneg %p110
        %p275 = pneg %p107
        %p276 = pneg %p131
        %p277 = pneg %p128
        %p278 = pneg %p152
        %p279 = pneg %p149
        %p280 = pneg %p173
        %p281 = pneg %p170
        %p282 = pneg %p199
        %p283 = pneg %p196
        %s284 = sand.u32 %s186, 1
        %s285 = scalar_lea.sflag [#allocation3], %s284
        %s286 = sand.u32 %s186, 1
        %s287 = smul.addr %s286, 8
        %s288 = scalar_lea.vmem [#allocation2], %s287
        %s289 = smul.u32 16, %s21
        %p290 = scmp.lt.s32.totalorder %s289, 31
        %s291 = scalar_select %p290, %s289, 31
        %s292 = smul.addr %s291, 8
        %s293 = scalar_lea.vmem %s0, %s292
        %s294 = smul.u32 16, %s21
        %s295 = smul.u32 16, %s21
        %p296 = scmp.lt.s32.totalorder %s295, 31
        %s297 = scalar_select %p296, %s295, 31
        %s298 = smul.addr %s297, 8
        %s299 = scalar_lea.vmem %s1, %s298
        %s300 = smul.u32 16, %s21
        %v301 = vld [vmem:[%s293] sm:$0xff]
        %v302 = vld [vmem:[%s293 + $0x8] sm:$0xff]
        %v303 = vld [vmem:[%s293 + $0x10] sm:$0xff]
        %v304 = vld [vmem:[%s293 + $0x18] sm:$0xff]
        %v305 = vld [vmem:[%s293 + $0x20] sm:$0xff]
        %v306 = vld [vmem:[%s293 + $0x28] sm:$0xff]
        %v307 = vld [vmem:[%s293 + $0x30] sm:$0xff]
        %v308 = vld [vmem:[%s293 + $0x38] sm:$0xff]
        %v309 = vld [vmem:[%s293 + $0x40] sm:$0xff]
        %v310 = vld [vmem:[%s293 + $0x48] sm:$0xff]
        %v311 = vld [vmem:[%s293 + $0x50] sm:$0xff]
        %v312 = vld [vmem:[%s293 + $0x58] sm:$0xff]
        %v313 = vld [vmem:[%s293 + $0x60] sm:$0xff]
        %v314 = vld [vmem:[%s293 + $0x68] sm:$0xff]
        %v315 = vld [vmem:[%s293 + $0x70] sm:$0xff]
        %v316 = vld [vmem:[%s293 + $0x78] sm:$0xff]
        %v317 = vld [vmem:[%s299] sm:$0xff]
        %v318 = vld [vmem:[%s299 + $0x8] sm:$0xff]
        %v319 = vld [vmem:[%s299 + $0x10] sm:$0xff]
        %v320 = vld [vmem:[%s299 + $0x18] sm:$0xff]
        %v321 = vld [vmem:[%s299 + $0x20] sm:$0xff]
        %v322 = vld [vmem:[%s299 + $0x28] sm:$0xff]
        %v323 = vld [vmem:[%s299 + $0x30] sm:$0xff]
        %v324 = vld [vmem:[%s299 + $0x38] sm:$0xff]
        %v325 = vld [vmem:[%s299 + $0x40] sm:$0xff]
        %v326 = vld [vmem:[%s299 + $0x48] sm:$0xff]
        %v327 = vld [vmem:[%s299 + $0x50] sm:$0xff]
        %v328 = vld [vmem:[%s299 + $0x58] sm:$0xff]
        %v329 = vld [vmem:[%s299 + $0x60] sm:$0xff]
        %v330 = vld [vmem:[%s299 + $0x68] sm:$0xff]
        %v331 = vld [vmem:[%s299 + $0x70] sm:$0xff]
        %v332 = vld [vmem:[%s299 + $0x78] sm:$0xff]
        %v333 = vld [vmem:[%s2] sm:$0xff]
        %v334 = vld [vmem:[%s2 + $0x8] sm:$0xff]
        %v335 = vld [vmem:[%s2 + $0x10] sm:$0xff]
        %v336 = vld [vmem:[%s2 + $0x18] sm:$0xff]
        %v337 = vld [vmem:[%s2 + $0x20] sm:$0xff]
        %v338 = vld [vmem:[%s2 + $0x28] sm:$0xff]
        %v339 = vld [vmem:[%s2 + $0x30] sm:$0xff]
        %v340 = vld [vmem:[%s2 + $0x38] sm:$0xff]
        %v341 = vld [vmem:[%s3] sm:$0xff]
        %v342 = vld [vmem:[%s3 + $0x8] sm:$0xff]
        %v343 = vld [vmem:[%s3 + $0x10] sm:$0xff]
        %v344 = vld [vmem:[%s3 + $0x18] sm:$0xff]
        %v345 = vld [vmem:[%s3 + $0x20] sm:$0xff]
        %v346 = vld [vmem:[%s3 + $0x28] sm:$0xff]
        %v347 = vld [vmem:[%s3 + $0x30] sm:$0xff]
        %v348 = vld [vmem:[%s3 + $0x38] sm:$0xff]
        %v349 = vld [vmem:[%s3 + $0x40] sm:$0xff]
        %v350 = vld [vmem:[%s3 + $0x48] sm:$0xff]
        %v351 = vld [vmem:[%s3 + $0x50] sm:$0xff]
        %v352 = vld [vmem:[%s3 + $0x58] sm:$0xff]
        %v353 = vld [vmem:[%s3 + $0x60] sm:$0xff]
        %v354 = vld [vmem:[%s3 + $0x68] sm:$0xff]
        %v355 = vld [vmem:[%s3 + $0x70] sm:$0xff]
        %v356 = vld [vmem:[%s3 + $0x78] sm:$0xff]
        %v357 = vld [vmem:[%s4] sm:$0x1]
        %v358 = vld [vmem:[%s5] sm:$0x1]
        %v359 = vld [vmem:[%s6] sm:$0xff]
        %v361 = vlaneseq
        %v362 = vshrl.u32 %v361, 7
        %v363 = vsub.s32 0, %v362
        %v364 = vrot.slane %v357, %v363
        %vm366 = vcmask 523264
        %v368 = vsel %vm366, %v301, 0
        %v371 = vsel %vm366, %v302, 0
        %v374 = vsel %vm366, %v303, 0
        %v377 = vsel %vm366, %v304, 0
        %v380 = vsel %vm366, %v305, 0
        %v383 = vsel %vm366, %v306, 0
        %v386 = vsel %vm366, %v307, 0
        %v389 = vsel %vm366, %v308, 0
        %v392 = vsel %vm366, %v309, 0
        %v395 = vsel %vm366, %v310, 0
        %v398 = vsel %vm366, %v311, 0
        %v401 = vsel %vm366, %v312, 0
        %v404 = vsel %vm366, %v313, 0
        %v407 = vsel %vm366, %v314, 0
        %v410 = vsel %vm366, %v315, 0
        %v413 = vsel %vm366, %v316, 0
        %415 = vmatprep.subr.mxu0 0.0
        %416 = vmatpush1.msra.mxu0 0.0
        %417 = vmatprep.subr.mxu0 0.0
        %418 = vmatpush1.msra.mxu0 0.0
        %419 = vmatprep.subr.mxu0 0.0
        %420 = vmatpush1.msra.mxu0 0.0
        %421 = vmatprep.subr.mxu0 0.0
        %422 = vmatpush1.msra.mxu0 0.0
        %423 = vmatprep.subr.mxu0 0.0
        %424 = vmatpush1.msra.mxu0 0.0
        %425 = vmatprep.subr.mxu0 0.0
        %426 = vmatpush1.msra.mxu0 0.0
        %427 = vmatprep.subr.mxu0 0.0
        %428 = vmatpush1.msra.mxu0 0.0
        %429 = vmatprep.subr.mxu0 0.0
        %430 = vmatpush1.msra.mxu0 0.0
        %431 = vmatprep.subr.mxu0 0.0
        %432 = vmatpush1.msra.mxu0 %v340
        %433 = vmatprep.subr.mxu0 0.0
        %434 = vmatpush1.msra.mxu0 %v339
        %435 = vmatprep.subr.mxu0 0.0
        %436 = vmatpush1.msra.mxu0 %v338
        %437 = vmatprep.subr.mxu0 0.0
        %438 = vmatpush1.msra.mxu0 %v337
        %439 = vmatprep.subr.mxu0 0.0
        %440 = vmatpush1.msra.mxu0 %v336
        %441 = vmatprep.subr.mxu0 0.0
        %442 = vmatpush1.msra.mxu0 %v335
        %443 = vmatprep.subr.mxu0 0.0
        %444 = vmatpush1.msra.mxu0 %v334
        %445 = vmatprep.subr.mxu0 0.0
        %446 = vmatpush1.msra.mxu0 %v333
        %447 = vmatprep.subr.mxu0 0.0
        %448 = vmatpush2.msra.mxu0 0.0
        %449 = vmatprep.subr.mxu0 0.0
        %450 = vmatpush2.msra.mxu0 0.0
        %451 = vmatprep.subr.mxu0 0.0
        %452 = vmatpush2.msra.mxu0 0.0
        %453 = vmatprep.subr.mxu0 0.0
        %454 = vmatpush2.msra.mxu0 0.0
        %455 = vmatprep.subr.mxu0 0.0
        %456 = vmatpush2.msra.mxu0 0.0
        %457 = vmatprep.subr.mxu0 0.0
        %458 = vmatpush2.msra.mxu0 0.0
        %459 = vmatprep.subr.mxu0 0.0
        %460 = vmatpush2.msra.mxu0 0.0
        %461 = vmatprep.subr.mxu0 0.0
        %462 = vmatpush2.msra.mxu0 0.0
        %463 = vmatprep.subr.mxu0 0.0
        %464 = vmatpush2.msra.mxu0 0.0
        %465 = vmatprep.subr.mxu0 0.0
        %466 = vmatpush2.msra.mxu0 0.0
        %467 = vmatprep.subr.mxu0 0.0
        %468 = vmatpush2.msra.mxu0 0.0
        %469 = vmatprep.subr.mxu0 0.0
        %470 = vmatpush2.msra.mxu0 0.0
        %471 = vmatprep.subr.mxu0 0.0
        %472 = vmatpush2.msra.mxu0 0.0
        %473 = vmatprep.subr.mxu0 0.0
        %474 = vmatpush2.msra.mxu0 0.0
        %475 = vmatprep.subr.mxu0 0.0
        %476 = vmatpush2.msra.mxu0 0.0
        %477 = vmatprep.subr.mxu0 0.0
        %478 = vmatpush2.msra.mxu0 0.0
        %479 = vmatprep.mubr.f32.mxu0 0.0
        %480 = vmatmul.mubr.f32.gmra.mxu0 %v368
        %v481 = vpop.f32.mrf.mxu0
        %v482 = vadd.f32 %v364, %v481
        %v483 = vpop.f32.mrf.mxu0
        %484 = vmatprep.mubr.f32.mxu0 0.0
        %485 = vmatmul.mubr.f32.gmra.mxu0 %v371
        %v486 = vpop.f32.mrf.mxu0
        %v487 = vadd.f32 %v364, %v486
        %v488 = vpop.f32.mrf.mxu0
        %489 = vmatprep.mubr.f32.mxu0 0.0
        %490 = vmatmul.mubr.f32.gmra.mxu0 %v374
        %v491 = vpop.f32.mrf.mxu0
        %v492 = vadd.f32 %v364, %v491
        %v493 = vpop.f32.mrf.mxu0
        %494 = vmatprep.mubr.f32.mxu0 0.0
        %495 = vmatmul.mubr.f32.gmra.mxu0 %v377
        %v496 = vpop.f32.mrf.mxu0
        %v497 = vadd.f32 %v364, %v496
        %v498 = vpop.f32.mrf.mxu0
        %499 = vmatprep.mubr.f32.mxu0 0.0
        %500 = vmatmul.mubr.f32.gmra.mxu0 %v380
        %v501 = vpop.f32.mrf.mxu0
        %v502 = vadd.f32 %v364, %v501
        %v503 = vpop.f32.mrf.mxu0
        %504 = vmatprep.mubr.f32.mxu0 0.0
        %505 = vmatmul.mubr.f32.gmra.mxu0 %v383
        %v506 = vpop.f32.mrf.mxu0
        %v507 = vadd.f32 %v364, %v506
        %v508 = vpop.f32.mrf.mxu0
        %509 = vmatprep.mubr.f32.mxu0 0.0
        %510 = vmatmul.mubr.f32.gmra.mxu0 %v386
        %v511 = vpop.f32.mrf.mxu0
        %v512 = vadd.f32 %v364, %v511
        %v513 = vpop.f32.mrf.mxu0
        %514 = vmatprep.mubr.f32.mxu0 0.0
        %515 = vmatmul.mubr.f32.gmra.mxu0 %v389
        %v516 = vpop.f32.mrf.mxu0
        %v517 = vadd.f32 %v364, %v516
        %v518 = vpop.f32.mrf.mxu0
        %519 = vmatprep.mubr.f32.mxu0 0.0
        %520 = vmatmul.mubr.f32.gmra.mxu0 %v392
        %v521 = vpop.f32.mrf.mxu0
        %v522 = vadd.f32 %v364, %v521
        %v523 = vpop.f32.mrf.mxu0
        %524 = vmatprep.mubr.f32.mxu0 0.0
        %525 = vmatmul.mubr.f32.gmra.mxu0 %v395
        %v526 = vpop.f32.mrf.mxu0
        %v527 = vadd.f32 %v364, %v526
        %v528 = vpop.f32.mrf.mxu0
        %529 = vmatprep.mubr.f32.mxu0 0.0
        %530 = vmatmul.mubr.f32.gmra.mxu0 %v398
        %v531 = vpop.f32.mrf.mxu0
        %v532 = vadd.f32 %v364, %v531
        %v533 = vpop.f32.mrf.mxu0
        %534 = vmatprep.mubr.f32.mxu0 0.0
        %535 = vmatmul.mubr.f32.gmra.mxu0 %v401
        %v536 = vpop.f32.mrf.mxu0
        %v537 = vadd.f32 %v364, %v536
        %v538 = vpop.f32.mrf.mxu0
        %539 = vmatprep.mubr.f32.mxu0 0.0
        %540 = vmatmul.mubr.f32.gmra.mxu0 %v404
        %v541 = vpop.f32.mrf.mxu0
        %v542 = vadd.f32 %v364, %v541
        %v543 = vpop.f32.mrf.mxu0
        %544 = vmatprep.mubr.f32.mxu0 0.0
        %545 = vmatmul.mubr.f32.gmra.mxu0 %v407
        %v546 = vpop.f32.mrf.mxu0
        %v547 = vadd.f32 %v364, %v546
        %v548 = vpop.f32.mrf.mxu0
        %549 = vmatprep.mubr.f32.mxu0 0.0
        %550 = vmatmul.mubr.f32.gmra.mxu0 %v410
        %v551 = vpop.f32.mrf.mxu0
        %v552 = vadd.f32 %v364, %v551
        %v553 = vpop.f32.mrf.mxu0
        %554 = vmatprep.mubr.f32.mxu0 0.0
        %555 = vmatmul.mubr.f32.gmra.mxu0 %v413
        %v556 = vpop.f32.mrf.mxu0
        %v557 = vadd.f32 %v364, %v556
        %v558 = vpop.f32.mrf.mxu0
        %559 = vdwg.mxu0
        %v561 = vlaneseq
        %v562 = vshrl.u32 %v561, 7
        %v563 = vsub.s32 0, %v562
        %v564 = vrot.slane %v358, %v563
        %v566 = vsub.f32 %v482, %v564
        %v567 = vsub.f32 %v487, %v564
        %v568 = vsub.f32 %v492, %v564
        %v569 = vsub.f32 %v497, %v564
        %v570 = vsub.f32 %v502, %v564
        %v571 = vsub.f32 %v507, %v564
        %v572 = vsub.f32 %v512, %v564
        %v573 = vsub.f32 %v517, %v564
        %v574 = vsub.f32 %v522, %v564
        %v575 = vsub.f32 %v527, %v564
        %v576 = vsub.f32 %v532, %v564
        %v577 = vsub.f32 %v537, %v564
        %v578 = vsub.f32 %v542, %v564
        %v579 = vsub.f32 %v547, %v564
        %v580 = vsub.f32 %v552, %v564
        %v581 = vsub.f32 %v557, %v564
        %v582 = vadd.f32 %v482, %v564
        %v583 = vadd.f32 %v487, %v564
        %v584 = vadd.f32 %v492, %v564
        %v585 = vadd.f32 %v497, %v564
        %v586 = vadd.f32 %v502, %v564
        %v587 = vadd.f32 %v507, %v564
        %v588 = vadd.f32 %v512, %v564
        %v589 = vadd.f32 %v517, %v564
        %v590 = vadd.f32 %v522, %v564
        %v591 = vadd.f32 %v527, %v564
        %v592 = vadd.f32 %v532, %v564
        %v593 = vadd.f32 %v537, %v564
        %v594 = vadd.f32 %v542, %v564
        %v595 = vadd.f32 %v547, %v564
        %v596 = vadd.f32 %v552, %v564
        %v597 = vadd.f32 %v557, %v564
        %vm598 = vcmp.lt.f32.partialorder %v566, 0.0
        %vm599 = vcmp.lt.f32.partialorder %v567, 0.0
        %vm600 = vcmp.lt.f32.partialorder %v568, 0.0
        %vm601 = vcmp.lt.f32.partialorder %v569, 0.0
        %vm602 = vcmp.lt.f32.partialorder %v570, 0.0
        %vm603 = vcmp.lt.f32.partialorder %v571, 0.0
        %vm604 = vcmp.lt.f32.partialorder %v572, 0.0
        %vm605 = vcmp.lt.f32.partialorder %v573, 0.0
        %vm606 = vcmp.lt.f32.partialorder %v574, 0.0
        %vm607 = vcmp.lt.f32.partialorder %v575, 0.0
        %vm608 = vcmp.lt.f32.partialorder %v576, 0.0
        %vm609 = vcmp.lt.f32.partialorder %v577, 0.0
        %vm610 = vcmp.lt.f32.partialorder %v578, 0.0
        %vm611 = vcmp.lt.f32.partialorder %v579, 0.0
        %vm612 = vcmp.lt.f32.partialorder %v580, 0.0
        %vm613 = vcmp.lt.f32.partialorder %v581, 0.0
        %vm614 = vcmp.gt.f32.partialorder %v582, 0.0
        %vm615 = vcmp.gt.f32.partialorder %v583, 0.0
        %vm616 = vcmp.gt.f32.partialorder %v584, 0.0
        %vm617 = vcmp.gt.f32.partialorder %v585, 0.0
        %vm618 = vcmp.gt.f32.partialorder %v586, 0.0
        %vm619 = vcmp.gt.f32.partialorder %v587, 0.0
        %vm620 = vcmp.gt.f32.partialorder %v588, 0.0
        %vm621 = vcmp.gt.f32.partialorder %v589, 0.0
        %vm622 = vcmp.gt.f32.partialorder %v590, 0.0
        %vm623 = vcmp.gt.f32.partialorder %v591, 0.0
        %vm624 = vcmp.gt.f32.partialorder %v592, 0.0
        %vm625 = vcmp.gt.f32.partialorder %v593, 0.0
        %vm626 = vcmp.gt.f32.partialorder %v594, 0.0
        %vm627 = vcmp.gt.f32.partialorder %v595, 0.0
        %vm628 = vcmp.gt.f32.partialorder %v596, 0.0
        %vm629 = vcmp.gt.f32.partialorder %v597, 0.0
        %vm630 = vmand %vm598, %vm614
        %vm631 = vmand %vm599, %vm615
        %vm632 = vmand %vm600, %vm616
        %vm633 = vmand %vm601, %vm617
        %vm634 = vmand %vm602, %vm618
        %vm635 = vmand %vm603, %vm619
        %vm636 = vmand %vm604, %vm620
        %vm637 = vmand %vm605, %vm621
        %vm638 = vmand %vm606, %vm622
        %vm639 = vmand %vm607, %vm623
        %vm640 = vmand %vm608, %vm624
        %vm641 = vmand %vm609, %vm625
        %vm642 = vmand %vm610, %vm626
        %vm643 = vmand %vm611, %vm627
        %vm644 = vmand %vm612, %vm628
        %vm645 = vmand %vm613, %vm629
        %v646 = vsub.f32 %v582, %v566
        %v647 = vsub.f32 %v583, %v567
        %v648 = vsub.f32 %v584, %v568
        %v649 = vsub.f32 %v585, %v569
        %v650 = vsub.f32 %v586, %v570
        %v651 = vsub.f32 %v587, %v571
        %v652 = vsub.f32 %v588, %v572
        %v653 = vsub.f32 %v589, %v573
        %v654 = vsub.f32 %v590, %v574
        %v655 = vsub.f32 %v591, %v575
        %v656 = vsub.f32 %v592, %v576
        %v657 = vsub.f32 %v593, %v577
        %v658 = vsub.f32 %v594, %v578
        %v659 = vsub.f32 %v595, %v579
        %v660 = vsub.f32 %v596, %v580
        %v661 = vsub.f32 %v597, %v581
        %v662 = vsel %vm630, %v646, 1.0
        %v663 = vsel %vm631, %v647, 1.0
        %v664 = vsel %vm632, %v648, 1.0
        %v665 = vsel %vm633, %v649, 1.0
        %v666 = vsel %vm634, %v650, 1.0
        %v667 = vsel %vm635, %v651, 1.0
        %v668 = vsel %vm636, %v652, 1.0
        %v669 = vsel %vm637, %v653, 1.0
        %v670 = vsel %vm638, %v654, 1.0
        %v671 = vsel %vm639, %v655, 1.0
        %v672 = vsel %vm640, %v656, 1.0
        %v673 = vsel %vm641, %v657, 1.0
        %v674 = vsel %vm642, %v658, 1.0
        %v675 = vsel %vm643, %v659, 1.0
        %v676 = vsel %vm644, %v660, 1.0
        %v677 = vsel %vm645, %v661, 1.0
        %vm678 = vcmp.ge.f32.partialorder %v566, 0.0
        %vm679 = vcmp.ge.f32.partialorder %v567, 0.0
        %vm680 = vcmp.ge.f32.partialorder %v568, 0.0
        %vm681 = vcmp.ge.f32.partialorder %v569, 0.0
        %vm682 = vcmp.ge.f32.partialorder %v570, 0.0
        %vm683 = vcmp.ge.f32.partialorder %v571, 0.0
        %vm684 = vcmp.ge.f32.partialorder %v572, 0.0
        %vm685 = vcmp.ge.f32.partialorder %v573, 0.0
        %vm686 = vcmp.ge.f32.partialorder %v574, 0.0
        %vm687 = vcmp.ge.f32.partialorder %v575, 0.0
        %vm688 = vcmp.ge.f32.partialorder %v576, 0.0
        %vm689 = vcmp.ge.f32.partialorder %v577, 0.0
        %vm690 = vcmp.ge.f32.partialorder %v578, 0.0
        %vm691 = vcmp.ge.f32.partialorder %v579, 0.0
        %vm692 = vcmp.ge.f32.partialorder %v580, 0.0
        %vm693 = vcmp.ge.f32.partialorder %v581, 0.0
        %v694 = vrcp.pop %v662
        %v695 = vmul.f32 %v582, %v694
        %v696 = vrcp.pop %v663
        %v697 = vmul.f32 %v583, %v696
        %v698 = vrcp.pop %v664
        %v699 = vmul.f32 %v584, %v698
        %v700 = vrcp.pop %v665
        %v701 = vmul.f32 %v585, %v700
        %v702 = vrcp.pop %v666
        %v703 = vmul.f32 %v586, %v702
        %v704 = vrcp.pop %v667
        %v705 = vmul.f32 %v587, %v704
        %v706 = vrcp.pop %v668
        %v707 = vmul.f32 %v588, %v706
        %v708 = vrcp.pop %v669
        %v709 = vmul.f32 %v589, %v708
        %v710 = vrcp.pop %v670
        %v711 = vmul.f32 %v590, %v710
        %v712 = vrcp.pop %v671
        %v713 = vmul.f32 %v591, %v712
        %v714 = vrcp.pop %v672
        %v715 = vmul.f32 %v592, %v714
        %v716 = vrcp.pop %v673
        %v717 = vmul.f32 %v593, %v716
        %v718 = vrcp.pop %v674
        %v719 = vmul.f32 %v594, %v718
        %v720 = vrcp.pop %v675
        %v721 = vmul.f32 %v595, %v720
        %v722 = vrcp.pop %v676
        %v723 = vmul.f32 %v596, %v722
        %v724 = vrcp.pop %v677
        %v725 = vmul.f32 %v597, %v724
        %v726 = vsel %vm630, %v695, 0.0
        %v727 = vsel %vm631, %v697, 0.0
        %v728 = vsel %vm632, %v699, 0.0
        %v729 = vsel %vm633, %v701, 0.0
        %v730 = vsel %vm634, %v703, 0.0
        %v731 = vsel %vm635, %v705, 0.0
        %v732 = vsel %vm636, %v707, 0.0
        %v733 = vsel %vm637, %v709, 0.0
        %v734 = vsel %vm638, %v711, 0.0
        %v735 = vsel %vm639, %v713, 0.0
        %v736 = vsel %vm640, %v715, 0.0
        %v737 = vsel %vm641, %v717, 0.0
        %v738 = vsel %vm642, %v719, 0.0
        %v739 = vsel %vm643, %v721, 0.0
        %v740 = vsel %vm644, %v723, 0.0
        %v741 = vsel %vm645, %v725, 0.0
        %v742 = vsel %vm678, 1.0, %v726
        %v743 = vsel %vm679, 1.0, %v727
        %v744 = vsel %vm680, 1.0, %v728
        %v745 = vsel %vm681, 1.0, %v729
        %v746 = vsel %vm682, 1.0, %v730
        %v747 = vsel %vm683, 1.0, %v731
        %v748 = vsel %vm684, 1.0, %v732
        %v749 = vsel %vm685, 1.0, %v733
        %v750 = vsel %vm686, 1.0, %v734
        %v751 = vsel %vm687, 1.0, %v735
        %v752 = vsel %vm688, 1.0, %v736
        %v753 = vsel %vm689, 1.0, %v737
        %v754 = vsel %vm690, 1.0, %v738
        %v755 = vsel %vm691, 1.0, %v739
        %v756 = vsel %vm692, 1.0, %v740
        %v757 = vsel %vm693, 1.0, %v741
        %v758 = vsel %vm630, %v566, 0.0
        %v759 = vsel %vm631, %v567, 0.0
        %v760 = vsel %vm632, %v568, 0.0
        %v761 = vsel %vm633, %v569, 0.0
        %v762 = vsel %vm634, %v570, 0.0
        %v763 = vsel %vm635, %v571, 0.0
        %v764 = vsel %vm636, %v572, 0.0
        %v765 = vsel %vm637, %v573, 0.0
        %v766 = vsel %vm638, %v574, 0.0
        %v767 = vsel %vm639, %v575, 0.0
        %v768 = vsel %vm640, %v576, 0.0
        %v769 = vsel %vm641, %v577, 0.0
        %v770 = vsel %vm642, %v578, 0.0
        %v771 = vsel %vm643, %v579, 0.0
        %v772 = vsel %vm644, %v580, 0.0
        %v773 = vsel %vm645, %v581, 0.0
        %v775 = vcombine.high %v359, %v359
        %v777 = vunpack.c.l.s4 1966171168
        %v778 = vunpack.c.0.s8 %v777
        %v779 = vlaneseq
        %v780 = vshrl.u32 %v779, 7
        %v781 = vsub.s32 %v778, %v780
        %v782 = vrot.slane %v359, %v781
        %v784 = vunpack.c.l.s4 1966171168
        %v785 = vunpack.c.0.s8 %v784
        %v786 = vlaneseq
        %v787 = vshrl.u32 %v786, 7
        %v788 = vsub.s32 %v785, %v787
        %v789 = vrot.slane %v775, %v788
        %v790 = vcombine.high %v782, %v782
        %v791 = vcombine.high %v789, %v789
        %v793 = vunpack.c.l.s4 1966171168
        %v794 = vunpack.c.0.s8 %v793
        %v795 = vlaneseq
        %v796 = vshrl.u32 %v795, 7
        %v797 = vsub.s32 %v794, %v796
        %v798 = vrot.slane %v782, %v797
        %v800 = vunpack.c.l.s4 1966171168
        %v801 = vunpack.c.0.s8 %v800
        %v802 = vlaneseq
        %v803 = vshrl.u32 %v802, 7
        %v804 = vsub.s32 %v801, %v803
        %v805 = vrot.slane %v789, %v804
        %v807 = vunpack.c.l.s4 1966171168
        %v808 = vunpack.c.0.s8 %v807
        %v809 = vlaneseq
        %v810 = vshrl.u32 %v809, 7
        %v811 = vsub.s32 %v808, %v810
        %v812 = vrot.slane %v790, %v811
        %v814 = vunpack.c.l.s4 1966171168
        %v815 = vunpack.c.0.s8 %v814
        %v816 = vlaneseq
        %v817 = vshrl.u32 %v816, 7
        %v818 = vsub.s32 %v815, %v817
        %v819 = vrot.slane %v791, %v818
        %v820 = vcombine.high %v798, %v798
        %v821 = vcombine.high %v805, %v805
        %v822 = vcombine.high %v812, %v812
        %v823 = vcombine.high %v819, %v819
        %v824 = vlaneseq
        %v825 = vshrl.u32 %v824, 7
        %v826 = vsub.s32 0, %v825
        %v827 = vrot.slane %v798, %v826
        %v828 = vlaneseq
        %v829 = vshrl.u32 %v828, 7
        %v830 = vsub.s32 0, %v829
        %v831 = vrot.slane %v812, %v830
        %v832 = vlaneseq
        %v833 = vshrl.u32 %v832, 7
        %v834 = vsub.s32 0, %v833
        %v835 = vrot.slane %v820, %v834
        %v836 = vlaneseq
        %v837 = vshrl.u32 %v836, 7
        %v838 = vsub.s32 0, %v837
        %v839 = vrot.slane %v822, %v838
        %v840 = vlaneseq
        %v841 = vshrl.u32 %v840, 7
        %v842 = vsub.s32 0, %v841
        %v843 = vrot.slane %v805, %v842
        %v844 = vlaneseq
        %v845 = vshrl.u32 %v844, 7
        %v846 = vsub.s32 0, %v845
        %v847 = vrot.slane %v819, %v846
        %v848 = vlaneseq
        %v849 = vshrl.u32 %v848, 7
        %v850 = vsub.s32 0, %v849
        %v851 = vrot.slane %v821, %v850
        %v852 = vlaneseq
        %v853 = vshrl.u32 %v852, 7
        %v854 = vsub.s32 0, %v853
        %v855 = vrot.slane %v823, %v854
        %v864 = vsub.f32 %v827, %v317
        %v865 = vsub.f32 %v827, %v318
        %v866 = vsub.f32 %v827, %v319
        %v867 = vsub.f32 %v827, %v320
        %v868 = vsub.f32 %v827, %v321
        %v869 = vsub.f32 %v827, %v322
        %v870 = vsub.f32 %v827, %v323
        %v871 = vsub.f32 %v827, %v324
        %v872 = vsub.f32 %v827, %v325
        %v873 = vsub.f32 %v827, %v326
        %v874 = vsub.f32 %v827, %v327
        %v875 = vsub.f32 %v827, %v328
        %v876 = vsub.f32 %v827, %v329
        %v877 = vsub.f32 %v827, %v330
        %v878 = vsub.f32 %v827, %v331
        %v879 = vsub.f32 %v827, %v332
        %v880 = vsub.f32 %v831, %v317
        %v881 = vsub.f32 %v831, %v318
        %v882 = vsub.f32 %v831, %v319
        %v883 = vsub.f32 %v831, %v320
        %v884 = vsub.f32 %v831, %v321
        %v885 = vsub.f32 %v831, %v322
        %v886 = vsub.f32 %v831, %v323
        %v887 = vsub.f32 %v831, %v324
        %v888 = vsub.f32 %v831, %v325
        %v889 = vsub.f32 %v831, %v326
        %v890 = vsub.f32 %v831, %v327
        %v891 = vsub.f32 %v831, %v328
        %v892 = vsub.f32 %v831, %v329
        %v893 = vsub.f32 %v831, %v330
        %v894 = vsub.f32 %v831, %v331
        %v895 = vsub.f32 %v831, %v332
        %v896 = vsub.f32 %v835, %v317
        %v897 = vsub.f32 %v835, %v318
        %v898 = vsub.f32 %v835, %v319
        %v899 = vsub.f32 %v835, %v320
        %v900 = vsub.f32 %v835, %v321
        %v901 = vsub.f32 %v835, %v322
        %v902 = vsub.f32 %v835, %v323
        %v903 = vsub.f32 %v835, %v324
        %v904 = vsub.f32 %v835, %v325
        %v905 = vsub.f32 %v835, %v326
        %v906 = vsub.f32 %v835, %v327
        %v907 = vsub.f32 %v835, %v328
        %v908 = vsub.f32 %v835, %v329
        %v909 = vsub.f32 %v835, %v330
        %v910 = vsub.f32 %v835, %v331
        %v911 = vsub.f32 %v835, %v332
        %v912 = vsub.f32 %v839, %v317
        %v913 = vsub.f32 %v839, %v318
        %v914 = vsub.f32 %v839, %v319
        %v915 = vsub.f32 %v839, %v320
        %v916 = vsub.f32 %v839, %v321
        %v917 = vsub.f32 %v839, %v322
        %v918 = vsub.f32 %v839, %v323
        %v919 = vsub.f32 %v839, %v324
        %v920 = vsub.f32 %v839, %v325
        %v921 = vsub.f32 %v839, %v326
        %v922 = vsub.f32 %v839, %v327
        %v923 = vsub.f32 %v839, %v328
        %v924 = vsub.f32 %v839, %v329
        %v925 = vsub.f32 %v839, %v330
        %v926 = vsub.f32 %v839, %v331
        %v927 = vsub.f32 %v839, %v332
        %v928 = vsub.f32 %v843, %v317
        %v929 = vsub.f32 %v843, %v318
        %v930 = vsub.f32 %v843, %v319
        %v931 = vsub.f32 %v843, %v320
        %v932 = vsub.f32 %v843, %v321
        %v933 = vsub.f32 %v843, %v322
        %v934 = vsub.f32 %v843, %v323
        %v935 = vsub.f32 %v843, %v324
        %v936 = vsub.f32 %v843, %v325
        %v937 = vsub.f32 %v843, %v326
        %v938 = vsub.f32 %v843, %v327
        %v939 = vsub.f32 %v843, %v328
        %v940 = vsub.f32 %v843, %v329
        %v941 = vsub.f32 %v843, %v330
        %v942 = vsub.f32 %v843, %v331
        %v943 = vsub.f32 %v843, %v332
        %v944 = vsub.f32 %v847, %v317
        %v945 = vsub.f32 %v847, %v318
        %v946 = vsub.f32 %v847, %v319
        %v947 = vsub.f32 %v847, %v320
        %v948 = vsub.f32 %v847, %v321
        %v949 = vsub.f32 %v847, %v322
        %v950 = vsub.f32 %v847, %v323
        %v951 = vsub.f32 %v847, %v324
        %v952 = vsub.f32 %v847, %v325
        %v953 = vsub.f32 %v847, %v326
        %v954 = vsub.f32 %v847, %v327
        %v955 = vsub.f32 %v847, %v328
        %v956 = vsub.f32 %v847, %v329
        %v957 = vsub.f32 %v847, %v330
        %v958 = vsub.f32 %v847, %v331
        %v959 = vsub.f32 %v847, %v332
        %v960 = vsub.f32 %v851, %v317
        %v961 = vsub.f32 %v851, %v318
        %v962 = vsub.f32 %v851, %v319
        %v963 = vsub.f32 %v851, %v320
        %v964 = vsub.f32 %v851, %v321
        %v965 = vsub.f32 %v851, %v322
        %v966 = vsub.f32 %v851, %v323
        %v967 = vsub.f32 %v851, %v324
        %v968 = vsub.f32 %v851, %v325
        %v969 = vsub.f32 %v851, %v326
        %v970 = vsub.f32 %v851, %v327
        %v971 = vsub.f32 %v851, %v328
        %v972 = vsub.f32 %v851, %v329
        %v973 = vsub.f32 %v851, %v330
        %v974 = vsub.f32 %v851, %v331
        %v975 = vsub.f32 %v851, %v332
        %v976 = vsub.f32 %v855, %v317
        %v977 = vsub.f32 %v855, %v318
        %v978 = vsub.f32 %v855, %v319
        %v979 = vsub.f32 %v855, %v320
        %v980 = vsub.f32 %v855, %v321
        %v981 = vsub.f32 %v855, %v322
        %v982 = vsub.f32 %v855, %v323
        %v983 = vsub.f32 %v855, %v324
        %v984 = vsub.f32 %v855, %v325
        %v985 = vsub.f32 %v855, %v326
        %v986 = vsub.f32 %v855, %v327
        %v987 = vsub.f32 %v855, %v328
        %v988 = vsub.f32 %v855, %v329
        %v989 = vsub.f32 %v855, %v330
        %v990 = vsub.f32 %v855, %v331
        %v991 = vsub.f32 %v855, %v332
        %v992 = vmul.f32 %v742, %v864
        %v993 = vmul.f32 %v743, %v865
        %v994 = vmul.f32 %v744, %v866
        %v995 = vmul.f32 %v745, %v867
        %v996 = vmul.f32 %v746, %v868
        %v997 = vmul.f32 %v747, %v869
        %v998 = vmul.f32 %v748, %v870
        %v999 = vmul.f32 %v749, %v871
        %v1000 = vmul.f32 %v750, %v872
        %v1001 = vmul.f32 %v751, %v873
        %v1002 = vmul.f32 %v752, %v874
        %v1003 = vmul.f32 %v753, %v875
        %v1004 = vmul.f32 %v754, %v876
        %v1005 = vmul.f32 %v755, %v877
        %v1006 = vmul.f32 %v756, %v878
        %v1007 = vmul.f32 %v757, %v879
        %v1008 = vmul.f32 %v742, %v880
        %v1009 = vmul.f32 %v743, %v881
        %v1010 = vmul.f32 %v744, %v882
        %v1011 = vmul.f32 %v745, %v883
        %v1012 = vmul.f32 %v746, %v884
        %v1013 = vmul.f32 %v747, %v885
        %v1014 = vmul.f32 %v748, %v886
        %v1015 = vmul.f32 %v749, %v887
        %v1016 = vmul.f32 %v750, %v888
        %v1017 = vmul.f32 %v751, %v889
        %v1018 = vmul.f32 %v752, %v890
        %v1019 = vmul.f32 %v753, %v891
        %v1020 = vmul.f32 %v754, %v892
        %v1021 = vmul.f32 %v755, %v893
        %v1022 = vmul.f32 %v756, %v894
        %v1023 = vmul.f32 %v757, %v895
        %v1024 = vmul.f32 %v742, %v896
        %v1025 = vmul.f32 %v743, %v897
        %v1026 = vmul.f32 %v744, %v898
        %v1027 = vmul.f32 %v745, %v899
        %v1028 = vmul.f32 %v746, %v900
        %v1029 = vmul.f32 %v747, %v901
        %v1030 = vmul.f32 %v748, %v902
        %v1031 = vmul.f32 %v749, %v903
        %v1032 = vmul.f32 %v750, %v904
        %v1033 = vmul.f32 %v751, %v905
        %v1034 = vmul.f32 %v752, %v906
        %v1035 = vmul.f32 %v753, %v907
        %v1036 = vmul.f32 %v754, %v908
        %v1037 = vmul.f32 %v755, %v909
        %v1038 = vmul.f32 %v756, %v910
        %v1039 = vmul.f32 %v757, %v911
        %v1040 = vmul.f32 %v742, %v912
        %v1041 = vmul.f32 %v743, %v913
        %v1042 = vmul.f32 %v744, %v914
        %v1043 = vmul.f32 %v745, %v915
        %v1044 = vmul.f32 %v746, %v916
        %v1045 = vmul.f32 %v747, %v917
        %v1046 = vmul.f32 %v748, %v918
        %v1047 = vmul.f32 %v749, %v919
        %v1048 = vmul.f32 %v750, %v920
        %v1049 = vmul.f32 %v751, %v921
        %v1050 = vmul.f32 %v752, %v922
        %v1051 = vmul.f32 %v753, %v923
        %v1052 = vmul.f32 %v754, %v924
        %v1053 = vmul.f32 %v755, %v925
        %v1054 = vmul.f32 %v756, %v926
        %v1055 = vmul.f32 %v757, %v927
        %v1056 = vmul.f32 %v742, %v928
        %v1057 = vmul.f32 %v743, %v929
        %v1058 = vmul.f32 %v744, %v930
        %v1059 = vmul.f32 %v745, %v931
        %v1060 = vmul.f32 %v746, %v932
        %v1061 = vmul.f32 %v747, %v933
        %v1062 = vmul.f32 %v748, %v934
        %v1063 = vmul.f32 %v749, %v935
        %v1064 = vmul.f32 %v750, %v936
        %v1065 = vmul.f32 %v751, %v937
        %v1066 = vmul.f32 %v752, %v938
        %v1067 = vmul.f32 %v753, %v939
        %v1068 = vmul.f32 %v754, %v940
        %v1069 = vmul.f32 %v755, %v941
        %v1070 = vmul.f32 %v756, %v942
        %v1071 = vmul.f32 %v757, %v943
        %v1072 = vmul.f32 %v742, %v944
        %v1073 = vmul.f32 %v743, %v945
        %v1074 = vmul.f32 %v744, %v946
        %v1075 = vmul.f32 %v745, %v947
        %v1076 = vmul.f32 %v746, %v948
        %v1077 = vmul.f32 %v747, %v949
        %v1078 = vmul.f32 %v748, %v950
        %v1079 = vmul.f32 %v749, %v951
        %v1080 = vmul.f32 %v750, %v952
        %v1081 = vmul.f32 %v751, %v953
        %v1082 = vmul.f32 %v752, %v954
        %v1083 = vmul.f32 %v753, %v955
        %v1084 = vmul.f32 %v754, %v956
        %v1085 = vmul.f32 %v755, %v957
        %v1086 = vmul.f32 %v756, %v958
        %v1087 = vmul.f32 %v757, %v959
        %v1088 = vmul.f32 %v742, %v960
        %v1089 = vmul.f32 %v743, %v961
        %v1090 = vmul.f32 %v744, %v962
        %v1091 = vmul.f32 %v745, %v963
        %v1092 = vmul.f32 %v746, %v964
        %v1093 = vmul.f32 %v747, %v965
        %v1094 = vmul.f32 %v748, %v966
        %v1095 = vmul.f32 %v749, %v967
        %v1096 = vmul.f32 %v750, %v968
        %v1097 = vmul.f32 %v751, %v969
        %v1098 = vmul.f32 %v752, %v970
        %v1099 = vmul.f32 %v753, %v971
        %v1100 = vmul.f32 %v754, %v972
        %v1101 = vmul.f32 %v755, %v973
        %v1102 = vmul.f32 %v756, %v974
        %v1103 = vmul.f32 %v757, %v975
        %v1104 = vmul.f32 %v742, %v976
        %v1105 = vmul.f32 %v743, %v977
        %v1106 = vmul.f32 %v744, %v978
        %v1107 = vmul.f32 %v745, %v979
        %v1108 = vmul.f32 %v746, %v980
        %v1109 = vmul.f32 %v747, %v981
        %v1110 = vmul.f32 %v748, %v982
        %v1111 = vmul.f32 %v749, %v983
        %v1112 = vmul.f32 %v750, %v984
        %v1113 = vmul.f32 %v751, %v985
        %v1114 = vmul.f32 %v752, %v986
        %v1115 = vmul.f32 %v753, %v987
        %v1116 = vmul.f32 %v754, %v988
        %v1117 = vmul.f32 %v755, %v989
        %v1118 = vmul.f32 %v756, %v990
        %v1119 = vmul.f32 %v757, %v991
        %1120 = vmatprep.subr.mxu0 0.0
        %1121 = vmatpush1.msra.mxu0 %v356
        %1122 = vmatprep.subr.mxu0 0.0
        %1123 = vmatpush1.msra.mxu0 %v355
        %1124 = vmatprep.subr.mxu0 0.0
        %1125 = vmatpush1.msra.mxu0 %v354
        %1126 = vmatprep.subr.mxu0 0.0
        %1127 = vmatpush1.msra.mxu0 %v353
        %1128 = vmatprep.subr.mxu0 0.0
        %1129 = vmatpush1.msra.mxu0 %v352
        %1130 = vmatprep.subr.mxu0 0.0
        %1131 = vmatpush1.msra.mxu0 %v351
        %1132 = vmatprep.subr.mxu0 0.0
        %1133 = vmatpush1.msra.mxu0 %v350
        %1134 = vmatprep.subr.mxu0 0.0
        %1135 = vmatpush1.msra.mxu0 %v349
        %1136 = vmatprep.subr.mxu0 0.0
        %1137 = vmatpush1.msra.mxu0 %v348
        %1138 = vmatprep.subr.mxu0 0.0
        %1139 = vmatpush1.msra.mxu0 %v347
        %1140 = vmatprep.subr.mxu0 0.0
        %1141 = vmatpush1.msra.mxu0 %v346
        %1142 = vmatprep.subr.mxu0 0.0
        %1143 = vmatpush1.msra.mxu0 %v345
        %1144 = vmatprep.subr.mxu0 0.0
        %1145 = vmatpush1.msra.mxu0 %v344
        %1146 = vmatprep.subr.mxu0 0.0
        %1147 = vmatpush1.msra.mxu0 %v343
        %1148 = vmatprep.subr.mxu0 0.0
        %1149 = vmatpush1.msra.mxu0 %v342
        %1150 = vmatprep.subr.mxu0 0.0
        %1151 = vmatpush1.msra.mxu0 %v341
        %1152 = vmatprep.subr.mxu0 0.0
        %1153 = vmatpush2.msra.mxu0 0.0
        %1154 = vmatprep.subr.mxu0 0.0
        %1155 = vmatpush2.msra.mxu0 0.0
        %1156 = vmatprep.subr.mxu0 0.0
        %1157 = vmatpush2.msra.mxu0 0.0
        %1158 = vmatprep.subr.mxu0 0.0
        %1159 = vmatpush2.msra.mxu0 0.0
        %1160 = vmatprep.subr.mxu0 0.0
        %1161 = vmatpush2.msra.mxu0 0.0
        %1162 = vmatprep.subr.mxu0 0.0
        %1163 = vmatpush2.msra.mxu0 0.0
        %1164 = vmatprep.subr.mxu0 0.0
        %1165 = vmatpush2.msra.mxu0 0.0
        %1166 = vmatprep.subr.mxu0 0.0
        %1167 = vmatpush2.msra.mxu0 0.0
        %1168 = vmatprep.subr.mxu0 0.0
        %1169 = vmatpush2.msra.mxu0 0.0
        %1170 = vmatprep.subr.mxu0 0.0
        %1171 = vmatpush2.msra.mxu0 0.0
        %1172 = vmatprep.subr.mxu0 0.0
        %1173 = vmatpush2.msra.mxu0 0.0
        %1174 = vmatprep.subr.mxu0 0.0
        %1175 = vmatpush2.msra.mxu0 0.0
        %1176 = vmatprep.subr.mxu0 0.0
        %1177 = vmatpush2.msra.mxu0 0.0
        %1178 = vmatprep.subr.mxu0 0.0
        %1179 = vmatpush2.msra.mxu0 0.0
        %1180 = vmatprep.subr.mxu0 0.0
        %1181 = vmatpush2.msra.mxu0 0.0
        %1182 = vmatprep.subr.mxu0 0.0
        %1183 = vmatpush2.msra.mxu0 0.0
        %1184 = vmatprep.mubr.f32.mxu0 0.0
        %1185 = vmatmul.mubr.f32.gmra.mxu0 %v992
        %v1186 = vpop.f32.mrf.mxu0
        %v1187 = vadd.f32 0.0, %v1186
        %v1188 = vpop.f32.mrf.mxu0
        %1189 = vmatprep.mubr.f32.mxu0 0.0
        %1190 = vmatmul.mubr.f32.gmra.mxu0 %v993
        %v1191 = vpop.f32.mrf.mxu0
        %v1192 = vadd.f32 0.0, %v1191
        %v1193 = vpop.f32.mrf.mxu0
        %1194 = vmatprep.mubr.f32.mxu0 0.0
        %1195 = vmatmul.mubr.f32.gmra.mxu0 %v994
        %v1196 = vpop.f32.mrf.mxu0
        %v1197 = vadd.f32 0.0, %v1196
        %v1198 = vpop.f32.mrf.mxu0
        %1199 = vmatprep.mubr.f32.mxu0 0.0
        %1200 = vmatmul.mubr.f32.gmra.mxu0 %v995
        %v1201 = vpop.f32.mrf.mxu0
        %v1202 = vadd.f32 0.0, %v1201
        %v1203 = vpop.f32.mrf.mxu0
        %1204 = vmatprep.mubr.f32.mxu0 0.0
        %1205 = vmatmul.mubr.f32.gmra.mxu0 %v996
        %v1206 = vpop.f32.mrf.mxu0
        %v1207 = vadd.f32 0.0, %v1206
        %v1208 = vpop.f32.mrf.mxu0
        %1209 = vmatprep.mubr.f32.mxu0 0.0
        %1210 = vmatmul.mubr.f32.gmra.mxu0 %v997
        %v1211 = vpop.f32.mrf.mxu0
        %v1212 = vadd.f32 0.0, %v1211
        %v1213 = vpop.f32.mrf.mxu0
        %1214 = vmatprep.mubr.f32.mxu0 0.0
        %1215 = vmatmul.mubr.f32.gmra.mxu0 %v998
        %v1216 = vpop.f32.mrf.mxu0
        %v1217 = vadd.f32 0.0, %v1216
        %v1218 = vpop.f32.mrf.mxu0
        %1219 = vmatprep.mubr.f32.mxu0 0.0
        %1220 = vmatmul.mubr.f32.gmra.mxu0 %v999
        %v1221 = vpop.f32.mrf.mxu0
        %v1222 = vadd.f32 0.0, %v1221
        %v1223 = vpop.f32.mrf.mxu0
        %1224 = vmatprep.mubr.f32.mxu0 0.0
        %1225 = vmatmul.mubr.f32.gmra.mxu0 %v1000
        %v1226 = vpop.f32.mrf.mxu0
        %v1227 = vadd.f32 0.0, %v1226
        %v1228 = vpop.f32.mrf.mxu0
        %1229 = vmatprep.mubr.f32.mxu0 0.0
        %1230 = vmatmul.mubr.f32.gmra.mxu0 %v1001
        %v1231 = vpop.f32.mrf.mxu0
        %v1232 = vadd.f32 0.0, %v1231
        %v1233 = vpop.f32.mrf.mxu0
        %1234 = vmatprep.mubr.f32.mxu0 0.0
        %1235 = vmatmul.mubr.f32.gmra.mxu0 %v1002
        %v1236 = vpop.f32.mrf.mxu0
        %v1237 = vadd.f32 0.0, %v1236
        %v1238 = vpop.f32.mrf.mxu0
        %1239 = vmatprep.mubr.f32.mxu0 0.0
        %1240 = vmatmul.mubr.f32.gmra.mxu0 %v1003
        %v1241 = vpop.f32.mrf.mxu0
        %v1242 = vadd.f32 0.0, %v1241
        %v1243 = vpop.f32.mrf.mxu0
        %1244 = vmatprep.mubr.f32.mxu0 0.0
        %1245 = vmatmul.mubr.f32.gmra.mxu0 %v1004
        %v1246 = vpop.f32.mrf.mxu0
        %v1247 = vadd.f32 0.0, %v1246
        %v1248 = vpop.f32.mrf.mxu0
        %1249 = vmatprep.mubr.f32.mxu0 0.0
        %1250 = vmatmul.mubr.f32.gmra.mxu0 %v1005
        %v1251 = vpop.f32.mrf.mxu0
        %v1252 = vadd.f32 0.0, %v1251
        %v1253 = vpop.f32.mrf.mxu0
        %1254 = vmatprep.mubr.f32.mxu0 0.0
        %1255 = vmatmul.mubr.f32.gmra.mxu0 %v1006
        %v1256 = vpop.f32.mrf.mxu0
        %v1257 = vadd.f32 0.0, %v1256
        %v1258 = vpop.f32.mrf.mxu0
        %1259 = vmatprep.mubr.f32.mxu0 0.0
        %1260 = vmatmul.mubr.f32.gmra.mxu0 %v1007
        %v1261 = vpop.f32.mrf.mxu0
        %v1262 = vadd.f32 0.0, %v1261
        %v1263 = vpop.f32.mrf.mxu0
        %1264 = vmatprep.mubr.f32.mxu0 0.0
        %1265 = vmatmul.mubr.f32.gmra.mxu0 %v1008
        %v1266 = vpop.f32.mrf.mxu0
        %v1267 = vadd.f32 0.0, %v1266
        %v1268 = vpop.f32.mrf.mxu0
        %1269 = vmatprep.mubr.f32.mxu0 0.0
        %1270 = vmatmul.mubr.f32.gmra.mxu0 %v1009
        %v1271 = vpop.f32.mrf.mxu0
        %v1272 = vadd.f32 0.0, %v1271
        %v1273 = vpop.f32.mrf.mxu0
        %1274 = vmatprep.mubr.f32.mxu0 0.0
        %1275 = vmatmul.mubr.f32.gmra.mxu0 %v1010
        %v1276 = vpop.f32.mrf.mxu0
        %v1277 = vadd.f32 0.0, %v1276
        %v1278 = vpop.f32.mrf.mxu0
        %1279 = vmatprep.mubr.f32.mxu0 0.0
        %1280 = vmatmul.mubr.f32.gmra.mxu0 %v1011
        %v1281 = vpop.f32.mrf.mxu0
        %v1282 = vadd.f32 0.0, %v1281
        %v1283 = vpop.f32.mrf.mxu0
        %1284 = vmatprep.mubr.f32.mxu0 0.0
        %1285 = vmatmul.mubr.f32.gmra.mxu0 %v1012
        %v1286 = vpop.f32.mrf.mxu0
        %v1287 = vadd.f32 0.0, %v1286
        %v1288 = vpop.f32.mrf.mxu0
        %1289 = vmatprep.mubr.f32.mxu0 0.0
        %1290 = vmatmul.mubr.f32.gmra.mxu0 %v1013
        %v1291 = vpop.f32.mrf.mxu0
        %v1292 = vadd.f32 0.0, %v1291
        %v1293 = vpop.f32.mrf.mxu0
        %1294 = vmatprep.mubr.f32.mxu0 0.0
        %1295 = vmatmul.mubr.f32.gmra.mxu0 %v1014
        %v1296 = vpop.f32.mrf.mxu0
        %v1297 = vadd.f32 0.0, %v1296
        %v1298 = vpop.f32.mrf.mxu0
        %1299 = vmatprep.mubr.f32.mxu0 0.0
        %1300 = vmatmul.mubr.f32.gmra.mxu0 %v1015
        %v1301 = vpop.f32.mrf.mxu0
        %v1302 = vadd.f32 0.0, %v1301
        %v1303 = vpop.f32.mrf.mxu0
        %1304 = vmatprep.mubr.f32.mxu0 0.0
        %1305 = vmatmul.mubr.f32.gmra.mxu0 %v1016
        %v1306 = vpop.f32.mrf.mxu0
        %v1307 = vadd.f32 0.0, %v1306
        %v1308 = vpop.f32.mrf.mxu0
        %1309 = vmatprep.mubr.f32.mxu0 0.0
        %1310 = vmatmul.mubr.f32.gmra.mxu0 %v1017
        %v1311 = vpop.f32.mrf.mxu0
        %v1312 = vadd.f32 0.0, %v1311
        %v1313 = vpop.f32.mrf.mxu0
        %1314 = vmatprep.mubr.f32.mxu0 0.0
        %1315 = vmatmul.mubr.f32.gmra.mxu0 %v1018
        %v1316 = vpop.f32.mrf.mxu0
        %v1317 = vadd.f32 0.0, %v1316
        %v1318 = vpop.f32.mrf.mxu0
        %1319 = vmatprep.mubr.f32.mxu0 0.0
        %1320 = vmatmul.mubr.f32.gmra.mxu0 %v1019
        %v1321 = vpop.f32.mrf.mxu0
        %v1322 = vadd.f32 0.0, %v1321
        %v1323 = vpop.f32.mrf.mxu0
        %1324 = vmatprep.mubr.f32.mxu0 0.0
        %1325 = vmatmul.mubr.f32.gmra.mxu0 %v1020
        %v1326 = vpop.f32.mrf.mxu0
        %v1327 = vadd.f32 0.0, %v1326
        %v1328 = vpop.f32.mrf.mxu0
        %1329 = vmatprep.mubr.f32.mxu0 0.0
        %1330 = vmatmul.mubr.f32.gmra.mxu0 %v1021
        %v1331 = vpop.f32.mrf.mxu0
        %v1332 = vadd.f32 0.0, %v1331
        %v1333 = vpop.f32.mrf.mxu0
        %1334 = vmatprep.mubr.f32.mxu0 0.0
        %1335 = vmatmul.mubr.f32.gmra.mxu0 %v1022
        %v1336 = vpop.f32.mrf.mxu0
        %v1337 = vadd.f32 0.0, %v1336
        %v1338 = vpop.f32.mrf.mxu0
        %1339 = vmatprep.mubr.f32.mxu0 0.0
        %1340 = vmatmul.mubr.f32.gmra.mxu0 %v1023
        %v1341 = vpop.f32.mrf.mxu0
        %v1342 = vadd.f32 0.0, %v1341
        %v1343 = vpop.f32.mrf.mxu0
        %1344 = vmatprep.mubr.f32.mxu0 0.0
        %1345 = vmatmul.mubr.f32.gmra.mxu0 %v1024
        %v1346 = vpop.f32.mrf.mxu0
        %v1347 = vadd.f32 0.0, %v1346
        %v1348 = vpop.f32.mrf.mxu0
        %1349 = vmatprep.mubr.f32.mxu0 0.0
        %1350 = vmatmul.mubr.f32.gmra.mxu0 %v1025
        %v1351 = vpop.f32.mrf.mxu0
        %v1352 = vadd.f32 0.0, %v1351
        %v1353 = vpop.f32.mrf.mxu0
        %1354 = vmatprep.mubr.f32.mxu0 0.0
        %1355 = vmatmul.mubr.f32.gmra.mxu0 %v1026
        %v1356 = vpop.f32.mrf.mxu0
        %v1357 = vadd.f32 0.0, %v1356
        %v1358 = vpop.f32.mrf.mxu0
        %1359 = vmatprep.mubr.f32.mxu0 0.0
        %1360 = vmatmul.mubr.f32.gmra.mxu0 %v1027
        %v1361 = vpop.f32.mrf.mxu0
        %v1362 = vadd.f32 0.0, %v1361
        %v1363 = vpop.f32.mrf.mxu0
        %1364 = vmatprep.mubr.f32.mxu0 0.0
        %1365 = vmatmul.mubr.f32.gmra.mxu0 %v1028
        %v1366 = vpop.f32.mrf.mxu0
        %v1367 = vadd.f32 0.0, %v1366
        %v1368 = vpop.f32.mrf.mxu0
        %1369 = vmatprep.mubr.f32.mxu0 0.0
        %1370 = vmatmul.mubr.f32.gmra.mxu0 %v1029
        %v1371 = vpop.f32.mrf.mxu0
        %v1372 = vadd.f32 0.0, %v1371
        %v1373 = vpop.f32.mrf.mxu0
        %1374 = vmatprep.mubr.f32.mxu0 0.0
        %1375 = vmatmul.mubr.f32.gmra.mxu0 %v1030
        %v1376 = vpop.f32.mrf.mxu0
        %v1377 = vadd.f32 0.0, %v1376
        %v1378 = vpop.f32.mrf.mxu0
        %1379 = vmatprep.mubr.f32.mxu0 0.0
        %1380 = vmatmul.mubr.f32.gmra.mxu0 %v1031
        %v1381 = vpop.f32.mrf.mxu0
        %v1382 = vadd.f32 0.0, %v1381
        %v1383 = vpop.f32.mrf.mxu0
        %1384 = vmatprep.mubr.f32.mxu0 0.0
        %1385 = vmatmul.mubr.f32.gmra.mxu0 %v1032
        %v1386 = vpop.f32.mrf.mxu0
        %v1387 = vadd.f32 0.0, %v1386
        %v1388 = vpop.f32.mrf.mxu0
        %1389 = vmatprep.mubr.f32.mxu0 0.0
        %1390 = vmatmul.mubr.f32.gmra.mxu0 %v1033
        %v1391 = vpop.f32.mrf.mxu0
        %v1392 = vadd.f32 0.0, %v1391
        %v1393 = vpop.f32.mrf.mxu0
        %1394 = vmatprep.mubr.f32.mxu0 0.0
        %1395 = vmatmul.mubr.f32.gmra.mxu0 %v1034
        %v1396 = vpop.f32.mrf.mxu0
        %v1397 = vadd.f32 0.0, %v1396
        %v1398 = vpop.f32.mrf.mxu0
        %1399 = vmatprep.mubr.f32.mxu0 0.0
        %1400 = vmatmul.mubr.f32.gmra.mxu0 %v1035
        %v1401 = vpop.f32.mrf.mxu0
        %v1402 = vadd.f32 0.0, %v1401
        %v1403 = vpop.f32.mrf.mxu0
        %1404 = vmatprep.mubr.f32.mxu0 0.0
        %1405 = vmatmul.mubr.f32.gmra.mxu0 %v1036
        %v1406 = vpop.f32.mrf.mxu0
        %v1407 = vadd.f32 0.0, %v1406
        %v1408 = vpop.f32.mrf.mxu0
        %1409 = vmatprep.mubr.f32.mxu0 0.0
        %1410 = vmatmul.mubr.f32.gmra.mxu0 %v1037
        %v1411 = vpop.f32.mrf.mxu0
        %v1412 = vadd.f32 0.0, %v1411
        %v1413 = vpop.f32.mrf.mxu0
        %1414 = vmatprep.mubr.f32.mxu0 0.0
        %1415 = vmatmul.mubr.f32.gmra.mxu0 %v1038
        %v1416 = vpop.f32.mrf.mxu0
        %v1417 = vadd.f32 0.0, %v1416
        %v1418 = vpop.f32.mrf.mxu0
        %1419 = vmatprep.mubr.f32.mxu0 0.0
        %1420 = vmatmul.mubr.f32.gmra.mxu0 %v1039
        %v1421 = vpop.f32.mrf.mxu0
        %v1422 = vadd.f32 0.0, %v1421
        %v1423 = vpop.f32.mrf.mxu0
        %1424 = vmatprep.mubr.f32.mxu0 0.0
        %1425 = vmatmul.mubr.f32.gmra.mxu0 %v1040
        %v1426 = vpop.f32.mrf.mxu0
        %v1427 = vadd.f32 0.0, %v1426
        %v1428 = vpop.f32.mrf.mxu0
        %1429 = vmatprep.mubr.f32.mxu0 0.0
        %1430 = vmatmul.mubr.f32.gmra.mxu0 %v1041
        %v1431 = vpop.f32.mrf.mxu0
        %v1432 = vadd.f32 0.0, %v1431
        %v1433 = vpop.f32.mrf.mxu0
        %1434 = vmatprep.mubr.f32.mxu0 0.0
        %1435 = vmatmul.mubr.f32.gmra.mxu0 %v1042
        %v1436 = vpop.f32.mrf.mxu0
        %v1437 = vadd.f32 0.0, %v1436
        %v1438 = vpop.f32.mrf.mxu0
        %1439 = vmatprep.mubr.f32.mxu0 0.0
        %1440 = vmatmul.mubr.f32.gmra.mxu0 %v1043
        %v1441 = vpop.f32.mrf.mxu0
        %v1442 = vadd.f32 0.0, %v1441
        %v1443 = vpop.f32.mrf.mxu0
        %1444 = vmatprep.mubr.f32.mxu0 0.0
        %1445 = vmatmul.mubr.f32.gmra.mxu0 %v1044
        %v1446 = vpop.f32.mrf.mxu0
        %v1447 = vadd.f32 0.0, %v1446
        %v1448 = vpop.f32.mrf.mxu0
        %1449 = vmatprep.mubr.f32.mxu0 0.0
        %1450 = vmatmul.mubr.f32.gmra.mxu0 %v1045
        %v1451 = vpop.f32.mrf.mxu0
        %v1452 = vadd.f32 0.0, %v1451
        %v1453 = vpop.f32.mrf.mxu0
        %1454 = vmatprep.mubr.f32.mxu0 0.0
        %1455 = vmatmul.mubr.f32.gmra.mxu0 %v1046
        %v1456 = vpop.f32.mrf.mxu0
        %v1457 = vadd.f32 0.0, %v1456
        %v1458 = vpop.f32.mrf.mxu0
        %1459 = vmatprep.mubr.f32.mxu0 0.0
        %1460 = vmatmul.mubr.f32.gmra.mxu0 %v1047
        %v1461 = vpop.f32.mrf.mxu0
        %v1462 = vadd.f32 0.0, %v1461
        %v1463 = vpop.f32.mrf.mxu0
        %1464 = vmatprep.mubr.f32.mxu0 0.0
        %1465 = vmatmul.mubr.f32.gmra.mxu0 %v1048
        %v1466 = vpop.f32.mrf.mxu0
        %v1467 = vadd.f32 0.0, %v1466
        %v1468 = vpop.f32.mrf.mxu0
        %1469 = vmatprep.mubr.f32.mxu0 0.0
        %1470 = vmatmul.mubr.f32.gmra.mxu0 %v1049
        %v1471 = vpop.f32.mrf.mxu0
        %v1472 = vadd.f32 0.0, %v1471
        %v1473 = vpop.f32.mrf.mxu0
        %1474 = vmatprep.mubr.f32.mxu0 0.0
        %1475 = vmatmul.mubr.f32.gmra.mxu0 %v1050
        %v1476 = vpop.f32.mrf.mxu0
        %v1477 = vadd.f32 0.0, %v1476
        %v1478 = vpop.f32.mrf.mxu0
        %1479 = vmatprep.mubr.f32.mxu0 0.0
        %1480 = vmatmul.mubr.f32.gmra.mxu0 %v1051
        %v1481 = vpop.f32.mrf.mxu0
        %v1482 = vadd.f32 0.0, %v1481
        %v1483 = vpop.f32.mrf.mxu0
        %1484 = vmatprep.mubr.f32.mxu0 0.0
        %1485 = vmatmul.mubr.f32.gmra.mxu0 %v1052
        %v1486 = vpop.f32.mrf.mxu0
        %v1487 = vadd.f32 0.0, %v1486
        %v1488 = vpop.f32.mrf.mxu0
        %1489 = vmatprep.mubr.f32.mxu0 0.0
        %1490 = vmatmul.mubr.f32.gmra.mxu0 %v1053
        %v1491 = vpop.f32.mrf.mxu0
        %v1492 = vadd.f32 0.0, %v1491
        %v1493 = vpop.f32.mrf.mxu0
        %1494 = vmatprep.mubr.f32.mxu0 0.0
        %1495 = vmatmul.mubr.f32.gmra.mxu0 %v1054
        %v1496 = vpop.f32.mrf.mxu0
        %v1497 = vadd.f32 0.0, %v1496
        %v1498 = vpop.f32.mrf.mxu0
        %1499 = vmatprep.mubr.f32.mxu0 0.0
        %1500 = vmatmul.mubr.f32.gmra.mxu0 %v1055
        %v1501 = vpop.f32.mrf.mxu0
        %v1502 = vadd.f32 0.0, %v1501
        %v1503 = vpop.f32.mrf.mxu0
        %1504 = vmatprep.mubr.f32.mxu0 0.0
        %1505 = vmatmul.mubr.f32.gmra.mxu0 %v1056
        %v1506 = vpop.f32.mrf.mxu0
        %v1507 = vadd.f32 0.0, %v1506
        %v1508 = vpop.f32.mrf.mxu0
        %1509 = vmatprep.mubr.f32.mxu0 0.0
        %1510 = vmatmul.mubr.f32.gmra.mxu0 %v1057
        %v1511 = vpop.f32.mrf.mxu0
        %v1512 = vadd.f32 0.0, %v1511
        %v1513 = vpop.f32.mrf.mxu0
        %1514 = vmatprep.mubr.f32.mxu0 0.0
        %1515 = vmatmul.mubr.f32.gmra.mxu0 %v1058
        %v1516 = vpop.f32.mrf.mxu0
        %v1517 = vadd.f32 0.0, %v1516
        %v1518 = vpop.f32.mrf.mxu0
        %1519 = vmatprep.mubr.f32.mxu0 0.0
        %1520 = vmatmul.mubr.f32.gmra.mxu0 %v1059
        %v1521 = vpop.f32.mrf.mxu0
        %v1522 = vadd.f32 0.0, %v1521
        %v1523 = vpop.f32.mrf.mxu0
        %1524 = vmatprep.mubr.f32.mxu0 0.0
        %1525 = vmatmul.mubr.f32.gmra.mxu0 %v1060
        %v1526 = vpop.f32.mrf.mxu0
        %v1527 = vadd.f32 0.0, %v1526
        %v1528 = vpop.f32.mrf.mxu0
        %1529 = vmatprep.mubr.f32.mxu0 0.0
        %1530 = vmatmul.mubr.f32.gmra.mxu0 %v1061
        %v1531 = vpop.f32.mrf.mxu0
        %v1532 = vadd.f32 0.0, %v1531
        %v1533 = vpop.f32.mrf.mxu0
        %1534 = vmatprep.mubr.f32.mxu0 0.0
        %1535 = vmatmul.mubr.f32.gmra.mxu0 %v1062
        %v1536 = vpop.f32.mrf.mxu0
        %v1537 = vadd.f32 0.0, %v1536
        %v1538 = vpop.f32.mrf.mxu0
        %1539 = vmatprep.mubr.f32.mxu0 0.0
        %1540 = vmatmul.mubr.f32.gmra.mxu0 %v1063
        %v1541 = vpop.f32.mrf.mxu0
        %v1542 = vadd.f32 0.0, %v1541
        %v1543 = vpop.f32.mrf.mxu0
        %1544 = vmatprep.mubr.f32.mxu0 0.0
        %1545 = vmatmul.mubr.f32.gmra.mxu0 %v1064
        %v1546 = vpop.f32.mrf.mxu0
        %v1547 = vadd.f32 0.0, %v1546
        %v1548 = vpop.f32.mrf.mxu0
        %1549 = vmatprep.mubr.f32.mxu0 0.0
        %1550 = vmatmul.mubr.f32.gmra.mxu0 %v1065
        %v1551 = vpop.f32.mrf.mxu0
        %v1552 = vadd.f32 0.0, %v1551
        %v1553 = vpop.f32.mrf.mxu0
        %1554 = vmatprep.mubr.f32.mxu0 0.0
        %1555 = vmatmul.mubr.f32.gmra.mxu0 %v1066
        %v1556 = vpop.f32.mrf.mxu0
        %v1557 = vadd.f32 0.0, %v1556
        %v1558 = vpop.f32.mrf.mxu0
        %1559 = vmatprep.mubr.f32.mxu0 0.0
        %1560 = vmatmul.mubr.f32.gmra.mxu0 %v1067
        %v1561 = vpop.f32.mrf.mxu0
        %v1562 = vadd.f32 0.0, %v1561
        %v1563 = vpop.f32.mrf.mxu0
        %1564 = vmatprep.mubr.f32.mxu0 0.0
        %1565 = vmatmul.mubr.f32.gmra.mxu0 %v1068
        %v1566 = vpop.f32.mrf.mxu0
        %v1567 = vadd.f32 0.0, %v1566
        %v1568 = vpop.f32.mrf.mxu0
        %1569 = vmatprep.mubr.f32.mxu0 0.0
        %1570 = vmatmul.mubr.f32.gmra.mxu0 %v1069
        %v1571 = vpop.f32.mrf.mxu0
        %v1572 = vadd.f32 0.0, %v1571
        %v1573 = vpop.f32.mrf.mxu0
        %1574 = vmatprep.mubr.f32.mxu0 0.0
        %1575 = vmatmul.mubr.f32.gmra.mxu0 %v1070
        %v1576 = vpop.f32.mrf.mxu0
        %v1577 = vadd.f32 0.0, %v1576
        %v1578 = vpop.f32.mrf.mxu0
        %1579 = vmatprep.mubr.f32.mxu0 0.0
        %1580 = vmatmul.mubr.f32.gmra.mxu0 %v1071
        %v1581 = vpop.f32.mrf.mxu0
        %v1582 = vadd.f32 0.0, %v1581
        %v1583 = vpop.f32.mrf.mxu0
        %1584 = vmatprep.mubr.f32.mxu0 0.0
        %1585 = vmatmul.mubr.f32.gmra.mxu0 %v1072
        %v1586 = vpop.f32.mrf.mxu0
        %v1587 = vadd.f32 0.0, %v1586
        %v1588 = vpop.f32.mrf.mxu0
        %1589 = vmatprep.mubr.f32.mxu0 0.0
        %1590 = vmatmul.mubr.f32.gmra.mxu0 %v1073
        %v1591 = vpop.f32.mrf.mxu0
        %v1592 = vadd.f32 0.0, %v1591
        %v1593 = vpop.f32.mrf.mxu0
        %1594 = vmatprep.mubr.f32.mxu0 0.0
        %1595 = vmatmul.mubr.f32.gmra.mxu0 %v1074
        %v1596 = vpop.f32.mrf.mxu0
        %v1597 = vadd.f32 0.0, %v1596
        %v1598 = vpop.f32.mrf.mxu0
        %1599 = vmatprep.mubr.f32.mxu0 0.0
        %1600 = vmatmul.mubr.f32.gmra.mxu0 %v1075
        %v1601 = vpop.f32.mrf.mxu0
        %v1602 = vadd.f32 0.0, %v1601
        %v1603 = vpop.f32.mrf.mxu0
        %1604 = vmatprep.mubr.f32.mxu0 0.0
        %1605 = vmatmul.mubr.f32.gmra.mxu0 %v1076
        %v1606 = vpop.f32.mrf.mxu0
        %v1607 = vadd.f32 0.0, %v1606
        %v1608 = vpop.f32.mrf.mxu0
        %1609 = vmatprep.mubr.f32.mxu0 0.0
        %1610 = vmatmul.mubr.f32.gmra.mxu0 %v1077
        %v1611 = vpop.f32.mrf.mxu0
        %v1612 = vadd.f32 0.0, %v1611
        %v1613 = vpop.f32.mrf.mxu0
        %1614 = vmatprep.mubr.f32.mxu0 0.0
        %1615 = vmatmul.mubr.f32.gmra.mxu0 %v1078
        %v1616 = vpop.f32.mrf.mxu0
        %v1617 = vadd.f32 0.0, %v1616
        %v1618 = vpop.f32.mrf.mxu0
        %1619 = vmatprep.mubr.f32.mxu0 0.0
        %1620 = vmatmul.mubr.f32.gmra.mxu0 %v1079
        %v1621 = vpop.f32.mrf.mxu0
        %v1622 = vadd.f32 0.0, %v1621
        %v1623 = vpop.f32.mrf.mxu0
        %1624 = vmatprep.mubr.f32.mxu0 0.0
        %1625 = vmatmul.mubr.f32.gmra.mxu0 %v1080
        %v1626 = vpop.f32.mrf.mxu0
        %v1627 = vadd.f32 0.0, %v1626
        %v1628 = vpop.f32.mrf.mxu0
        %1629 = vmatprep.mubr.f32.mxu0 0.0
        %1630 = vmatmul.mubr.f32.gmra.mxu0 %v1081
        %v1631 = vpop.f32.mrf.mxu0
        %v1632 = vadd.f32 0.0, %v1631
        %v1633 = vpop.f32.mrf.mxu0
        %1634 = vmatprep.mubr.f32.mxu0 0.0
        %1635 = vmatmul.mubr.f32.gmra.mxu0 %v1082
        %v1636 = vpop.f32.mrf.mxu0
        %v1637 = vadd.f32 0.0, %v1636
        %v1638 = vpop.f32.mrf.mxu0
        %1639 = vmatprep.mubr.f32.mxu0 0.0
        %1640 = vmatmul.mubr.f32.gmra.mxu0 %v1083
        %v1641 = vpop.f32.mrf.mxu0
        %v1642 = vadd.f32 0.0, %v1641
        %v1643 = vpop.f32.mrf.mxu0
        %1644 = vmatprep.mubr.f32.mxu0 0.0
        %1645 = vmatmul.mubr.f32.gmra.mxu0 %v1084
        %v1646 = vpop.f32.mrf.mxu0
        %v1647 = vadd.f32 0.0, %v1646
        %v1648 = vpop.f32.mrf.mxu0
        %1649 = vmatprep.mubr.f32.mxu0 0.0
        %1650 = vmatmul.mubr.f32.gmra.mxu0 %v1085
        %v1651 = vpop.f32.mrf.mxu0
        %v1652 = vadd.f32 0.0, %v1651
        %v1653 = vpop.f32.mrf.mxu0
        %1654 = vmatprep.mubr.f32.mxu0 0.0
        %1655 = vmatmul.mubr.f32.gmra.mxu0 %v1086
        %v1656 = vpop.f32.mrf.mxu0
        %v1657 = vadd.f32 0.0, %v1656
        %v1658 = vpop.f32.mrf.mxu0
        %1659 = vmatprep.mubr.f32.mxu0 0.0
        %1660 = vmatmul.mubr.f32.gmra.mxu0 %v1087
        %v1661 = vpop.f32.mrf.mxu0
        %v1662 = vadd.f32 0.0, %v1661
        %v1663 = vpop.f32.mrf.mxu0
        %1664 = vmatprep.mubr.f32.mxu0 0.0
        %1665 = vmatmul.mubr.f32.gmra.mxu0 %v1088
        %v1666 = vpop.f32.mrf.mxu0
        %v1667 = vadd.f32 0.0, %v1666
        %v1668 = vpop.f32.mrf.mxu0
        %1669 = vmatprep.mubr.f32.mxu0 0.0
        %1670 = vmatmul.mubr.f32.gmra.mxu0 %v1089
        %v1671 = vpop.f32.mrf.mxu0
        %v1672 = vadd.f32 0.0, %v1671
        %v1673 = vpop.f32.mrf.mxu0
        %1674 = vmatprep.mubr.f32.mxu0 0.0
        %1675 = vmatmul.mubr.f32.gmra.mxu0 %v1090
        %v1676 = vpop.f32.mrf.mxu0
        %v1677 = vadd.f32 0.0, %v1676
        %v1678 = vpop.f32.mrf.mxu0
        %1679 = vmatprep.mubr.f32.mxu0 0.0
        %1680 = vmatmul.mubr.f32.gmra.mxu0 %v1091
        %v1681 = vpop.f32.mrf.mxu0
        %v1682 = vadd.f32 0.0, %v1681
        %v1683 = vpop.f32.mrf.mxu0
        %1684 = vmatprep.mubr.f32.mxu0 0.0
        %1685 = vmatmul.mubr.f32.gmra.mxu0 %v1092
        %v1686 = vpop.f32.mrf.mxu0
        %v1687 = vadd.f32 0.0, %v1686
        %v1688 = vpop.f32.mrf.mxu0
        %1689 = vmatprep.mubr.f32.mxu0 0.0
        %1690 = vmatmul.mubr.f32.gmra.mxu0 %v1093
        %v1691 = vpop.f32.mrf.mxu0
        %v1692 = vadd.f32 0.0, %v1691
        %v1693 = vpop.f32.mrf.mxu0
        %1694 = vmatprep.mubr.f32.mxu0 0.0
        %1695 = vmatmul.mubr.f32.gmra.mxu0 %v1094
        %v1696 = vpop.f32.mrf.mxu0
        %v1697 = vadd.f32 0.0, %v1696
        %v1698 = vpop.f32.mrf.mxu0
        %1699 = vmatprep.mubr.f32.mxu0 0.0
        %1700 = vmatmul.mubr.f32.gmra.mxu0 %v1095
        %v1701 = vpop.f32.mrf.mxu0
        %v1702 = vadd.f32 0.0, %v1701
        %v1703 = vpop.f32.mrf.mxu0
        %1704 = vmatprep.mubr.f32.mxu0 0.0
        %1705 = vmatmul.mubr.f32.gmra.mxu0 %v1096
        %v1706 = vpop.f32.mrf.mxu0
        %v1707 = vadd.f32 0.0, %v1706
        %v1708 = vpop.f32.mrf.mxu0
        %1709 = vmatprep.mubr.f32.mxu0 0.0
        %1710 = vmatmul.mubr.f32.gmra.mxu0 %v1097
        %v1711 = vpop.f32.mrf.mxu0
        %v1712 = vadd.f32 0.0, %v1711
        %v1713 = vpop.f32.mrf.mxu0
        %1714 = vmatprep.mubr.f32.mxu0 0.0
        %1715 = vmatmul.mubr.f32.gmra.mxu0 %v1098
        %v1716 = vpop.f32.mrf.mxu0
        %v1717 = vadd.f32 0.0, %v1716
        %v1718 = vpop.f32.mrf.mxu0
        %1719 = vmatprep.mubr.f32.mxu0 0.0
        %1720 = vmatmul.mubr.f32.gmra.mxu0 %v1099
        %v1721 = vpop.f32.mrf.mxu0
        %v1722 = vadd.f32 0.0, %v1721
        %v1723 = vpop.f32.mrf.mxu0
        %1724 = vmatprep.mubr.f32.mxu0 0.0
        %1725 = vmatmul.mubr.f32.gmra.mxu0 %v1100
        %v1726 = vpop.f32.mrf.mxu0
        %v1727 = vadd.f32 0.0, %v1726
        %v1728 = vpop.f32.mrf.mxu0
        %1729 = vmatprep.mubr.f32.mxu0 0.0
        %1730 = vmatmul.mubr.f32.gmra.mxu0 %v1101
        %v1731 = vpop.f32.mrf.mxu0
        %v1732 = vadd.f32 0.0, %v1731
        %v1733 = vpop.f32.mrf.mxu0
        %1734 = vmatprep.mubr.f32.mxu0 0.0
        %1735 = vmatmul.mubr.f32.gmra.mxu0 %v1102
        %v1736 = vpop.f32.mrf.mxu0
        %v1737 = vadd.f32 0.0, %v1736
        %v1738 = vpop.f32.mrf.mxu0
        %1739 = vmatprep.mubr.f32.mxu0 0.0
        %1740 = vmatmul.mubr.f32.gmra.mxu0 %v1103
        %v1741 = vpop.f32.mrf.mxu0
        %v1742 = vadd.f32 0.0, %v1741
        %v1743 = vpop.f32.mrf.mxu0
        %1744 = vmatprep.mubr.f32.mxu0 0.0
        %1745 = vmatmul.mubr.f32.gmra.mxu0 %v1104
        %v1746 = vpop.f32.mrf.mxu0
        %v1747 = vadd.f32 0.0, %v1746
        %v1748 = vpop.f32.mrf.mxu0
        %1749 = vmatprep.mubr.f32.mxu0 0.0
        %1750 = vmatmul.mubr.f32.gmra.mxu0 %v1105
        %v1751 = vpop.f32.mrf.mxu0
        %v1752 = vadd.f32 0.0, %v1751
        %v1753 = vpop.f32.mrf.mxu0
        %1754 = vmatprep.mubr.f32.mxu0 0.0
        %1755 = vmatmul.mubr.f32.gmra.mxu0 %v1106
        %v1756 = vpop.f32.mrf.mxu0
        %v1757 = vadd.f32 0.0, %v1756
        %v1758 = vpop.f32.mrf.mxu0
        %1759 = vmatprep.mubr.f32.mxu0 0.0
        %1760 = vmatmul.mubr.f32.gmra.mxu0 %v1107
        %v1761 = vpop.f32.mrf.mxu0
        %v1762 = vadd.f32 0.0, %v1761
        %v1763 = vpop.f32.mrf.mxu0
        %1764 = vmatprep.mubr.f32.mxu0 0.0
        %1765 = vmatmul.mubr.f32.gmra.mxu0 %v1108
        %v1766 = vpop.f32.mrf.mxu0
        %v1767 = vadd.f32 0.0, %v1766
        %v1768 = vpop.f32.mrf.mxu0
        %1769 = vmatprep.mubr.f32.mxu0 0.0
        %1770 = vmatmul.mubr.f32.gmra.mxu0 %v1109
        %v1771 = vpop.f32.mrf.mxu0
        %v1772 = vadd.f32 0.0, %v1771
        %v1773 = vpop.f32.mrf.mxu0
        %1774 = vmatprep.mubr.f32.mxu0 0.0
        %1775 = vmatmul.mubr.f32.gmra.mxu0 %v1110
        %v1776 = vpop.f32.mrf.mxu0
        %v1777 = vadd.f32 0.0, %v1776
        %v1778 = vpop.f32.mrf.mxu0
        %1779 = vmatprep.mubr.f32.mxu0 0.0
        %1780 = vmatmul.mubr.f32.gmra.mxu0 %v1111
        %v1781 = vpop.f32.mrf.mxu0
        %v1782 = vadd.f32 0.0, %v1781
        %v1783 = vpop.f32.mrf.mxu0
        %1784 = vmatprep.mubr.f32.mxu0 0.0
        %1785 = vmatmul.mubr.f32.gmra.mxu0 %v1112
        %v1786 = vpop.f32.mrf.mxu0
        %v1787 = vadd.f32 0.0, %v1786
        %v1788 = vpop.f32.mrf.mxu0
        %1789 = vmatprep.mubr.f32.mxu0 0.0
        %1790 = vmatmul.mubr.f32.gmra.mxu0 %v1113
        %v1791 = vpop.f32.mrf.mxu0
        %v1792 = vadd.f32 0.0, %v1791
        %v1793 = vpop.f32.mrf.mxu0
        %1794 = vmatprep.mubr.f32.mxu0 0.0
        %1795 = vmatmul.mubr.f32.gmra.mxu0 %v1114
        %v1796 = vpop.f32.mrf.mxu0
        %v1797 = vadd.f32 0.0, %v1796
        %v1798 = vpop.f32.mrf.mxu0
        %1799 = vmatprep.mubr.f32.mxu0 0.0
        %1800 = vmatmul.mubr.f32.gmra.mxu0 %v1115
        %v1801 = vpop.f32.mrf.mxu0
        %v1802 = vadd.f32 0.0, %v1801
        %v1803 = vpop.f32.mrf.mxu0
        %1804 = vmatprep.mubr.f32.mxu0 0.0
        %1805 = vmatmul.mubr.f32.gmra.mxu0 %v1116
        %v1806 = vpop.f32.mrf.mxu0
        %v1807 = vadd.f32 0.0, %v1806
        %v1808 = vpop.f32.mrf.mxu0
        %1809 = vmatprep.mubr.f32.mxu0 0.0
        %1810 = vmatmul.mubr.f32.gmra.mxu0 %v1117
        %v1811 = vpop.f32.mrf.mxu0
        %v1812 = vadd.f32 0.0, %v1811
        %v1813 = vpop.f32.mrf.mxu0
        %1814 = vmatprep.mubr.f32.mxu0 0.0
        %1815 = vmatmul.mubr.f32.gmra.mxu0 %v1118
        %v1816 = vpop.f32.mrf.mxu0
        %v1817 = vadd.f32 0.0, %v1816
        %v1818 = vpop.f32.mrf.mxu0
        %1819 = vmatprep.mubr.f32.mxu0 0.0
        %1820 = vmatmul.mubr.f32.gmra.mxu0 %v1119
        %v1821 = vpop.f32.mrf.mxu0
        %v1822 = vadd.f32 0.0, %v1821
        %v1823 = vpop.f32.mrf.mxu0
        %1824 = vdwg.mxu0
        %v1825 = vand.u32 2147483647, %v1187
        %v1826 = vand.u32 2147483647, %v1192
        %v1827 = vand.u32 2147483647, %v1197
        %v1828 = vand.u32 2147483647, %v1202
        %v1829 = vand.u32 2147483647, %v1207
        %v1830 = vand.u32 2147483647, %v1212
        %v1831 = vand.u32 2147483647, %v1217
        %v1832 = vand.u32 2147483647, %v1222
        %v1833 = vand.u32 2147483647, %v1227
        %v1834 = vand.u32 2147483647, %v1232
        %v1835 = vand.u32 2147483647, %v1237
        %v1836 = vand.u32 2147483647, %v1242
        %v1837 = vand.u32 2147483647, %v1247
        %v1838 = vand.u32 2147483647, %v1252
        %v1839 = vand.u32 2147483647, %v1257
        %v1840 = vand.u32 2147483647, %v1262
        %v1841 = vand.u32 2147483647, %v1267
        %v1842 = vand.u32 2147483647, %v1272
        %v1843 = vand.u32 2147483647, %v1277
        %v1844 = vand.u32 2147483647, %v1282
        %v1845 = vand.u32 2147483647, %v1287
        %v1846 = vand.u32 2147483647, %v1292
        %v1847 = vand.u32 2147483647, %v1297
        %v1848 = vand.u32 2147483647, %v1302
        %v1849 = vand.u32 2147483647, %v1307
        %v1850 = vand.u32 2147483647, %v1312
        %v1851 = vand.u32 2147483647, %v1317
        %v1852 = vand.u32 2147483647, %v1322
        %v1853 = vand.u32 2147483647, %v1327
        %v1854 = vand.u32 2147483647, %v1332
        %v1855 = vand.u32 2147483647, %v1337
        %v1856 = vand.u32 2147483647, %v1342
        %v1857 = vand.u32 2147483647, %v1347
        %v1858 = vand.u32 2147483647, %v1352
        %v1859 = vand.u32 2147483647, %v1357
        %v1860 = vand.u32 2147483647, %v1362
        %v1861 = vand.u32 2147483647, %v1367
        %v1862 = vand.u32 2147483647, %v1372
        %v1863 = vand.u32 2147483647, %v1377
        %v1864 = vand.u32 2147483647, %v1382
        %v1865 = vand.u32 2147483647, %v1387
        %v1866 = vand.u32 2147483647, %v1392
        %v1867 = vand.u32 2147483647, %v1397
        %v1868 = vand.u32 2147483647, %v1402
        %v1869 = vand.u32 2147483647, %v1407
        %v1870 = vand.u32 2147483647, %v1412
        %v1871 = vand.u32 2147483647, %v1417
        %v1872 = vand.u32 2147483647, %v1422
        %v1873 = vand.u32 2147483647, %v1427
        %v1874 = vand.u32 2147483647, %v1432
        %v1875 = vand.u32 2147483647, %v1437
        %v1876 = vand.u32 2147483647, %v1442
        %v1877 = vand.u32 2147483647, %v1447
        %v1878 = vand.u32 2147483647, %v1452
        %v1879 = vand.u32 2147483647, %v1457
        %v1880 = vand.u32 2147483647, %v1462
        %v1881 = vand.u32 2147483647, %v1467
        %v1882 = vand.u32 2147483647, %v1472
        %v1883 = vand.u32 2147483647, %v1477
        %v1884 = vand.u32 2147483647, %v1482
        %v1885 = vand.u32 2147483647, %v1487
        %v1886 = vand.u32 2147483647, %v1492
        %v1887 = vand.u32 2147483647, %v1497
        %v1888 = vand.u32 2147483647, %v1502
        %v1889 = vand.u32 2147483647, %v1507
        %v1890 = vand.u32 2147483647, %v1512
        %v1891 = vand.u32 2147483647, %v1517
        %v1892 = vand.u32 2147483647, %v1522
        %v1893 = vand.u32 2147483647, %v1527
        %v1894 = vand.u32 2147483647, %v1532
        %v1895 = vand.u32 2147483647, %v1537
        %v1896 = vand.u32 2147483647, %v1542
        %v1897 = vand.u32 2147483647, %v1547
        %v1898 = vand.u32 2147483647, %v1552
        %v1899 = vand.u32 2147483647, %v1557
        %v1900 = vand.u32 2147483647, %v1562
        %v1901 = vand.u32 2147483647, %v1567
        %v1902 = vand.u32 2147483647, %v1572
        %v1903 = vand.u32 2147483647, %v1577
        %v1904 = vand.u32 2147483647, %v1582
        %v1905 = vand.u32 2147483647, %v1587
        %v1906 = vand.u32 2147483647, %v1592
        %v1907 = vand.u32 2147483647, %v1597
        %v1908 = vand.u32 2147483647, %v1602
        %v1909 = vand.u32 2147483647, %v1607
        %v1910 = vand.u32 2147483647, %v1612
        %v1911 = vand.u32 2147483647, %v1617
        %v1912 = vand.u32 2147483647, %v1622
        %v1913 = vand.u32 2147483647, %v1627
        %v1914 = vand.u32 2147483647, %v1632
        %v1915 = vand.u32 2147483647, %v1637
        %v1916 = vand.u32 2147483647, %v1642
        %v1917 = vand.u32 2147483647, %v1647
        %v1918 = vand.u32 2147483647, %v1652
        %v1919 = vand.u32 2147483647, %v1657
        %v1920 = vand.u32 2147483647, %v1662
        %v1921 = vand.u32 2147483647, %v1667
        %v1922 = vand.u32 2147483647, %v1672
        %v1923 = vand.u32 2147483647, %v1677
        %v1924 = vand.u32 2147483647, %v1682
        %v1925 = vand.u32 2147483647, %v1687
        %v1926 = vand.u32 2147483647, %v1692
        %v1927 = vand.u32 2147483647, %v1697
        %v1928 = vand.u32 2147483647, %v1702
        %v1929 = vand.u32 2147483647, %v1707
        %v1930 = vand.u32 2147483647, %v1712
        %v1931 = vand.u32 2147483647, %v1717
        %v1932 = vand.u32 2147483647, %v1722
        %v1933 = vand.u32 2147483647, %v1727
        %v1934 = vand.u32 2147483647, %v1732
        %v1935 = vand.u32 2147483647, %v1737
        %v1936 = vand.u32 2147483647, %v1742
        %v1937 = vand.u32 2147483647, %v1747
        %v1938 = vand.u32 2147483647, %v1752
        %v1939 = vand.u32 2147483647, %v1757
        %v1940 = vand.u32 2147483647, %v1762
        %v1941 = vand.u32 2147483647, %v1767
        %v1942 = vand.u32 2147483647, %v1772
        %v1943 = vand.u32 2147483647, %v1777
        %v1944 = vand.u32 2147483647, %v1782
        %v1945 = vand.u32 2147483647, %v1787
        %v1946 = vand.u32 2147483647, %v1792
        %v1947 = vand.u32 2147483647, %v1797
        %v1948 = vand.u32 2147483647, %v1802
        %v1949 = vand.u32 2147483647, %v1807
        %v1950 = vand.u32 2147483647, %v1812
        %v1951 = vand.u32 2147483647, %v1817
        %v1952 = vand.u32 2147483647, %v1822
        %v1953 = vsel %vm366, %v1825, 0.0
        %1954 = vadd.xlane.f32.xlu0 %v1953
        %v1955 = vpop.xlane.xlu0 %1954
        %v1956 = vsel %vm366, %v1826, 0.0
        %1957 = vadd.xlane.f32.xlu0 %v1956
        %v1958 = vpop.xlane.xlu0 %1957
        %v1959 = vsel %vm366, %v1827, 0.0
        %1960 = vadd.xlane.f32.xlu0 %v1959
        %v1961 = vpop.xlane.xlu0 %1960
        %v1962 = vsel %vm366, %v1828, 0.0
        %1963 = vadd.xlane.f32.xlu0 %v1962
        %v1964 = vpop.xlane.xlu0 %1963
        %v1965 = vsel %vm366, %v1829, 0.0
        %1966 = vadd.xlane.f32.xlu0 %v1965
        %v1967 = vpop.xlane.xlu0 %1966
        %v1968 = vsel %vm366, %v1830, 0.0
        %1969 = vadd.xlane.f32.xlu0 %v1968
        %v1970 = vpop.xlane.xlu0 %1969
        %v1971 = vsel %vm366, %v1831, 0.0
        %1972 = vadd.xlane.f32.xlu0 %v1971
        %v1973 = vpop.xlane.xlu0 %1972
        %v1974 = vsel %vm366, %v1832, 0.0
        %1975 = vadd.xlane.f32.xlu0 %v1974
        %v1976 = vpop.xlane.xlu0 %1975
        %v1977 = vsel %vm366, %v1833, 0.0
        %1978 = vadd.xlane.f32.xlu0 %v1977
        %v1979 = vpop.xlane.xlu0 %1978
        %v1980 = vsel %vm366, %v1834, 0.0
        %1981 = vadd.xlane.f32.xlu0 %v1980
        %v1982 = vpop.xlane.xlu0 %1981
        %v1983 = vsel %vm366, %v1835, 0.0
        %1984 = vadd.xlane.f32.xlu0 %v1983
        %v1985 = vpop.xlane.xlu0 %1984
        %v1986 = vsel %vm366, %v1836, 0.0
        %1987 = vadd.xlane.f32.xlu0 %v1986
        %v1988 = vpop.xlane.xlu0 %1987
        %v1989 = vsel %vm366, %v1837, 0.0
        %1990 = vadd.xlane.f32.xlu0 %v1989
        %v1991 = vpop.xlane.xlu0 %1990
        %v1992 = vsel %vm366, %v1838, 0.0
        %1993 = vadd.xlane.f32.xlu0 %v1992
        %v1994 = vpop.xlane.xlu0 %1993
        %v1995 = vsel %vm366, %v1839, 0.0
        %1996 = vadd.xlane.f32.xlu0 %v1995
        %v1997 = vpop.xlane.xlu0 %1996
        %v1998 = vsel %vm366, %v1840, 0.0
        %1999 = vadd.xlane.f32.xlu0 %v1998
        %v2000 = vpop.xlane.xlu0 %1999
        %v2001 = vsel %vm366, %v1841, 0.0
        %2002 = vadd.xlane.f32.xlu0 %v2001
        %v2003 = vpop.xlane.xlu0 %2002
        %v2004 = vsel %vm366, %v1842, 0.0
        %2005 = vadd.xlane.f32.xlu0 %v2004
        %v2006 = vpop.xlane.xlu0 %2005
        %v2007 = vsel %vm366, %v1843, 0.0
        %2008 = vadd.xlane.f32.xlu0 %v2007
        %v2009 = vpop.xlane.xlu0 %2008
        %v2010 = vsel %vm366, %v1844, 0.0
        %2011 = vadd.xlane.f32.xlu0 %v2010
        %v2012 = vpop.xlane.xlu0 %2011
        %v2013 = vsel %vm366, %v1845, 0.0
        %2014 = vadd.xlane.f32.xlu0 %v2013
        %v2015 = vpop.xlane.xlu0 %2014
        %v2016 = vsel %vm366, %v1846, 0.0
        %2017 = vadd.xlane.f32.xlu0 %v2016
        %v2018 = vpop.xlane.xlu0 %2017
        %v2019 = vsel %vm366, %v1847, 0.0
        %2020 = vadd.xlane.f32.xlu0 %v2019
        %v2021 = vpop.xlane.xlu0 %2020
        %v2022 = vsel %vm366, %v1848, 0.0
        %2023 = vadd.xlane.f32.xlu0 %v2022
        %v2024 = vpop.xlane.xlu0 %2023
        %v2025 = vsel %vm366, %v1849, 0.0
        %2026 = vadd.xlane.f32.xlu0 %v2025
        %v2027 = vpop.xlane.xlu0 %2026
        %v2028 = vsel %vm366, %v1850, 0.0
        %2029 = vadd.xlane.f32.xlu0 %v2028
        %v2030 = vpop.xlane.xlu0 %2029
        %v2031 = vsel %vm366, %v1851, 0.0
        %2032 = vadd.xlane.f32.xlu0 %v2031
        %v2033 = vpop.xlane.xlu0 %2032
        %v2034 = vsel %vm366, %v1852, 0.0
        %2035 = vadd.xlane.f32.xlu0 %v2034
        %v2036 = vpop.xlane.xlu0 %2035
        %v2037 = vsel %vm366, %v1853, 0.0
        %2038 = vadd.xlane.f32.xlu0 %v2037
        %v2039 = vpop.xlane.xlu0 %2038
        %v2040 = vsel %vm366, %v1854, 0.0
        %2041 = vadd.xlane.f32.xlu0 %v2040
        %v2042 = vpop.xlane.xlu0 %2041
        %v2043 = vsel %vm366, %v1855, 0.0
        %2044 = vadd.xlane.f32.xlu0 %v2043
        %v2045 = vpop.xlane.xlu0 %2044
        %v2046 = vsel %vm366, %v1856, 0.0
        %2047 = vadd.xlane.f32.xlu0 %v2046
        %v2048 = vpop.xlane.xlu0 %2047
        %v2049 = vsel %vm366, %v1857, 0.0
        %2050 = vadd.xlane.f32.xlu0 %v2049
        %v2051 = vpop.xlane.xlu0 %2050
        %v2052 = vsel %vm366, %v1858, 0.0
        %2053 = vadd.xlane.f32.xlu0 %v2052
        %v2054 = vpop.xlane.xlu0 %2053
        %v2055 = vsel %vm366, %v1859, 0.0
        %2056 = vadd.xlane.f32.xlu0 %v2055
        %v2057 = vpop.xlane.xlu0 %2056
        %v2058 = vsel %vm366, %v1860, 0.0
        %2059 = vadd.xlane.f32.xlu0 %v2058
        %v2060 = vpop.xlane.xlu0 %2059
        %v2061 = vsel %vm366, %v1861, 0.0
        %2062 = vadd.xlane.f32.xlu0 %v2061
        %v2063 = vpop.xlane.xlu0 %2062
        %v2064 = vsel %vm366, %v1862, 0.0
        %2065 = vadd.xlane.f32.xlu0 %v2064
        %v2066 = vpop.xlane.xlu0 %2065
        %v2067 = vsel %vm366, %v1863, 0.0
        %2068 = vadd.xlane.f32.xlu0 %v2067
        %v2069 = vpop.xlane.xlu0 %2068
        %v2070 = vsel %vm366, %v1864, 0.0
        %2071 = vadd.xlane.f32.xlu0 %v2070
        %v2072 = vpop.xlane.xlu0 %2071
        %v2073 = vsel %vm366, %v1865, 0.0
        %2074 = vadd.xlane.f32.xlu0 %v2073
        %v2075 = vpop.xlane.xlu0 %2074
        %v2076 = vsel %vm366, %v1866, 0.0
        %2077 = vadd.xlane.f32.xlu0 %v2076
        %v2078 = vpop.xlane.xlu0 %2077
        %v2079 = vsel %vm366, %v1867, 0.0
        %2080 = vadd.xlane.f32.xlu0 %v2079
        %v2081 = vpop.xlane.xlu0 %2080
        %v2082 = vsel %vm366, %v1868, 0.0
        %2083 = vadd.xlane.f32.xlu0 %v2082
        %v2084 = vpop.xlane.xlu0 %2083
        %v2085 = vsel %vm366, %v1869, 0.0
        %2086 = vadd.xlane.f32.xlu0 %v2085
        %v2087 = vpop.xlane.xlu0 %2086
        %v2088 = vsel %vm366, %v1870, 0.0
        %2089 = vadd.xlane.f32.xlu0 %v2088
        %v2090 = vpop.xlane.xlu0 %2089
        %v2091 = vsel %vm366, %v1871, 0.0
        %2092 = vadd.xlane.f32.xlu0 %v2091
        %v2093 = vpop.xlane.xlu0 %2092
        %v2094 = vsel %vm366, %v1872, 0.0
        %2095 = vadd.xlane.f32.xlu0 %v2094
        %v2096 = vpop.xlane.xlu0 %2095
        %v2097 = vsel %vm366, %v1873, 0.0
        %2098 = vadd.xlane.f32.xlu0 %v2097
        %v2099 = vpop.xlane.xlu0 %2098
        %v2100 = vsel %vm366, %v1874, 0.0
        %2101 = vadd.xlane.f32.xlu0 %v2100
        %v2102 = vpop.xlane.xlu0 %2101
        %v2103 = vsel %vm366, %v1875, 0.0
        %2104 = vadd.xlane.f32.xlu0 %v2103
        %v2105 = vpop.xlane.xlu0 %2104
        %v2106 = vsel %vm366, %v1876, 0.0
        %2107 = vadd.xlane.f32.xlu0 %v2106
        %v2108 = vpop.xlane.xlu0 %2107
        %v2109 = vsel %vm366, %v1877, 0.0
        %2110 = vadd.xlane.f32.xlu0 %v2109
        %v2111 = vpop.xlane.xlu0 %2110
        %v2112 = vsel %vm366, %v1878, 0.0
        %2113 = vadd.xlane.f32.xlu0 %v2112
        %v2114 = vpop.xlane.xlu0 %2113
        %v2115 = vsel %vm366, %v1879, 0.0
        %2116 = vadd.xlane.f32.xlu0 %v2115
        %v2117 = vpop.xlane.xlu0 %2116
        %v2118 = vsel %vm366, %v1880, 0.0
        %2119 = vadd.xlane.f32.xlu0 %v2118
        %v2120 = vpop.xlane.xlu0 %2119
        %v2121 = vsel %vm366, %v1881, 0.0
        %2122 = vadd.xlane.f32.xlu0 %v2121
        %v2123 = vpop.xlane.xlu0 %2122
        %v2124 = vsel %vm366, %v1882, 0.0
        %2125 = vadd.xlane.f32.xlu0 %v2124
        %v2126 = vpop.xlane.xlu0 %2125
        %v2127 = vsel %vm366, %v1883, 0.0
        %2128 = vadd.xlane.f32.xlu0 %v2127
        %v2129 = vpop.xlane.xlu0 %2128
        %v2130 = vsel %vm366, %v1884, 0.0
        %2131 = vadd.xlane.f32.xlu0 %v2130
        %v2132 = vpop.xlane.xlu0 %2131
        %v2133 = vsel %vm366, %v1885, 0.0
        %2134 = vadd.xlane.f32.xlu0 %v2133
        %v2135 = vpop.xlane.xlu0 %2134
        %v2136 = vsel %vm366, %v1886, 0.0
        %2137 = vadd.xlane.f32.xlu0 %v2136
        %v2138 = vpop.xlane.xlu0 %2137
        %v2139 = vsel %vm366, %v1887, 0.0
        %2140 = vadd.xlane.f32.xlu0 %v2139
        %v2141 = vpop.xlane.xlu0 %2140
        %v2142 = vsel %vm366, %v1888, 0.0
        %2143 = vadd.xlane.f32.xlu0 %v2142
        %v2144 = vpop.xlane.xlu0 %2143
        %v2145 = vsel %vm366, %v1889, 0.0
        %2146 = vadd.xlane.f32.xlu0 %v2145
        %v2147 = vpop.xlane.xlu0 %2146
        %v2148 = vsel %vm366, %v1890, 0.0
        %2149 = vadd.xlane.f32.xlu0 %v2148
        %v2150 = vpop.xlane.xlu0 %2149
        %v2151 = vsel %vm366, %v1891, 0.0
        %2152 = vadd.xlane.f32.xlu0 %v2151
        %v2153 = vpop.xlane.xlu0 %2152
        %v2154 = vsel %vm366, %v1892, 0.0
        %2155 = vadd.xlane.f32.xlu0 %v2154
        %v2156 = vpop.xlane.xlu0 %2155
        %v2157 = vsel %vm366, %v1893, 0.0
        %2158 = vadd.xlane.f32.xlu0 %v2157
        %v2159 = vpop.xlane.xlu0 %2158
        %v2160 = vsel %vm366, %v1894, 0.0
        %2161 = vadd.xlane.f32.xlu0 %v2160
        %v2162 = vpop.xlane.xlu0 %2161
        %v2163 = vsel %vm366, %v1895, 0.0
        %2164 = vadd.xlane.f32.xlu0 %v2163
        %v2165 = vpop.xlane.xlu0 %2164
        %v2166 = vsel %vm366, %v1896, 0.0
        %2167 = vadd.xlane.f32.xlu0 %v2166
        %v2168 = vpop.xlane.xlu0 %2167
        %v2169 = vsel %vm366, %v1897, 0.0
        %2170 = vadd.xlane.f32.xlu0 %v2169
        %v2171 = vpop.xlane.xlu0 %2170
        %v2172 = vsel %vm366, %v1898, 0.0
        %2173 = vadd.xlane.f32.xlu0 %v2172
        %v2174 = vpop.xlane.xlu0 %2173
        %v2175 = vsel %vm366, %v1899, 0.0
        %2176 = vadd.xlane.f32.xlu0 %v2175
        %v2177 = vpop.xlane.xlu0 %2176
        %v2178 = vsel %vm366, %v1900, 0.0
        %2179 = vadd.xlane.f32.xlu0 %v2178
        %v2180 = vpop.xlane.xlu0 %2179
        %v2181 = vsel %vm366, %v1901, 0.0
        %2182 = vadd.xlane.f32.xlu0 %v2181
        %v2183 = vpop.xlane.xlu0 %2182
        %v2184 = vsel %vm366, %v1902, 0.0
        %2185 = vadd.xlane.f32.xlu0 %v2184
        %v2186 = vpop.xlane.xlu0 %2185
        %v2187 = vsel %vm366, %v1903, 0.0
        %2188 = vadd.xlane.f32.xlu0 %v2187
        %v2189 = vpop.xlane.xlu0 %2188
        %v2190 = vsel %vm366, %v1904, 0.0
        %2191 = vadd.xlane.f32.xlu0 %v2190
        %v2192 = vpop.xlane.xlu0 %2191
        %v2193 = vsel %vm366, %v1905, 0.0
        %2194 = vadd.xlane.f32.xlu0 %v2193
        %v2195 = vpop.xlane.xlu0 %2194
        %v2196 = vsel %vm366, %v1906, 0.0
        %2197 = vadd.xlane.f32.xlu0 %v2196
        %v2198 = vpop.xlane.xlu0 %2197
        %v2199 = vsel %vm366, %v1907, 0.0
        %2200 = vadd.xlane.f32.xlu0 %v2199
        %v2201 = vpop.xlane.xlu0 %2200
        %v2202 = vsel %vm366, %v1908, 0.0
        %2203 = vadd.xlane.f32.xlu0 %v2202
        %v2204 = vpop.xlane.xlu0 %2203
        %v2205 = vsel %vm366, %v1909, 0.0
        %2206 = vadd.xlane.f32.xlu0 %v2205
        %v2207 = vpop.xlane.xlu0 %2206
        %v2208 = vsel %vm366, %v1910, 0.0
        %2209 = vadd.xlane.f32.xlu0 %v2208
        %v2210 = vpop.xlane.xlu0 %2209
        %v2211 = vsel %vm366, %v1911, 0.0
        %2212 = vadd.xlane.f32.xlu0 %v2211
        %v2213 = vpop.xlane.xlu0 %2212
        %v2214 = vsel %vm366, %v1912, 0.0
        %2215 = vadd.xlane.f32.xlu0 %v2214
        %v2216 = vpop.xlane.xlu0 %2215
        %v2217 = vsel %vm366, %v1913, 0.0
        %2218 = vadd.xlane.f32.xlu0 %v2217
        %v2219 = vpop.xlane.xlu0 %2218
        %v2220 = vsel %vm366, %v1914, 0.0
        %2221 = vadd.xlane.f32.xlu0 %v2220
        %v2222 = vpop.xlane.xlu0 %2221
        %v2223 = vsel %vm366, %v1915, 0.0
        %2224 = vadd.xlane.f32.xlu0 %v2223
        %v2225 = vpop.xlane.xlu0 %2224
        %v2226 = vsel %vm366, %v1916, 0.0
        %2227 = vadd.xlane.f32.xlu0 %v2226
        %v2228 = vpop.xlane.xlu0 %2227
        %v2229 = vsel %vm366, %v1917, 0.0
        %2230 = vadd.xlane.f32.xlu0 %v2229
        %v2231 = vpop.xlane.xlu0 %2230
        %v2232 = vsel %vm366, %v1918, 0.0
        %2233 = vadd.xlane.f32.xlu0 %v2232
        %v2234 = vpop.xlane.xlu0 %2233
        %v2235 = vsel %vm366, %v1919, 0.0
        %2236 = vadd.xlane.f32.xlu0 %v2235
        %v2237 = vpop.xlane.xlu0 %2236
        %v2238 = vsel %vm366, %v1920, 0.0
        %2239 = vadd.xlane.f32.xlu0 %v2238
        %v2240 = vpop.xlane.xlu0 %2239
        %v2241 = vsel %vm366, %v1921, 0.0
        %2242 = vadd.xlane.f32.xlu0 %v2241
        %v2243 = vpop.xlane.xlu0 %2242
        %v2244 = vsel %vm366, %v1922, 0.0
        %2245 = vadd.xlane.f32.xlu0 %v2244
        %v2246 = vpop.xlane.xlu0 %2245
        %v2247 = vsel %vm366, %v1923, 0.0
        %2248 = vadd.xlane.f32.xlu0 %v2247
        %v2249 = vpop.xlane.xlu0 %2248
        %v2250 = vsel %vm366, %v1924, 0.0
        %2251 = vadd.xlane.f32.xlu0 %v2250
        %v2252 = vpop.xlane.xlu0 %2251
        %v2253 = vsel %vm366, %v1925, 0.0
        %2254 = vadd.xlane.f32.xlu0 %v2253
        %v2255 = vpop.xlane.xlu0 %2254
        %v2256 = vsel %vm366, %v1926, 0.0
        %2257 = vadd.xlane.f32.xlu0 %v2256
        %v2258 = vpop.xlane.xlu0 %2257
        %v2259 = vsel %vm366, %v1927, 0.0
        %2260 = vadd.xlane.f32.xlu0 %v2259
        %v2261 = vpop.xlane.xlu0 %2260
        %v2262 = vsel %vm366, %v1928, 0.0
        %2263 = vadd.xlane.f32.xlu0 %v2262
        %v2264 = vpop.xlane.xlu0 %2263
        %v2265 = vsel %vm366, %v1929, 0.0
        %2266 = vadd.xlane.f32.xlu0 %v2265
        %v2267 = vpop.xlane.xlu0 %2266
        %v2268 = vsel %vm366, %v1930, 0.0
        %2269 = vadd.xlane.f32.xlu0 %v2268
        %v2270 = vpop.xlane.xlu0 %2269
        %v2271 = vsel %vm366, %v1931, 0.0
        %2272 = vadd.xlane.f32.xlu0 %v2271
        %v2273 = vpop.xlane.xlu0 %2272
        %v2274 = vsel %vm366, %v1932, 0.0
        %2275 = vadd.xlane.f32.xlu0 %v2274
        %v2276 = vpop.xlane.xlu0 %2275
        %v2277 = vsel %vm366, %v1933, 0.0
        %2278 = vadd.xlane.f32.xlu0 %v2277
        %v2279 = vpop.xlane.xlu0 %2278
        %v2280 = vsel %vm366, %v1934, 0.0
        %2281 = vadd.xlane.f32.xlu0 %v2280
        %v2282 = vpop.xlane.xlu0 %2281
        %v2283 = vsel %vm366, %v1935, 0.0
        %2284 = vadd.xlane.f32.xlu0 %v2283
        %v2285 = vpop.xlane.xlu0 %2284
        %v2286 = vsel %vm366, %v1936, 0.0
        %2287 = vadd.xlane.f32.xlu0 %v2286
        %v2288 = vpop.xlane.xlu0 %2287
        %v2289 = vsel %vm366, %v1937, 0.0
        %2290 = vadd.xlane.f32.xlu0 %v2289
        %v2291 = vpop.xlane.xlu0 %2290
        %v2292 = vsel %vm366, %v1938, 0.0
        %2293 = vadd.xlane.f32.xlu0 %v2292
        %v2294 = vpop.xlane.xlu0 %2293
        %v2295 = vsel %vm366, %v1939, 0.0
        %2296 = vadd.xlane.f32.xlu0 %v2295
        %v2297 = vpop.xlane.xlu0 %2296
        %v2298 = vsel %vm366, %v1940, 0.0
        %2299 = vadd.xlane.f32.xlu0 %v2298
        %v2300 = vpop.xlane.xlu0 %2299
        %v2301 = vsel %vm366, %v1941, 0.0
        %2302 = vadd.xlane.f32.xlu0 %v2301
        %v2303 = vpop.xlane.xlu0 %2302
        %v2304 = vsel %vm366, %v1942, 0.0
        %2305 = vadd.xlane.f32.xlu0 %v2304
        %v2306 = vpop.xlane.xlu0 %2305
        %v2307 = vsel %vm366, %v1943, 0.0
        %2308 = vadd.xlane.f32.xlu0 %v2307
        %v2309 = vpop.xlane.xlu0 %2308
        %v2310 = vsel %vm366, %v1944, 0.0
        %2311 = vadd.xlane.f32.xlu0 %v2310
        %v2312 = vpop.xlane.xlu0 %2311
        %v2313 = vsel %vm366, %v1945, 0.0
        %2314 = vadd.xlane.f32.xlu0 %v2313
        %v2315 = vpop.xlane.xlu0 %2314
        %v2316 = vsel %vm366, %v1946, 0.0
        %2317 = vadd.xlane.f32.xlu0 %v2316
        %v2318 = vpop.xlane.xlu0 %2317
        %v2319 = vsel %vm366, %v1947, 0.0
        %2320 = vadd.xlane.f32.xlu0 %v2319
        %v2321 = vpop.xlane.xlu0 %2320
        %v2322 = vsel %vm366, %v1948, 0.0
        %2323 = vadd.xlane.f32.xlu0 %v2322
        %v2324 = vpop.xlane.xlu0 %2323
        %v2325 = vsel %vm366, %v1949, 0.0
        %2326 = vadd.xlane.f32.xlu0 %v2325
        %v2327 = vpop.xlane.xlu0 %2326
        %v2328 = vsel %vm366, %v1950, 0.0
        %2329 = vadd.xlane.f32.xlu0 %v2328
        %v2330 = vpop.xlane.xlu0 %2329
        %v2331 = vsel %vm366, %v1951, 0.0
        %2332 = vadd.xlane.f32.xlu0 %v2331
        %v2333 = vpop.xlane.xlu0 %2332
        %v2334 = vsel %vm366, %v1952, 0.0
        %2335 = vadd.xlane.f32.xlu0 %v2334
        %v2336 = vpop.xlane.xlu0 %2335
        %v2337 = vmul.f32 %v992, %v482
        %v2338 = vmul.f32 %v993, %v487
        %v2339 = vmul.f32 %v994, %v492
        %v2340 = vmul.f32 %v995, %v497
        %v2341 = vmul.f32 %v996, %v502
        %v2342 = vmul.f32 %v997, %v507
        %v2343 = vmul.f32 %v998, %v512
        %v2344 = vmul.f32 %v999, %v517
        %v2345 = vmul.f32 %v1000, %v522
        %v2346 = vmul.f32 %v1001, %v527
        %v2347 = vmul.f32 %v1002, %v532
        %v2348 = vmul.f32 %v1003, %v537
        %v2349 = vmul.f32 %v1004, %v542
        %v2350 = vmul.f32 %v1005, %v547
        %v2351 = vmul.f32 %v1006, %v552
        %v2352 = vmul.f32 %v1007, %v557
        %v2353 = vmul.f32 %v1008, %v482
        %v2354 = vmul.f32 %v1009, %v487
        %v2355 = vmul.f32 %v1010, %v492
        %v2356 = vmul.f32 %v1011, %v497
        %v2357 = vmul.f32 %v1012, %v502
        %v2358 = vmul.f32 %v1013, %v507
        %v2359 = vmul.f32 %v1014, %v512
        %v2360 = vmul.f32 %v1015, %v517
        %v2361 = vmul.f32 %v1016, %v522
        %v2362 = vmul.f32 %v1017, %v527
        %v2363 = vmul.f32 %v1018, %v532
        %v2364 = vmul.f32 %v1019, %v537
        %v2365 = vmul.f32 %v1020, %v542
        %v2366 = vmul.f32 %v1021, %v547
        %v2367 = vmul.f32 %v1022, %v552
        %v2368 = vmul.f32 %v1023, %v557
        %v2369 = vmul.f32 %v1024, %v482
        %v2370 = vmul.f32 %v1025, %v487
        %v2371 = vmul.f32 %v1026, %v492
        %v2372 = vmul.f32 %v1027, %v497
        %v2373 = vmul.f32 %v1028, %v502
        %v2374 = vmul.f32 %v1029, %v507
        %v2375 = vmul.f32 %v1030, %v512
        %v2376 = vmul.f32 %v1031, %v517
        %v2377 = vmul.f32 %v1032, %v522
        %v2378 = vmul.f32 %v1033, %v527
        %v2379 = vmul.f32 %v1034, %v532
        %v2380 = vmul.f32 %v1035, %v537
        %v2381 = vmul.f32 %v1036, %v542
        %v2382 = vmul.f32 %v1037, %v547
        %v2383 = vmul.f32 %v1038, %v552
        %v2384 = vmul.f32 %v1039, %v557
        %v2385 = vmul.f32 %v1040, %v482
        %v2386 = vmul.f32 %v1041, %v487
        %v2387 = vmul.f32 %v1042, %v492
        %v2388 = vmul.f32 %v1043, %v497
        %v2389 = vmul.f32 %v1044, %v502
        %v2390 = vmul.f32 %v1045, %v507
        %v2391 = vmul.f32 %v1046, %v512
        %v2392 = vmul.f32 %v1047, %v517
        %v2393 = vmul.f32 %v1048, %v522
        %v2394 = vmul.f32 %v1049, %v527
        %v2395 = vmul.f32 %v1050, %v532
        %v2396 = vmul.f32 %v1051, %v537
        %v2397 = vmul.f32 %v1052, %v542
        %v2398 = vmul.f32 %v1053, %v547
        %v2399 = vmul.f32 %v1054, %v552
        %v2400 = vmul.f32 %v1055, %v557
        %v2401 = vmul.f32 %v1056, %v482
        %v2402 = vmul.f32 %v1057, %v487
        %v2403 = vmul.f32 %v1058, %v492
        %v2404 = vmul.f32 %v1059, %v497
        %v2405 = vmul.f32 %v1060, %v502
        %v2406 = vmul.f32 %v1061, %v507
        %v2407 = vmul.f32 %v1062, %v512
        %v2408 = vmul.f32 %v1063, %v517
        %v2409 = vmul.f32 %v1064, %v522
        %v2410 = vmul.f32 %v1065, %v527
        %v2411 = vmul.f32 %v1066, %v532
        %v2412 = vmul.f32 %v1067, %v537
        %v2413 = vmul.f32 %v1068, %v542
        %v2414 = vmul.f32 %v1069, %v547
        %v2415 = vmul.f32 %v1070, %v552
        %v2416 = vmul.f32 %v1071, %v557
        %v2417 = vmul.f32 %v1072, %v482
        %v2418 = vmul.f32 %v1073, %v487
        %v2419 = vmul.f32 %v1074, %v492
        %v2420 = vmul.f32 %v1075, %v497
        %v2421 = vmul.f32 %v1076, %v502
        %v2422 = vmul.f32 %v1077, %v507
        %v2423 = vmul.f32 %v1078, %v512
        %v2424 = vmul.f32 %v1079, %v517
        %v2425 = vmul.f32 %v1080, %v522
        %v2426 = vmul.f32 %v1081, %v527
        %v2427 = vmul.f32 %v1082, %v532
        %v2428 = vmul.f32 %v1083, %v537
        %v2429 = vmul.f32 %v1084, %v542
        %v2430 = vmul.f32 %v1085, %v547
        %v2431 = vmul.f32 %v1086, %v552
        %v2432 = vmul.f32 %v1087, %v557
        %v2433 = vmul.f32 %v1088, %v482
        %v2434 = vmul.f32 %v1089, %v487
        %v2435 = vmul.f32 %v1090, %v492
        %v2436 = vmul.f32 %v1091, %v497
        %v2437 = vmul.f32 %v1092, %v502
        %v2438 = vmul.f32 %v1093, %v507
        %v2439 = vmul.f32 %v1094, %v512
        %v2440 = vmul.f32 %v1095, %v517
        %v2441 = vmul.f32 %v1096, %v522
        %v2442 = vmul.f32 %v1097, %v527
        %v2443 = vmul.f32 %v1098, %v532
        %v2444 = vmul.f32 %v1099, %v537
        %v2445 = vmul.f32 %v1100, %v542
        %v2446 = vmul.f32 %v1101, %v547
        %v2447 = vmul.f32 %v1102, %v552
        %v2448 = vmul.f32 %v1103, %v557
        %v2449 = vmul.f32 %v1104, %v482
        %v2450 = vmul.f32 %v1105, %v487
        %v2451 = vmul.f32 %v1106, %v492
        %v2452 = vmul.f32 %v1107, %v497
        %v2453 = vmul.f32 %v1108, %v502
        %v2454 = vmul.f32 %v1109, %v507
        %v2455 = vmul.f32 %v1110, %v512
        %v2456 = vmul.f32 %v1111, %v517
        %v2457 = vmul.f32 %v1112, %v522
        %v2458 = vmul.f32 %v1113, %v527
        %v2459 = vmul.f32 %v1114, %v532
        %v2460 = vmul.f32 %v1115, %v537
        %v2461 = vmul.f32 %v1116, %v542
        %v2462 = vmul.f32 %v1117, %v547
        %v2463 = vmul.f32 %v1118, %v552
        %v2464 = vmul.f32 %v1119, %v557
        %v2465 = vmax.f32 %v992, 0.0
        %v2466 = vmax.f32 %v993, 0.0
        %v2467 = vmax.f32 %v994, 0.0
        %v2468 = vmax.f32 %v995, 0.0
        %v2469 = vmax.f32 %v996, 0.0
        %v2470 = vmax.f32 %v997, 0.0
        %v2471 = vmax.f32 %v998, 0.0
        %v2472 = vmax.f32 %v999, 0.0
        %v2473 = vmax.f32 %v1000, 0.0
        %v2474 = vmax.f32 %v1001, 0.0
        %v2475 = vmax.f32 %v1002, 0.0
        %v2476 = vmax.f32 %v1003, 0.0
        %v2477 = vmax.f32 %v1004, 0.0
        %v2478 = vmax.f32 %v1005, 0.0
        %v2479 = vmax.f32 %v1006, 0.0
        %v2480 = vmax.f32 %v1007, 0.0
        %v2481 = vmax.f32 %v1008, 0.0
        %v2482 = vmax.f32 %v1009, 0.0
        %v2483 = vmax.f32 %v1010, 0.0
        %v2484 = vmax.f32 %v1011, 0.0
        %v2485 = vmax.f32 %v1012, 0.0
        %v2486 = vmax.f32 %v1013, 0.0
        %v2487 = vmax.f32 %v1014, 0.0
        %v2488 = vmax.f32 %v1015, 0.0
        %v2489 = vmax.f32 %v1016, 0.0
        %v2490 = vmax.f32 %v1017, 0.0
        %v2491 = vmax.f32 %v1018, 0.0
        %v2492 = vmax.f32 %v1019, 0.0
        %v2493 = vmax.f32 %v1020, 0.0
        %v2494 = vmax.f32 %v1021, 0.0
        %v2495 = vmax.f32 %v1022, 0.0
        %v2496 = vmax.f32 %v1023, 0.0
        %v2497 = vmax.f32 %v1024, 0.0
        %v2498 = vmax.f32 %v1025, 0.0
        %v2499 = vmax.f32 %v1026, 0.0
        %v2500 = vmax.f32 %v1027, 0.0
        %v2501 = vmax.f32 %v1028, 0.0
        %v2502 = vmax.f32 %v1029, 0.0
        %v2503 = vmax.f32 %v1030, 0.0
        %v2504 = vmax.f32 %v1031, 0.0
        %v2505 = vmax.f32 %v1032, 0.0
        %v2506 = vmax.f32 %v1033, 0.0
        %v2507 = vmax.f32 %v1034, 0.0
        %v2508 = vmax.f32 %v1035, 0.0
        %v2509 = vmax.f32 %v1036, 0.0
        %v2510 = vmax.f32 %v1037, 0.0
        %v2511 = vmax.f32 %v1038, 0.0
        %v2512 = vmax.f32 %v1039, 0.0
        %v2513 = vmax.f32 %v1040, 0.0
        %v2514 = vmax.f32 %v1041, 0.0
        %v2515 = vmax.f32 %v1042, 0.0
        %v2516 = vmax.f32 %v1043, 0.0
        %v2517 = vmax.f32 %v1044, 0.0
        %v2518 = vmax.f32 %v1045, 0.0
        %v2519 = vmax.f32 %v1046, 0.0
        %v2520 = vmax.f32 %v1047, 0.0
        %v2521 = vmax.f32 %v1048, 0.0
        %v2522 = vmax.f32 %v1049, 0.0
        %v2523 = vmax.f32 %v1050, 0.0
        %v2524 = vmax.f32 %v1051, 0.0
        %v2525 = vmax.f32 %v1052, 0.0
        %v2526 = vmax.f32 %v1053, 0.0
        %v2527 = vmax.f32 %v1054, 0.0
        %v2528 = vmax.f32 %v1055, 0.0
        %v2529 = vmax.f32 %v1056, 0.0
        %v2530 = vmax.f32 %v1057, 0.0
        %v2531 = vmax.f32 %v1058, 0.0
        %v2532 = vmax.f32 %v1059, 0.0
        %v2533 = vmax.f32 %v1060, 0.0
        %v2534 = vmax.f32 %v1061, 0.0
        %v2535 = vmax.f32 %v1062, 0.0
        %v2536 = vmax.f32 %v1063, 0.0
        %v2537 = vmax.f32 %v1064, 0.0
        %v2538 = vmax.f32 %v1065, 0.0
        %v2539 = vmax.f32 %v1066, 0.0
        %v2540 = vmax.f32 %v1067, 0.0
        %v2541 = vmax.f32 %v1068, 0.0
        %v2542 = vmax.f32 %v1069, 0.0
        %v2543 = vmax.f32 %v1070, 0.0
        %v2544 = vmax.f32 %v1071, 0.0
        %v2545 = vmax.f32 %v1072, 0.0
        %v2546 = vmax.f32 %v1073, 0.0
        %v2547 = vmax.f32 %v1074, 0.0
        %v2548 = vmax.f32 %v1075, 0.0
        %v2549 = vmax.f32 %v1076, 0.0
        %v2550 = vmax.f32 %v1077, 0.0
        %v2551 = vmax.f32 %v1078, 0.0
        %v2552 = vmax.f32 %v1079, 0.0
        %v2553 = vmax.f32 %v1080, 0.0
        %v2554 = vmax.f32 %v1081, 0.0
        %v2555 = vmax.f32 %v1082, 0.0
        %v2556 = vmax.f32 %v1083, 0.0
        %v2557 = vmax.f32 %v1084, 0.0
        %v2558 = vmax.f32 %v1085, 0.0
        %v2559 = vmax.f32 %v1086, 0.0
        %v2560 = vmax.f32 %v1087, 0.0
        %v2561 = vmax.f32 %v1088, 0.0
        %v2562 = vmax.f32 %v1089, 0.0
        %v2563 = vmax.f32 %v1090, 0.0
        %v2564 = vmax.f32 %v1091, 0.0
        %v2565 = vmax.f32 %v1092, 0.0
        %v2566 = vmax.f32 %v1093, 0.0
        %v2567 = vmax.f32 %v1094, 0.0
        %v2568 = vmax.f32 %v1095, 0.0
        %v2569 = vmax.f32 %v1096, 0.0
        %v2570 = vmax.f32 %v1097, 0.0
        %v2571 = vmax.f32 %v1098, 0.0
        %v2572 = vmax.f32 %v1099, 0.0
        %v2573 = vmax.f32 %v1100, 0.0
        %v2574 = vmax.f32 %v1101, 0.0
        %v2575 = vmax.f32 %v1102, 0.0
        %v2576 = vmax.f32 %v1103, 0.0
        %v2577 = vmax.f32 %v1104, 0.0
        %v2578 = vmax.f32 %v1105, 0.0
        %v2579 = vmax.f32 %v1106, 0.0
        %v2580 = vmax.f32 %v1107, 0.0
        %v2581 = vmax.f32 %v1108, 0.0
        %v2582 = vmax.f32 %v1109, 0.0
        %v2583 = vmax.f32 %v1110, 0.0
        %v2584 = vmax.f32 %v1111, 0.0
        %v2585 = vmax.f32 %v1112, 0.0
        %v2586 = vmax.f32 %v1113, 0.0
        %v2587 = vmax.f32 %v1114, 0.0
        %v2588 = vmax.f32 %v1115, 0.0
        %v2589 = vmax.f32 %v1116, 0.0
        %v2590 = vmax.f32 %v1117, 0.0
        %v2591 = vmax.f32 %v1118, 0.0
        %v2592 = vmax.f32 %v1119, 0.0
        %v2593 = vmul.f32 %v2465, %v758
        %v2594 = vmul.f32 %v2466, %v759
        %v2595 = vmul.f32 %v2467, %v760
        %v2596 = vmul.f32 %v2468, %v761
        %v2597 = vmul.f32 %v2469, %v762
        %v2598 = vmul.f32 %v2470, %v763
        %v2599 = vmul.f32 %v2471, %v764
        %v2600 = vmul.f32 %v2472, %v765
        %v2601 = vmul.f32 %v2473, %v766
        %v2602 = vmul.f32 %v2474, %v767
        %v2603 = vmul.f32 %v2475, %v768
        %v2604 = vmul.f32 %v2476, %v769
        %v2605 = vmul.f32 %v2477, %v770
        %v2606 = vmul.f32 %v2478, %v771
        %v2607 = vmul.f32 %v2479, %v772
        %v2608 = vmul.f32 %v2480, %v773
        %v2609 = vmul.f32 %v2481, %v758
        %v2610 = vmul.f32 %v2482, %v759
        %v2611 = vmul.f32 %v2483, %v760
        %v2612 = vmul.f32 %v2484, %v761
        %v2613 = vmul.f32 %v2485, %v762
        %v2614 = vmul.f32 %v2486, %v763
        %v2615 = vmul.f32 %v2487, %v764
        %v2616 = vmul.f32 %v2488, %v765
        %v2617 = vmul.f32 %v2489, %v766
        %v2618 = vmul.f32 %v2490, %v767
        %v2619 = vmul.f32 %v2491, %v768
        %v2620 = vmul.f32 %v2492, %v769
        %v2621 = vmul.f32 %v2493, %v770
        %v2622 = vmul.f32 %v2494, %v771
        %v2623 = vmul.f32 %v2495, %v772
        %v2624 = vmul.f32 %v2496, %v773
        %v2625 = vmul.f32 %v2497, %v758
        %v2626 = vmul.f32 %v2498, %v759
        %v2627 = vmul.f32 %v2499, %v760
        %v2628 = vmul.f32 %v2500, %v761
        %v2629 = vmul.f32 %v2501, %v762
        %v2630 = vmul.f32 %v2502, %v763
        %v2631 = vmul.f32 %v2503, %v764
        %v2632 = vmul.f32 %v2504, %v765
        %v2633 = vmul.f32 %v2505, %v766
        %v2634 = vmul.f32 %v2506, %v767
        %v2635 = vmul.f32 %v2507, %v768
        %v2636 = vmul.f32 %v2508, %v769
        %v2637 = vmul.f32 %v2509, %v770
        %v2638 = vmul.f32 %v2510, %v771
        %v2639 = vmul.f32 %v2511, %v772
        %v2640 = vmul.f32 %v2512, %v773
        %v2641 = vmul.f32 %v2513, %v758
        %v2642 = vmul.f32 %v2514, %v759
        %v2643 = vmul.f32 %v2515, %v760
        %v2644 = vmul.f32 %v2516, %v761
        %v2645 = vmul.f32 %v2517, %v762
        %v2646 = vmul.f32 %v2518, %v763
        %v2647 = vmul.f32 %v2519, %v764
        %v2648 = vmul.f32 %v2520, %v765
        %v2649 = vmul.f32 %v2521, %v766
        %v2650 = vmul.f32 %v2522, %v767
        %v2651 = vmul.f32 %v2523, %v768
        %v2652 = vmul.f32 %v2524, %v769
        %v2653 = vmul.f32 %v2525, %v770
        %v2654 = vmul.f32 %v2526, %v771
        %v2655 = vmul.f32 %v2527, %v772
        %v2656 = vmul.f32 %v2528, %v773
        %v2657 = vmul.f32 %v2529, %v758
        %v2658 = vmul.f32 %v2530, %v759
        %v2659 = vmul.f32 %v2531, %v760
        %v2660 = vmul.f32 %v2532, %v761
        %v2661 = vmul.f32 %v2533, %v762
        %v2662 = vmul.f32 %v2534, %v763
        %v2663 = vmul.f32 %v2535, %v764
        %v2664 = vmul.f32 %v2536, %v765
        %v2665 = vmul.f32 %v2537, %v766
        %v2666 = vmul.f32 %v2538, %v767
        %v2667 = vmul.f32 %v2539, %v768
        %v2668 = vmul.f32 %v2540, %v769
        %v2669 = vmul.f32 %v2541, %v770
        %v2670 = vmul.f32 %v2542, %v771
        %v2671 = vmul.f32 %v2543, %v772
        %v2672 = vmul.f32 %v2544, %v773
        %v2673 = vmul.f32 %v2545, %v758
        %v2674 = vmul.f32 %v2546, %v759
        %v2675 = vmul.f32 %v2547, %v760
        %v2676 = vmul.f32 %v2548, %v761
        %v2677 = vmul.f32 %v2549, %v762
        %v2678 = vmul.f32 %v2550, %v763
        %v2679 = vmul.f32 %v2551, %v764
        %v2680 = vmul.f32 %v2552, %v765
        %v2681 = vmul.f32 %v2553, %v766
        %v2682 = vmul.f32 %v2554, %v767
        %v2683 = vmul.f32 %v2555, %v768
        %v2684 = vmul.f32 %v2556, %v769
        %v2685 = vmul.f32 %v2557, %v770
        %v2686 = vmul.f32 %v2558, %v771
        %v2687 = vmul.f32 %v2559, %v772
        %v2688 = vmul.f32 %v2560, %v773
        %v2689 = vmul.f32 %v2561, %v758
        %v2690 = vmul.f32 %v2562, %v759
        %v2691 = vmul.f32 %v2563, %v760
        %v2692 = vmul.f32 %v2564, %v761
        %v2693 = vmul.f32 %v2565, %v762
        %v2694 = vmul.f32 %v2566, %v763
        %v2695 = vmul.f32 %v2567, %v764
        %v2696 = vmul.f32 %v2568, %v765
        %v2697 = vmul.f32 %v2569, %v766
        %v2698 = vmul.f32 %v2570, %v767
        %v2699 = vmul.f32 %v2571, %v768
        %v2700 = vmul.f32 %v2572, %v769
        %v2701 = vmul.f32 %v2573, %v770
        %v2702 = vmul.f32 %v2574, %v771
        %v2703 = vmul.f32 %v2575, %v772
        %v2704 = vmul.f32 %v2576, %v773
        %v2705 = vmul.f32 %v2577, %v758
        %v2706 = vmul.f32 %v2578, %v759
        %v2707 = vmul.f32 %v2579, %v760
        %v2708 = vmul.f32 %v2580, %v761
        %v2709 = vmul.f32 %v2581, %v762
        %v2710 = vmul.f32 %v2582, %v763
        %v2711 = vmul.f32 %v2583, %v764
        %v2712 = vmul.f32 %v2584, %v765
        %v2713 = vmul.f32 %v2585, %v766
        %v2714 = vmul.f32 %v2586, %v767
        %v2715 = vmul.f32 %v2587, %v768
        %v2716 = vmul.f32 %v2588, %v769
        %v2717 = vmul.f32 %v2589, %v770
        %v2718 = vmul.f32 %v2590, %v771
        %v2719 = vmul.f32 %v2591, %v772
        %v2720 = vmul.f32 %v2592, %v773
        %v2721 = vsub.f32 %v2337, %v2593
        %v2722 = vsub.f32 %v2338, %v2594
        %v2723 = vsub.f32 %v2339, %v2595
        %v2724 = vsub.f32 %v2340, %v2596
        %v2725 = vsub.f32 %v2341, %v2597
        %v2726 = vsub.f32 %v2342, %v2598
        %v2727 = vsub.f32 %v2343, %v2599
        %v2728 = vsub.f32 %v2344, %v2600
        %v2729 = vsub.f32 %v2345, %v2601
        %v2730 = vsub.f32 %v2346, %v2602
        %v2731 = vsub.f32 %v2347, %v2603
        %v2732 = vsub.f32 %v2348, %v2604
        %v2733 = vsub.f32 %v2349, %v2605
        %v2734 = vsub.f32 %v2350, %v2606
        %v2735 = vsub.f32 %v2351, %v2607
        %v2736 = vsub.f32 %v2352, %v2608
        %v2737 = vsub.f32 %v2353, %v2609
        %v2738 = vsub.f32 %v2354, %v2610
        %v2739 = vsub.f32 %v2355, %v2611
        %v2740 = vsub.f32 %v2356, %v2612
        %v2741 = vsub.f32 %v2357, %v2613
        %v2742 = vsub.f32 %v2358, %v2614
        %v2743 = vsub.f32 %v2359, %v2615
        %v2744 = vsub.f32 %v2360, %v2616
        %v2745 = vsub.f32 %v2361, %v2617
        %v2746 = vsub.f32 %v2362, %v2618
        %v2747 = vsub.f32 %v2363, %v2619
        %v2748 = vsub.f32 %v2364, %v2620
        %v2749 = vsub.f32 %v2365, %v2621
        %v2750 = vsub.f32 %v2366, %v2622
        %v2751 = vsub.f32 %v2367, %v2623
        %v2752 = vsub.f32 %v2368, %v2624
        %v2753 = vsub.f32 %v2369, %v2625
        %v2754 = vsub.f32 %v2370, %v2626
        %v2755 = vsub.f32 %v2371, %v2627
        %v2756 = vsub.f32 %v2372, %v2628
        %v2757 = vsub.f32 %v2373, %v2629
        %v2758 = vsub.f32 %v2374, %v2630
        %v2759 = vsub.f32 %v2375, %v2631
        %v2760 = vsub.f32 %v2376, %v2632
        %v2761 = vsub.f32 %v2377, %v2633
        %v2762 = vsub.f32 %v2378, %v2634
        %v2763 = vsub.f32 %v2379, %v2635
        %v2764 = vsub.f32 %v2380, %v2636
        %v2765 = vsub.f32 %v2381, %v2637
        %v2766 = vsub.f32 %v2382, %v2638
        %v2767 = vsub.f32 %v2383, %v2639
        %v2768 = vsub.f32 %v2384, %v2640
        %v2769 = vsub.f32 %v2385, %v2641
        %v2770 = vsub.f32 %v2386, %v2642
        %v2771 = vsub.f32 %v2387, %v2643
        %v2772 = vsub.f32 %v2388, %v2644
        %v2773 = vsub.f32 %v2389, %v2645
        %v2774 = vsub.f32 %v2390, %v2646
        %v2775 = vsub.f32 %v2391, %v2647
        %v2776 = vsub.f32 %v2392, %v2648
        %v2777 = vsub.f32 %v2393, %v2649
        %v2778 = vsub.f32 %v2394, %v2650
        %v2779 = vsub.f32 %v2395, %v2651
        %v2780 = vsub.f32 %v2396, %v2652
        %v2781 = vsub.f32 %v2397, %v2653
        %v2782 = vsub.f32 %v2398, %v2654
        %v2783 = vsub.f32 %v2399, %v2655
        %v2784 = vsub.f32 %v2400, %v2656
        %v2785 = vsub.f32 %v2401, %v2657
        %v2786 = vsub.f32 %v2402, %v2658
        %v2787 = vsub.f32 %v2403, %v2659
        %v2788 = vsub.f32 %v2404, %v2660
        %v2789 = vsub.f32 %v2405, %v2661
        %v2790 = vsub.f32 %v2406, %v2662
        %v2791 = vsub.f32 %v2407, %v2663
        %v2792 = vsub.f32 %v2408, %v2664
        %v2793 = vsub.f32 %v2409, %v2665
        %v2794 = vsub.f32 %v2410, %v2666
        %v2795 = vsub.f32 %v2411, %v2667
        %v2796 = vsub.f32 %v2412, %v2668
        %v2797 = vsub.f32 %v2413, %v2669
        %v2798 = vsub.f32 %v2414, %v2670
        %v2799 = vsub.f32 %v2415, %v2671
        %v2800 = vsub.f32 %v2416, %v2672
        %v2801 = vsub.f32 %v2417, %v2673
        %v2802 = vsub.f32 %v2418, %v2674
        %v2803 = vsub.f32 %v2419, %v2675
        %v2804 = vsub.f32 %v2420, %v2676
        %v2805 = vsub.f32 %v2421, %v2677
        %v2806 = vsub.f32 %v2422, %v2678
        %v2807 = vsub.f32 %v2423, %v2679
        %v2808 = vsub.f32 %v2424, %v2680
        %v2809 = vsub.f32 %v2425, %v2681
        %v2810 = vsub.f32 %v2426, %v2682
        %v2811 = vsub.f32 %v2427, %v2683
        %v2812 = vsub.f32 %v2428, %v2684
        %v2813 = vsub.f32 %v2429, %v2685
        %v2814 = vsub.f32 %v2430, %v2686
        %v2815 = vsub.f32 %v2431, %v2687
        %v2816 = vsub.f32 %v2432, %v2688
        %v2817 = vsub.f32 %v2433, %v2689
        %v2818 = vsub.f32 %v2434, %v2690
        %v2819 = vsub.f32 %v2435, %v2691
        %v2820 = vsub.f32 %v2436, %v2692
        %v2821 = vsub.f32 %v2437, %v2693
        %v2822 = vsub.f32 %v2438, %v2694
        %v2823 = vsub.f32 %v2439, %v2695
        %v2824 = vsub.f32 %v2440, %v2696
        %v2825 = vsub.f32 %v2441, %v2697
        %v2826 = vsub.f32 %v2442, %v2698
        %v2827 = vsub.f32 %v2443, %v2699
        %v2828 = vsub.f32 %v2444, %v2700
        %v2829 = vsub.f32 %v2445, %v2701
        %v2830 = vsub.f32 %v2446, %v2702
        %v2831 = vsub.f32 %v2447, %v2703
        %v2832 = vsub.f32 %v2448, %v2704
        %v2833 = vsub.f32 %v2449, %v2705
        %v2834 = vsub.f32 %v2450, %v2706
        %v2835 = vsub.f32 %v2451, %v2707
        %v2836 = vsub.f32 %v2452, %v2708
        %v2837 = vsub.f32 %v2453, %v2709
        %v2838 = vsub.f32 %v2454, %v2710
        %v2839 = vsub.f32 %v2455, %v2711
        %v2840 = vsub.f32 %v2456, %v2712
        %v2841 = vsub.f32 %v2457, %v2713
        %v2842 = vsub.f32 %v2458, %v2714
        %v2843 = vsub.f32 %v2459, %v2715
        %v2844 = vsub.f32 %v2460, %v2716
        %v2845 = vsub.f32 %v2461, %v2717
        %v2846 = vsub.f32 %v2462, %v2718
        %v2847 = vsub.f32 %v2463, %v2719
        %v2848 = vsub.f32 %v2464, %v2720
        %2849 = vadd.xlane.f32.xlu0 %v2721
        %v2850 = vpop.xlane.xlu0 %2849
        %2851 = vadd.xlane.f32.xlu0 %v2722
        %v2852 = vpop.xlane.xlu0 %2851
        %2853 = vadd.xlane.f32.xlu0 %v2723
        %v2854 = vpop.xlane.xlu0 %2853
        %2855 = vadd.xlane.f32.xlu0 %v2724
        %v2856 = vpop.xlane.xlu0 %2855
        %2857 = vadd.xlane.f32.xlu0 %v2725
        %v2858 = vpop.xlane.xlu0 %2857
        %2859 = vadd.xlane.f32.xlu0 %v2726
        %v2860 = vpop.xlane.xlu0 %2859
        %2861 = vadd.xlane.f32.xlu0 %v2727
        %v2862 = vpop.xlane.xlu0 %2861
        %2863 = vadd.xlane.f32.xlu0 %v2728
        %v2864 = vpop.xlane.xlu0 %2863
        %2865 = vadd.xlane.f32.xlu0 %v2729
        %v2866 = vpop.xlane.xlu0 %2865
        %2867 = vadd.xlane.f32.xlu0 %v2730
        %v2868 = vpop.xlane.xlu0 %2867
        %2869 = vadd.xlane.f32.xlu0 %v2731
        %v2870 = vpop.xlane.xlu0 %2869
        %2871 = vadd.xlane.f32.xlu0 %v2732
        %v2872 = vpop.xlane.xlu0 %2871
        %2873 = vadd.xlane.f32.xlu0 %v2733
        %v2874 = vpop.xlane.xlu0 %2873
        %2875 = vadd.xlane.f32.xlu0 %v2734
        %v2876 = vpop.xlane.xlu0 %2875
        %2877 = vadd.xlane.f32.xlu0 %v2735
        %v2878 = vpop.xlane.xlu0 %2877
        %2879 = vadd.xlane.f32.xlu0 %v2736
        %v2880 = vpop.xlane.xlu0 %2879
        %2881 = vadd.xlane.f32.xlu0 %v2737
        %v2882 = vpop.xlane.xlu0 %2881
        %2883 = vadd.xlane.f32.xlu0 %v2738
        %v2884 = vpop.xlane.xlu0 %2883
        %2885 = vadd.xlane.f32.xlu0 %v2739
        %v2886 = vpop.xlane.xlu0 %2885
        %2887 = vadd.xlane.f32.xlu0 %v2740
        %v2888 = vpop.xlane.xlu0 %2887
        %2889 = vadd.xlane.f32.xlu0 %v2741
        %v2890 = vpop.xlane.xlu0 %2889
        %2891 = vadd.xlane.f32.xlu0 %v2742
        %v2892 = vpop.xlane.xlu0 %2891
        %2893 = vadd.xlane.f32.xlu0 %v2743
        %v2894 = vpop.xlane.xlu0 %2893
        %2895 = vadd.xlane.f32.xlu0 %v2744
        %v2896 = vpop.xlane.xlu0 %2895
        %2897 = vadd.xlane.f32.xlu0 %v2745
        %v2898 = vpop.xlane.xlu0 %2897
        %2899 = vadd.xlane.f32.xlu0 %v2746
        %v2900 = vpop.xlane.xlu0 %2899
        %2901 = vadd.xlane.f32.xlu0 %v2747
        %v2902 = vpop.xlane.xlu0 %2901
        %2903 = vadd.xlane.f32.xlu0 %v2748
        %v2904 = vpop.xlane.xlu0 %2903
        %2905 = vadd.xlane.f32.xlu0 %v2749
        %v2906 = vpop.xlane.xlu0 %2905
        %2907 = vadd.xlane.f32.xlu0 %v2750
        %v2908 = vpop.xlane.xlu0 %2907
        %2909 = vadd.xlane.f32.xlu0 %v2751
        %v2910 = vpop.xlane.xlu0 %2909
        %2911 = vadd.xlane.f32.xlu0 %v2752
        %v2912 = vpop.xlane.xlu0 %2911
        %2913 = vadd.xlane.f32.xlu0 %v2753
        %v2914 = vpop.xlane.xlu0 %2913
        %2915 = vadd.xlane.f32.xlu0 %v2754
        %v2916 = vpop.xlane.xlu0 %2915
        %2917 = vadd.xlane.f32.xlu0 %v2755
        %v2918 = vpop.xlane.xlu0 %2917
        %2919 = vadd.xlane.f32.xlu0 %v2756
        %v2920 = vpop.xlane.xlu0 %2919
        %2921 = vadd.xlane.f32.xlu0 %v2757
        %v2922 = vpop.xlane.xlu0 %2921
        %2923 = vadd.xlane.f32.xlu0 %v2758
        %v2924 = vpop.xlane.xlu0 %2923
        %2925 = vadd.xlane.f32.xlu0 %v2759
        %v2926 = vpop.xlane.xlu0 %2925
        %2927 = vadd.xlane.f32.xlu0 %v2760
        %v2928 = vpop.xlane.xlu0 %2927
        %2929 = vadd.xlane.f32.xlu0 %v2761
        %v2930 = vpop.xlane.xlu0 %2929
        %2931 = vadd.xlane.f32.xlu0 %v2762
        %v2932 = vpop.xlane.xlu0 %2931
        %2933 = vadd.xlane.f32.xlu0 %v2763
        %v2934 = vpop.xlane.xlu0 %2933
        %2935 = vadd.xlane.f32.xlu0 %v2764
        %v2936 = vpop.xlane.xlu0 %2935
        %2937 = vadd.xlane.f32.xlu0 %v2765
        %v2938 = vpop.xlane.xlu0 %2937
        %2939 = vadd.xlane.f32.xlu0 %v2766
        %v2940 = vpop.xlane.xlu0 %2939
        %2941 = vadd.xlane.f32.xlu0 %v2767
        %v2942 = vpop.xlane.xlu0 %2941
        %2943 = vadd.xlane.f32.xlu0 %v2768
        %v2944 = vpop.xlane.xlu0 %2943
        %2945 = vadd.xlane.f32.xlu0 %v2769
        %v2946 = vpop.xlane.xlu0 %2945
        %2947 = vadd.xlane.f32.xlu0 %v2770
        %v2948 = vpop.xlane.xlu0 %2947
        %2949 = vadd.xlane.f32.xlu0 %v2771
        %v2950 = vpop.xlane.xlu0 %2949
        %2951 = vadd.xlane.f32.xlu0 %v2772
        %v2952 = vpop.xlane.xlu0 %2951
        %2953 = vadd.xlane.f32.xlu0 %v2773
        %v2954 = vpop.xlane.xlu0 %2953
        %2955 = vadd.xlane.f32.xlu0 %v2774
        %v2956 = vpop.xlane.xlu0 %2955
        %2957 = vadd.xlane.f32.xlu0 %v2775
        %v2958 = vpop.xlane.xlu0 %2957
        %2959 = vadd.xlane.f32.xlu0 %v2776
        %v2960 = vpop.xlane.xlu0 %2959
        %2961 = vadd.xlane.f32.xlu0 %v2777
        %v2962 = vpop.xlane.xlu0 %2961
        %2963 = vadd.xlane.f32.xlu0 %v2778
        %v2964 = vpop.xlane.xlu0 %2963
        %2965 = vadd.xlane.f32.xlu0 %v2779
        %v2966 = vpop.xlane.xlu0 %2965
        %2967 = vadd.xlane.f32.xlu0 %v2780
        %v2968 = vpop.xlane.xlu0 %2967
        %2969 = vadd.xlane.f32.xlu0 %v2781
        %v2970 = vpop.xlane.xlu0 %2969
        %2971 = vadd.xlane.f32.xlu0 %v2782
        %v2972 = vpop.xlane.xlu0 %2971
        %2973 = vadd.xlane.f32.xlu0 %v2783
        %v2974 = vpop.xlane.xlu0 %2973
        %2975 = vadd.xlane.f32.xlu0 %v2784
        %v2976 = vpop.xlane.xlu0 %2975
        %2977 = vadd.xlane.f32.xlu0 %v2785
        %v2978 = vpop.xlane.xlu0 %2977
        %2979 = vadd.xlane.f32.xlu0 %v2786
        %v2980 = vpop.xlane.xlu0 %2979
        %2981 = vadd.xlane.f32.xlu0 %v2787
        %v2982 = vpop.xlane.xlu0 %2981
        %2983 = vadd.xlane.f32.xlu0 %v2788
        %v2984 = vpop.xlane.xlu0 %2983
        %2985 = vadd.xlane.f32.xlu0 %v2789
        %v2986 = vpop.xlane.xlu0 %2985
        %2987 = vadd.xlane.f32.xlu0 %v2790
        %v2988 = vpop.xlane.xlu0 %2987
        %2989 = vadd.xlane.f32.xlu0 %v2791
        %v2990 = vpop.xlane.xlu0 %2989
        %2991 = vadd.xlane.f32.xlu0 %v2792
        %v2992 = vpop.xlane.xlu0 %2991
        %2993 = vadd.xlane.f32.xlu0 %v2793
        %v2994 = vpop.xlane.xlu0 %2993
        %2995 = vadd.xlane.f32.xlu0 %v2794
        %v2996 = vpop.xlane.xlu0 %2995
        %2997 = vadd.xlane.f32.xlu0 %v2795
        %v2998 = vpop.xlane.xlu0 %2997
        %2999 = vadd.xlane.f32.xlu0 %v2796
        %v3000 = vpop.xlane.xlu0 %2999
        %3001 = vadd.xlane.f32.xlu0 %v2797
        %v3002 = vpop.xlane.xlu0 %3001
        %3003 = vadd.xlane.f32.xlu0 %v2798
        %v3004 = vpop.xlane.xlu0 %3003
        %3005 = vadd.xlane.f32.xlu0 %v2799
        %v3006 = vpop.xlane.xlu0 %3005
        %3007 = vadd.xlane.f32.xlu0 %v2800
        %v3008 = vpop.xlane.xlu0 %3007
        %3009 = vadd.xlane.f32.xlu0 %v2801
        %v3010 = vpop.xlane.xlu0 %3009
        %3011 = vadd.xlane.f32.xlu0 %v2802
        %v3012 = vpop.xlane.xlu0 %3011
        %3013 = vadd.xlane.f32.xlu0 %v2803
        %v3014 = vpop.xlane.xlu0 %3013
        %3015 = vadd.xlane.f32.xlu0 %v2804
        %v3016 = vpop.xlane.xlu0 %3015
        %3017 = vadd.xlane.f32.xlu0 %v2805
        %v3018 = vpop.xlane.xlu0 %3017
        %3019 = vadd.xlane.f32.xlu0 %v2806
        %v3020 = vpop.xlane.xlu0 %3019
        %3021 = vadd.xlane.f32.xlu0 %v2807
        %v3022 = vpop.xlane.xlu0 %3021
        %3023 = vadd.xlane.f32.xlu0 %v2808
        %v3024 = vpop.xlane.xlu0 %3023
        %3025 = vadd.xlane.f32.xlu0 %v2809
        %v3026 = vpop.xlane.xlu0 %3025
        %3027 = vadd.xlane.f32.xlu0 %v2810
        %v3028 = vpop.xlane.xlu0 %3027
        %3029 = vadd.xlane.f32.xlu0 %v2811
        %v3030 = vpop.xlane.xlu0 %3029
        %3031 = vadd.xlane.f32.xlu0 %v2812
        %v3032 = vpop.xlane.xlu0 %3031
        %3033 = vadd.xlane.f32.xlu0 %v2813
        %v3034 = vpop.xlane.xlu0 %3033
        %3035 = vadd.xlane.f32.xlu0 %v2814
        %v3036 = vpop.xlane.xlu0 %3035
        %3037 = vadd.xlane.f32.xlu0 %v2815
        %v3038 = vpop.xlane.xlu0 %3037
        %3039 = vadd.xlane.f32.xlu0 %v2816
        %v3040 = vpop.xlane.xlu0 %3039
        %3041 = vadd.xlane.f32.xlu0 %v2817
        %v3042 = vpop.xlane.xlu0 %3041
        %3043 = vadd.xlane.f32.xlu0 %v2818
        %v3044 = vpop.xlane.xlu0 %3043
        %3045 = vadd.xlane.f32.xlu0 %v2819
        %v3046 = vpop.xlane.xlu0 %3045
        %3047 = vadd.xlane.f32.xlu0 %v2820
        %v3048 = vpop.xlane.xlu0 %3047
        %3049 = vadd.xlane.f32.xlu0 %v2821
        %v3050 = vpop.xlane.xlu0 %3049
        %3051 = vadd.xlane.f32.xlu0 %v2822
        %v3052 = vpop.xlane.xlu0 %3051
        %3053 = vadd.xlane.f32.xlu0 %v2823
        %v3054 = vpop.xlane.xlu0 %3053
        %3055 = vadd.xlane.f32.xlu0 %v2824
        %v3056 = vpop.xlane.xlu0 %3055
        %3057 = vadd.xlane.f32.xlu0 %v2825
        %v3058 = vpop.xlane.xlu0 %3057
        %3059 = vadd.xlane.f32.xlu0 %v2826
        %v3060 = vpop.xlane.xlu0 %3059
        %3061 = vadd.xlane.f32.xlu0 %v2827
        %v3062 = vpop.xlane.xlu0 %3061
        %3063 = vadd.xlane.f32.xlu0 %v2828
        %v3064 = vpop.xlane.xlu0 %3063
        %3065 = vadd.xlane.f32.xlu0 %v2829
        %v3066 = vpop.xlane.xlu0 %3065
        %3067 = vadd.xlane.f32.xlu0 %v2830
        %v3068 = vpop.xlane.xlu0 %3067
        %3069 = vadd.xlane.f32.xlu0 %v2831
        %v3070 = vpop.xlane.xlu0 %3069
        %3071 = vadd.xlane.f32.xlu0 %v2832
        %v3072 = vpop.xlane.xlu0 %3071
        %3073 = vadd.xlane.f32.xlu0 %v2833
        %v3074 = vpop.xlane.xlu0 %3073
        %3075 = vadd.xlane.f32.xlu0 %v2834
        %v3076 = vpop.xlane.xlu0 %3075
        %3077 = vadd.xlane.f32.xlu0 %v2835
        %v3078 = vpop.xlane.xlu0 %3077
        %3079 = vadd.xlane.f32.xlu0 %v2836
        %v3080 = vpop.xlane.xlu0 %3079
        %3081 = vadd.xlane.f32.xlu0 %v2837
        %v3082 = vpop.xlane.xlu0 %3081
        %3083 = vadd.xlane.f32.xlu0 %v2838
        %v3084 = vpop.xlane.xlu0 %3083
        %3085 = vadd.xlane.f32.xlu0 %v2839
        %v3086 = vpop.xlane.xlu0 %3085
        %3087 = vadd.xlane.f32.xlu0 %v2840
        %v3088 = vpop.xlane.xlu0 %3087
        %3089 = vadd.xlane.f32.xlu0 %v2841
        %v3090 = vpop.xlane.xlu0 %3089
        %3091 = vadd.xlane.f32.xlu0 %v2842
        %v3092 = vpop.xlane.xlu0 %3091
        %3093 = vadd.xlane.f32.xlu0 %v2843
        %v3094 = vpop.xlane.xlu0 %3093
        %3095 = vadd.xlane.f32.xlu0 %v2844
        %v3096 = vpop.xlane.xlu0 %3095
        %3097 = vadd.xlane.f32.xlu0 %v2845
        %v3098 = vpop.xlane.xlu0 %3097
        %3099 = vadd.xlane.f32.xlu0 %v2846
        %v3100 = vpop.xlane.xlu0 %3099
        %3101 = vadd.xlane.f32.xlu0 %v2847
        %v3102 = vpop.xlane.xlu0 %3101
        %3103 = vadd.xlane.f32.xlu0 %v2848
        %v3104 = vpop.xlane.xlu0 %3103
        %v3105 = vadd.f32 %v1955, %v2850
        %v3106 = vadd.f32 %v1958, %v2852
        %v3107 = vadd.f32 %v1961, %v2854
        %v3108 = vadd.f32 %v1964, %v2856
        %v3109 = vadd.f32 %v1967, %v2858
        %v3110 = vadd.f32 %v1970, %v2860
        %v3111 = vadd.f32 %v1973, %v2862
        %v3112 = vadd.f32 %v1976, %v2864
        %v3113 = vadd.f32 %v1979, %v2866
        %v3114 = vadd.f32 %v1982, %v2868
        %v3115 = vadd.f32 %v1985, %v2870
        %v3116 = vadd.f32 %v1988, %v2872
        %v3117 = vadd.f32 %v1991, %v2874
        %v3118 = vadd.f32 %v1994, %v2876
        %v3119 = vadd.f32 %v1997, %v2878
        %v3120 = vadd.f32 %v2000, %v2880
        %v3121 = vadd.f32 %v2003, %v2882
        %v3122 = vadd.f32 %v2006, %v2884
        %v3123 = vadd.f32 %v2009, %v2886
        %v3124 = vadd.f32 %v2012, %v2888
        %v3125 = vadd.f32 %v2015, %v2890
        %v3126 = vadd.f32 %v2018, %v2892
        %v3127 = vadd.f32 %v2021, %v2894
        %v3128 = vadd.f32 %v2024, %v2896
        %v3129 = vadd.f32 %v2027, %v2898
        %v3130 = vadd.f32 %v2030, %v2900
        %v3131 = vadd.f32 %v2033, %v2902
        %v3132 = vadd.f32 %v2036, %v2904
        %v3133 = vadd.f32 %v2039, %v2906
        %v3134 = vadd.f32 %v2042, %v2908
        %v3135 = vadd.f32 %v2045, %v2910
        %v3136 = vadd.f32 %v2048, %v2912
        %v3137 = vadd.f32 %v2051, %v2914
        %v3138 = vadd.f32 %v2054, %v2916
        %v3139 = vadd.f32 %v2057, %v2918
        %v3140 = vadd.f32 %v2060, %v2920
        %v3141 = vadd.f32 %v2063, %v2922
        %v3142 = vadd.f32 %v2066, %v2924
        %v3143 = vadd.f32 %v2069, %v2926
        %v3144 = vadd.f32 %v2072, %v2928
        %v3145 = vadd.f32 %v2075, %v2930
        %v3146 = vadd.f32 %v2078, %v2932
        %v3147 = vadd.f32 %v2081, %v2934
        %v3148 = vadd.f32 %v2084, %v2936
        %v3149 = vadd.f32 %v2087, %v2938
        %v3150 = vadd.f32 %v2090, %v2940
        %v3151 = vadd.f32 %v2093, %v2942
        %v3152 = vadd.f32 %v2096, %v2944
        %v3153 = vadd.f32 %v2099, %v2946
        %v3154 = vadd.f32 %v2102, %v2948
        %v3155 = vadd.f32 %v2105, %v2950
        %v3156 = vadd.f32 %v2108, %v2952
        %v3157 = vadd.f32 %v2111, %v2954
        %v3158 = vadd.f32 %v2114, %v2956
        %v3159 = vadd.f32 %v2117, %v2958
        %v3160 = vadd.f32 %v2120, %v2960
        %v3161 = vadd.f32 %v2123, %v2962
        %v3162 = vadd.f32 %v2126, %v2964
        %v3163 = vadd.f32 %v2129, %v2966
        %v3164 = vadd.f32 %v2132, %v2968
        %v3165 = vadd.f32 %v2135, %v2970
        %v3166 = vadd.f32 %v2138, %v2972
        %v3167 = vadd.f32 %v2141, %v2974
        %v3168 = vadd.f32 %v2144, %v2976
        %v3169 = vadd.f32 %v2147, %v2978
        %v3170 = vadd.f32 %v2150, %v2980
        %v3171 = vadd.f32 %v2153, %v2982
        %v3172 = vadd.f32 %v2156, %v2984
        %v3173 = vadd.f32 %v2159, %v2986
        %v3174 = vadd.f32 %v2162, %v2988
        %v3175 = vadd.f32 %v2165, %v2990
        %v3176 = vadd.f32 %v2168, %v2992
        %v3177 = vadd.f32 %v2171, %v2994
        %v3178 = vadd.f32 %v2174, %v2996
        %v3179 = vadd.f32 %v2177, %v2998
        %v3180 = vadd.f32 %v2180, %v3000
        %v3181 = vadd.f32 %v2183, %v3002
        %v3182 = vadd.f32 %v2186, %v3004
        %v3183 = vadd.f32 %v2189, %v3006
        %v3184 = vadd.f32 %v2192, %v3008
        %v3185 = vadd.f32 %v2195, %v3010
        %v3186 = vadd.f32 %v2198, %v3012
        %v3187 = vadd.f32 %v2201, %v3014
        %v3188 = vadd.f32 %v2204, %v3016
        %v3189 = vadd.f32 %v2207, %v3018
        %v3190 = vadd.f32 %v2210, %v3020
        %v3191 = vadd.f32 %v2213, %v3022
        %v3192 = vadd.f32 %v2216, %v3024
        %v3193 = vadd.f32 %v2219, %v3026
        %v3194 = vadd.f32 %v2222, %v3028
        %v3195 = vadd.f32 %v2225, %v3030
        %v3196 = vadd.f32 %v2228, %v3032
        %v3197 = vadd.f32 %v2231, %v3034
        %v3198 = vadd.f32 %v2234, %v3036
        %v3199 = vadd.f32 %v2237, %v3038
        %v3200 = vadd.f32 %v2240, %v3040
        %v3201 = vadd.f32 %v2243, %v3042
        %v3202 = vadd.f32 %v2246, %v3044
        %v3203 = vadd.f32 %v2249, %v3046
        %v3204 = vadd.f32 %v2252, %v3048
        %v3205 = vadd.f32 %v2255, %v3050
        %v3206 = vadd.f32 %v2258, %v3052
        %v3207 = vadd.f32 %v2261, %v3054
        %v3208 = vadd.f32 %v2264, %v3056
        %v3209 = vadd.f32 %v2267, %v3058
        %v3210 = vadd.f32 %v2270, %v3060
        %v3211 = vadd.f32 %v2273, %v3062
        %v3212 = vadd.f32 %v2276, %v3064
        %v3213 = vadd.f32 %v2279, %v3066
        %v3214 = vadd.f32 %v2282, %v3068
        %v3215 = vadd.f32 %v2285, %v3070
        %v3216 = vadd.f32 %v2288, %v3072
        %v3217 = vadd.f32 %v2291, %v3074
        %v3218 = vadd.f32 %v2294, %v3076
        %v3219 = vadd.f32 %v2297, %v3078
        %v3220 = vadd.f32 %v2300, %v3080
        %v3221 = vadd.f32 %v2303, %v3082
        %v3222 = vadd.f32 %v2306, %v3084
        %v3223 = vadd.f32 %v2309, %v3086
        %v3224 = vadd.f32 %v2312, %v3088
        %v3225 = vadd.f32 %v2315, %v3090
        %v3226 = vadd.f32 %v2318, %v3092
        %v3227 = vadd.f32 %v2321, %v3094
        %v3228 = vadd.f32 %v2324, %v3096
        %v3229 = vadd.f32 %v2327, %v3098
        %v3230 = vadd.f32 %v2330, %v3100
        %v3231 = vadd.f32 %v2333, %v3102
        %v3232 = vadd.f32 %v2336, %v3104
        %v3361 = vlaneseq
        %v3362 = vand.u32 %v3361, 127
        %v3363 = vlaneseq
        %v3364 = vshrl.u32 %v3363, 7
        %v3365 = vsub.s32 %v3362, %v3364
        %v3366 = vrot.slane %v3105, %v3365
        %v3367 = vadd.s32 %v3362, 4294967288
        %v3368 = vlaneseq
        %v3369 = vshrl.u32 %v3368, 7
        %v3370 = vsub.s32 %v3367, %v3369
        %v3371 = vrot.slane %v3106, %v3370
        %vm3372 = vcmask 130112
        %v3373 = vsel %vm3372, %v3371, %v3366
        %v3374 = vadd.s32 %v3362, 4294967280
        %v3375 = vlaneseq
        %v3376 = vshrl.u32 %v3375, 7
        %v3377 = vsub.s32 %v3374, %v3376
        %v3378 = vrot.slane %v3107, %v3377
        %vm3379 = vcmask 195712
        %v3380 = vsel %vm3379, %v3378, %v3373
        %v3381 = vadd.s32 %v3362, 4294967272
        %v3382 = vlaneseq
        %v3383 = vshrl.u32 %v3382, 7
        %v3384 = vsub.s32 %v3381, %v3383
        %v3385 = vrot.slane %v3108, %v3384
        %vm3386 = vcmask 261312
        %v3387 = vsel %vm3386, %v3385, %v3380
        %v3388 = vadd.s32 %v3362, 4294967264
        %v3389 = vlaneseq
        %v3390 = vshrl.u32 %v3389, 7
        %v3391 = vsub.s32 %v3388, %v3390
        %v3392 = vrot.slane %v3109, %v3391
        %vm3393 = vcmask 326912
        %v3394 = vsel %vm3393, %v3392, %v3387
        %v3395 = vadd.s32 %v3362, 4294967256
        %v3396 = vlaneseq
        %v3397 = vshrl.u32 %v3396, 7
        %v3398 = vsub.s32 %v3395, %v3397
        %v3399 = vrot.slane %v3110, %v3398
        %vm3400 = vcmask 392512
        %v3401 = vsel %vm3400, %v3399, %v3394
        %v3402 = vadd.s32 %v3362, 4294967248
        %v3403 = vlaneseq
        %v3404 = vshrl.u32 %v3403, 7
        %v3405 = vsub.s32 %v3402, %v3404
        %v3406 = vrot.slane %v3111, %v3405
        %vm3407 = vcmask 458112
        %v3408 = vsel %vm3407, %v3406, %v3401
        %v3409 = vadd.s32 %v3362, 4294967240
        %v3410 = vlaneseq
        %v3411 = vshrl.u32 %v3410, 7
        %v3412 = vsub.s32 %v3409, %v3411
        %v3413 = vrot.slane %v3112, %v3412
        %vm3414 = vcmask 523712
        %v3415 = vsel %vm3414, %v3413, %v3408
        %v3416 = vadd.s32 %v3362, 4294967232
        %v3417 = vlaneseq
        %v3418 = vshrl.u32 %v3417, 7
        %v3419 = vsub.s32 %v3416, %v3418
        %v3420 = vrot.slane %v3113, %v3419
        %vm3421 = vcmask 589312
        %v3422 = vsel %vm3421, %v3420, %v3415
        %v3423 = vadd.s32 %v3362, 4294967224
        %v3424 = vlaneseq
        %v3425 = vshrl.u32 %v3424, 7
        %v3426 = vsub.s32 %v3423, %v3425
        %v3427 = vrot.slane %v3114, %v3426
        %vm3428 = vcmask 654912
        %v3429 = vsel %vm3428, %v3427, %v3422
        %v3430 = vadd.s32 %v3362, 4294967216
        %v3431 = vlaneseq
        %v3432 = vshrl.u32 %v3431, 7
        %v3433 = vsub.s32 %v3430, %v3432
        %v3434 = vrot.slane %v3115, %v3433
        %vm3435 = vcmask 720512
        %v3436 = vsel %vm3435, %v3434, %v3429
        %v3437 = vadd.s32 %v3362, 4294967208
        %v3438 = vlaneseq
        %v3439 = vshrl.u32 %v3438, 7
        %v3440 = vsub.s32 %v3437, %v3439
        %v3441 = vrot.slane %v3116, %v3440
        %vm3442 = vcmask 786112
        %v3443 = vsel %vm3442, %v3441, %v3436
        %v3444 = vadd.s32 %v3362, 4294967200
        %v3445 = vlaneseq
        %v3446 = vshrl.u32 %v3445, 7
        %v3447 = vsub.s32 %v3444, %v3446
        %v3448 = vrot.slane %v3117, %v3447
        %vm3449 = vcmask 851712
        %v3450 = vsel %vm3449, %v3448, %v3443
        %v3451 = vadd.s32 %v3362, 4294967192
        %v3452 = vlaneseq
        %v3453 = vshrl.u32 %v3452, 7
        %v3454 = vsub.s32 %v3451, %v3453
        %v3455 = vrot.slane %v3118, %v3454
        %vm3456 = vcmask 917312
        %v3457 = vsel %vm3456, %v3455, %v3450
        %v3458 = vadd.s32 %v3362, 4294967184
        %v3459 = vlaneseq
        %v3460 = vshrl.u32 %v3459, 7
        %v3461 = vsub.s32 %v3458, %v3460
        %v3462 = vrot.slane %v3119, %v3461
        %vm3463 = vcmask 982912
        %v3464 = vsel %vm3463, %v3462, %v3457
        %v3465 = vadd.s32 %v3362, 4294967176
        %v3466 = vlaneseq
        %v3467 = vshrl.u32 %v3466, 7
        %v3468 = vsub.s32 %v3465, %v3467
        %v3469 = vrot.slane %v3120, %v3468
        %vm3470 = vcmask 1048512
        %v3471 = vsel %vm3470, %v3469, %v3464
        %v3472 = vlaneseq
        %v3473 = vshrl.u32 %v3472, 7
        %v3474 = vsub.s32 %v3362, %v3473
        %v3475 = vrot.slane %v3121, %v3474
        %v3476 = vlaneseq
        %v3477 = vshrl.u32 %v3476, 7
        %v3478 = vsub.s32 %v3367, %v3477
        %v3479 = vrot.slane %v3122, %v3478
        %v3480 = vsel %vm3372, %v3479, %v3475
        %v3481 = vlaneseq
        %v3482 = vshrl.u32 %v3481, 7
        %v3483 = vsub.s32 %v3374, %v3482
        %v3484 = vrot.slane %v3123, %v3483
        %v3485 = vsel %vm3379, %v3484, %v3480
        %v3486 = vlaneseq
        %v3487 = vshrl.u32 %v3486, 7
        %v3488 = vsub.s32 %v3381, %v3487
        %v3489 = vrot.slane %v3124, %v3488
        %v3490 = vsel %vm3386, %v3489, %v3485
        %v3491 = vlaneseq
        %v3492 = vshrl.u32 %v3491, 7
        %v3493 = vsub.s32 %v3388, %v3492
        %v3494 = vrot.slane %v3125, %v3493
        %v3495 = vsel %vm3393, %v3494, %v3490
        %v3496 = vlaneseq
        %v3497 = vshrl.u32 %v3496, 7
        %v3498 = vsub.s32 %v3395, %v3497
        %v3499 = vrot.slane %v3126, %v3498
        %v3500 = vsel %vm3400, %v3499, %v3495
        %v3501 = vlaneseq
        %v3502 = vshrl.u32 %v3501, 7
        %v3503 = vsub.s32 %v3402, %v3502
        %v3504 = vrot.slane %v3127, %v3503
        %v3505 = vsel %vm3407, %v3504, %v3500
        %v3506 = vlaneseq
        %v3507 = vshrl.u32 %v3506, 7
        %v3508 = vsub.s32 %v3409, %v3507
        %v3509 = vrot.slane %v3128, %v3508
        %v3510 = vsel %vm3414, %v3509, %v3505
        %v3511 = vlaneseq
        %v3512 = vshrl.u32 %v3511, 7
        %v3513 = vsub.s32 %v3416, %v3512
        %v3514 = vrot.slane %v3129, %v3513
        %v3515 = vsel %vm3421, %v3514, %v3510
        %v3516 = vlaneseq
        %v3517 = vshrl.u32 %v3516, 7
        %v3518 = vsub.s32 %v3423, %v3517
        %v3519 = vrot.slane %v3130, %v3518
        %v3520 = vsel %vm3428, %v3519, %v3515
        %v3521 = vlaneseq
        %v3522 = vshrl.u32 %v3521, 7
        %v3523 = vsub.s32 %v3430, %v3522
        %v3524 = vrot.slane %v3131, %v3523
        %v3525 = vsel %vm3435, %v3524, %v3520
        %v3526 = vlaneseq
        %v3527 = vshrl.u32 %v3526, 7
        %v3528 = vsub.s32 %v3437, %v3527
        %v3529 = vrot.slane %v3132, %v3528
        %v3530 = vsel %vm3442, %v3529, %v3525
        %v3531 = vlaneseq
        %v3532 = vshrl.u32 %v3531, 7
        %v3533 = vsub.s32 %v3444, %v3532
        %v3534 = vrot.slane %v3133, %v3533
        %v3535 = vsel %vm3449, %v3534, %v3530
        %v3536 = vlaneseq
        %v3537 = vshrl.u32 %v3536, 7
        %v3538 = vsub.s32 %v3451, %v3537
        %v3539 = vrot.slane %v3134, %v3538
        %v3540 = vsel %vm3456, %v3539, %v3535
        %v3541 = vlaneseq
        %v3542 = vshrl.u32 %v3541, 7
        %v3543 = vsub.s32 %v3458, %v3542
        %v3544 = vrot.slane %v3135, %v3543
        %v3545 = vsel %vm3463, %v3544, %v3540
        %v3546 = vlaneseq
        %v3547 = vshrl.u32 %v3546, 7
        %v3548 = vsub.s32 %v3465, %v3547
        %v3549 = vrot.slane %v3136, %v3548
        %v3550 = vsel %vm3470, %v3549, %v3545
        %v3551 = vlaneseq
        %v3552 = vshrl.u32 %v3551, 7
        %v3553 = vsub.s32 %v3362, %v3552
        %v3554 = vrot.slane %v3137, %v3553
        %v3555 = vlaneseq
        %v3556 = vshrl.u32 %v3555, 7
        %v3557 = vsub.s32 %v3367, %v3556
        %v3558 = vrot.slane %v3138, %v3557
        %v3559 = vsel %vm3372, %v3558, %v3554
        %v3560 = vlaneseq
        %v3561 = vshrl.u32 %v3560, 7
        %v3562 = vsub.s32 %v3374, %v3561
        %v3563 = vrot.slane %v3139, %v3562
        %v3564 = vsel %vm3379, %v3563, %v3559
        %v3565 = vlaneseq
        %v3566 = vshrl.u32 %v3565, 7
        %v3567 = vsub.s32 %v3381, %v3566
        %v3568 = vrot.slane %v3140, %v3567
        %v3569 = vsel %vm3386, %v3568, %v3564
        %v3570 = vlaneseq
        %v3571 = vshrl.u32 %v3570, 7
        %v3572 = vsub.s32 %v3388, %v3571
        %v3573 = vrot.slane %v3141, %v3572
        %v3574 = vsel %vm3393, %v3573, %v3569
        %v3575 = vlaneseq
        %v3576 = vshrl.u32 %v3575, 7
        %v3577 = vsub.s32 %v3395, %v3576
        %v3578 = vrot.slane %v3142, %v3577
        %v3579 = vsel %vm3400, %v3578, %v3574
        %v3580 = vlaneseq
        %v3581 = vshrl.u32 %v3580, 7
        %v3582 = vsub.s32 %v3402, %v3581
        %v3583 = vrot.slane %v3143, %v3582
        %v3584 = vsel %vm3407, %v3583, %v3579
        %v3585 = vlaneseq
        %v3586 = vshrl.u32 %v3585, 7
        %v3587 = vsub.s32 %v3409, %v3586
        %v3588 = vrot.slane %v3144, %v3587
        %v3589 = vsel %vm3414, %v3588, %v3584
        %v3590 = vlaneseq
        %v3591 = vshrl.u32 %v3590, 7
        %v3592 = vsub.s32 %v3416, %v3591
        %v3593 = vrot.slane %v3145, %v3592
        %v3594 = vsel %vm3421, %v3593, %v3589
        %v3595 = vlaneseq
        %v3596 = vshrl.u32 %v3595, 7
        %v3597 = vsub.s32 %v3423, %v3596
        %v3598 = vrot.slane %v3146, %v3597
        %v3599 = vsel %vm3428, %v3598, %v3594
        %v3600 = vlaneseq
        %v3601 = vshrl.u32 %v3600, 7
        %v3602 = vsub.s32 %v3430, %v3601
        %v3603 = vrot.slane %v3147, %v3602
        %v3604 = vsel %vm3435, %v3603, %v3599
        %v3605 = vlaneseq
        %v3606 = vshrl.u32 %v3605, 7
        %v3607 = vsub.s32 %v3437, %v3606
        %v3608 = vrot.slane %v3148, %v3607
        %v3609 = vsel %vm3442, %v3608, %v3604
        %v3610 = vlaneseq
        %v3611 = vshrl.u32 %v3610, 7
        %v3612 = vsub.s32 %v3444, %v3611
        %v3613 = vrot.slane %v3149, %v3612
        %v3614 = vsel %vm3449, %v3613, %v3609
        %v3615 = vlaneseq
        %v3616 = vshrl.u32 %v3615, 7
        %v3617 = vsub.s32 %v3451, %v3616
        %v3618 = vrot.slane %v3150, %v3617
        %v3619 = vsel %vm3456, %v3618, %v3614
        %v3620 = vlaneseq
        %v3621 = vshrl.u32 %v3620, 7
        %v3622 = vsub.s32 %v3458, %v3621
        %v3623 = vrot.slane %v3151, %v3622
        %v3624 = vsel %vm3463, %v3623, %v3619
        %v3625 = vlaneseq
        %v3626 = vshrl.u32 %v3625, 7
        %v3627 = vsub.s32 %v3465, %v3626
        %v3628 = vrot.slane %v3152, %v3627
        %v3629 = vsel %vm3470, %v3628, %v3624
        %v3630 = vlaneseq
        %v3631 = vshrl.u32 %v3630, 7
        %v3632 = vsub.s32 %v3362, %v3631
        %v3633 = vrot.slane %v3153, %v3632
        %v3634 = vlaneseq
        %v3635 = vshrl.u32 %v3634, 7
        %v3636 = vsub.s32 %v3367, %v3635
        %v3637 = vrot.slane %v3154, %v3636
        %v3638 = vsel %vm3372, %v3637, %v3633
        %v3639 = vlaneseq
        %v3640 = vshrl.u32 %v3639, 7
        %v3641 = vsub.s32 %v3374, %v3640
        %v3642 = vrot.slane %v3155, %v3641
        %v3643 = vsel %vm3379, %v3642, %v3638
        %v3644 = vlaneseq
        %v3645 = vshrl.u32 %v3644, 7
        %v3646 = vsub.s32 %v3381, %v3645
        %v3647 = vrot.slane %v3156, %v3646
        %v3648 = vsel %vm3386, %v3647, %v3643
        %v3649 = vlaneseq
        %v3650 = vshrl.u32 %v3649, 7
        %v3651 = vsub.s32 %v3388, %v3650
        %v3652 = vrot.slane %v3157, %v3651
        %v3653 = vsel %vm3393, %v3652, %v3648
        %v3654 = vlaneseq
        %v3655 = vshrl.u32 %v3654, 7
        %v3656 = vsub.s32 %v3395, %v3655
        %v3657 = vrot.slane %v3158, %v3656
        %v3658 = vsel %vm3400, %v3657, %v3653
        %v3659 = vlaneseq
        %v3660 = vshrl.u32 %v3659, 7
        %v3661 = vsub.s32 %v3402, %v3660
        %v3662 = vrot.slane %v3159, %v3661
        %v3663 = vsel %vm3407, %v3662, %v3658
        %v3664 = vlaneseq
        %v3665 = vshrl.u32 %v3664, 7
        %v3666 = vsub.s32 %v3409, %v3665
        %v3667 = vrot.slane %v3160, %v3666
        %v3668 = vsel %vm3414, %v3667, %v3663
        %v3669 = vlaneseq
        %v3670 = vshrl.u32 %v3669, 7
        %v3671 = vsub.s32 %v3416, %v3670
        %v3672 = vrot.slane %v3161, %v3671
        %v3673 = vsel %vm3421, %v3672, %v3668
        %v3674 = vlaneseq
        %v3675 = vshrl.u32 %v3674, 7
        %v3676 = vsub.s32 %v3423, %v3675
        %v3677 = vrot.slane %v3162, %v3676
        %v3678 = vsel %vm3428, %v3677, %v3673
        %v3679 = vlaneseq
        %v3680 = vshrl.u32 %v3679, 7
        %v3681 = vsub.s32 %v3430, %v3680
        %v3682 = vrot.slane %v3163, %v3681
        %v3683 = vsel %vm3435, %v3682, %v3678
        %v3684 = vlaneseq
        %v3685 = vshrl.u32 %v3684, 7
        %v3686 = vsub.s32 %v3437, %v3685
        %v3687 = vrot.slane %v3164, %v3686
        %v3688 = vsel %vm3442, %v3687, %v3683
        %v3689 = vlaneseq
        %v3690 = vshrl.u32 %v3689, 7
        %v3691 = vsub.s32 %v3444, %v3690
        %v3692 = vrot.slane %v3165, %v3691
        %v3693 = vsel %vm3449, %v3692, %v3688
        %v3694 = vlaneseq
        %v3695 = vshrl.u32 %v3694, 7
        %v3696 = vsub.s32 %v3451, %v3695
        %v3697 = vrot.slane %v3166, %v3696
        %v3698 = vsel %vm3456, %v3697, %v3693
        %v3699 = vlaneseq
        %v3700 = vshrl.u32 %v3699, 7
        %v3701 = vsub.s32 %v3458, %v3700
        %v3702 = vrot.slane %v3167, %v3701
        %v3703 = vsel %vm3463, %v3702, %v3698
        %v3704 = vlaneseq
        %v3705 = vshrl.u32 %v3704, 7
        %v3706 = vsub.s32 %v3465, %v3705
        %v3707 = vrot.slane %v3168, %v3706
        %v3708 = vsel %vm3470, %v3707, %v3703
        %v3709 = vlaneseq
        %v3710 = vshrl.u32 %v3709, 7
        %v3711 = vsub.s32 %v3362, %v3710
        %v3712 = vrot.slane %v3169, %v3711
        %v3713 = vlaneseq
        %v3714 = vshrl.u32 %v3713, 7
        %v3715 = vsub.s32 %v3367, %v3714
        %v3716 = vrot.slane %v3170, %v3715
        %v3717 = vsel %vm3372, %v3716, %v3712
        %v3718 = vlaneseq
        %v3719 = vshrl.u32 %v3718, 7
        %v3720 = vsub.s32 %v3374, %v3719
        %v3721 = vrot.slane %v3171, %v3720
        %v3722 = vsel %vm3379, %v3721, %v3717
        %v3723 = vlaneseq
        %v3724 = vshrl.u32 %v3723, 7
        %v3725 = vsub.s32 %v3381, %v3724
        %v3726 = vrot.slane %v3172, %v3725
        %v3727 = vsel %vm3386, %v3726, %v3722
        %v3728 = vlaneseq
        %v3729 = vshrl.u32 %v3728, 7
        %v3730 = vsub.s32 %v3388, %v3729
        %v3731 = vrot.slane %v3173, %v3730
        %v3732 = vsel %vm3393, %v3731, %v3727
        %v3733 = vlaneseq
        %v3734 = vshrl.u32 %v3733, 7
        %v3735 = vsub.s32 %v3395, %v3734
        %v3736 = vrot.slane %v3174, %v3735
        %v3737 = vsel %vm3400, %v3736, %v3732
        %v3738 = vlaneseq
        %v3739 = vshrl.u32 %v3738, 7
        %v3740 = vsub.s32 %v3402, %v3739
        %v3741 = vrot.slane %v3175, %v3740
        %v3742 = vsel %vm3407, %v3741, %v3737
        %v3743 = vlaneseq
        %v3744 = vshrl.u32 %v3743, 7
        %v3745 = vsub.s32 %v3409, %v3744
        %v3746 = vrot.slane %v3176, %v3745
        %v3747 = vsel %vm3414, %v3746, %v3742
        %v3748 = vlaneseq
        %v3749 = vshrl.u32 %v3748, 7
        %v3750 = vsub.s32 %v3416, %v3749
        %v3751 = vrot.slane %v3177, %v3750
        %v3752 = vsel %vm3421, %v3751, %v3747
        %v3753 = vlaneseq
        %v3754 = vshrl.u32 %v3753, 7
        %v3755 = vsub.s32 %v3423, %v3754
        %v3756 = vrot.slane %v3178, %v3755
        %v3757 = vsel %vm3428, %v3756, %v3752
        %v3758 = vlaneseq
        %v3759 = vshrl.u32 %v3758, 7
        %v3760 = vsub.s32 %v3430, %v3759
        %v3761 = vrot.slane %v3179, %v3760
        %v3762 = vsel %vm3435, %v3761, %v3757
        %v3763 = vlaneseq
        %v3764 = vshrl.u32 %v3763, 7
        %v3765 = vsub.s32 %v3437, %v3764
        %v3766 = vrot.slane %v3180, %v3765
        %v3767 = vsel %vm3442, %v3766, %v3762
        %v3768 = vlaneseq
        %v3769 = vshrl.u32 %v3768, 7
        %v3770 = vsub.s32 %v3444, %v3769
        %v3771 = vrot.slane %v3181, %v3770
        %v3772 = vsel %vm3449, %v3771, %v3767
        %v3773 = vlaneseq
        %v3774 = vshrl.u32 %v3773, 7
        %v3775 = vsub.s32 %v3451, %v3774
        %v3776 = vrot.slane %v3182, %v3775
        %v3777 = vsel %vm3456, %v3776, %v3772
        %v3778 = vlaneseq
        %v3779 = vshrl.u32 %v3778, 7
        %v3780 = vsub.s32 %v3458, %v3779
        %v3781 = vrot.slane %v3183, %v3780
        %v3782 = vsel %vm3463, %v3781, %v3777
        %v3783 = vlaneseq
        %v3784 = vshrl.u32 %v3783, 7
        %v3785 = vsub.s32 %v3465, %v3784
        %v3786 = vrot.slane %v3184, %v3785
        %v3787 = vsel %vm3470, %v3786, %v3782
        %v3788 = vlaneseq
        %v3789 = vshrl.u32 %v3788, 7
        %v3790 = vsub.s32 %v3362, %v3789
        %v3791 = vrot.slane %v3185, %v3790
        %v3792 = vlaneseq
        %v3793 = vshrl.u32 %v3792, 7
        %v3794 = vsub.s32 %v3367, %v3793
        %v3795 = vrot.slane %v3186, %v3794
        %v3796 = vsel %vm3372, %v3795, %v3791
        %v3797 = vlaneseq
        %v3798 = vshrl.u32 %v3797, 7
        %v3799 = vsub.s32 %v3374, %v3798
        %v3800 = vrot.slane %v3187, %v3799
        %v3801 = vsel %vm3379, %v3800, %v3796
        %v3802 = vlaneseq
        %v3803 = vshrl.u32 %v3802, 7
        %v3804 = vsub.s32 %v3381, %v3803
        %v3805 = vrot.slane %v3188, %v3804
        %v3806 = vsel %vm3386, %v3805, %v3801
        %v3807 = vlaneseq
        %v3808 = vshrl.u32 %v3807, 7
        %v3809 = vsub.s32 %v3388, %v3808
        %v3810 = vrot.slane %v3189, %v3809
        %v3811 = vsel %vm3393, %v3810, %v3806
        %v3812 = vlaneseq
        %v3813 = vshrl.u32 %v3812, 7
        %v3814 = vsub.s32 %v3395, %v3813
        %v3815 = vrot.slane %v3190, %v3814
        %v3816 = vsel %vm3400, %v3815, %v3811
        %v3817 = vlaneseq
        %v3818 = vshrl.u32 %v3817, 7
        %v3819 = vsub.s32 %v3402, %v3818
        %v3820 = vrot.slane %v3191, %v3819
        %v3821 = vsel %vm3407, %v3820, %v3816
        %v3822 = vlaneseq
        %v3823 = vshrl.u32 %v3822, 7
        %v3824 = vsub.s32 %v3409, %v3823
        %v3825 = vrot.slane %v3192, %v3824
        %v3826 = vsel %vm3414, %v3825, %v3821
        %v3827 = vlaneseq
        %v3828 = vshrl.u32 %v3827, 7
        %v3829 = vsub.s32 %v3416, %v3828
        %v3830 = vrot.slane %v3193, %v3829
        %v3831 = vsel %vm3421, %v3830, %v3826
        %v3832 = vlaneseq
        %v3833 = vshrl.u32 %v3832, 7
        %v3834 = vsub.s32 %v3423, %v3833
        %v3835 = vrot.slane %v3194, %v3834
        %v3836 = vsel %vm3428, %v3835, %v3831
        %v3837 = vlaneseq
        %v3838 = vshrl.u32 %v3837, 7
        %v3839 = vsub.s32 %v3430, %v3838
        %v3840 = vrot.slane %v3195, %v3839
        %v3841 = vsel %vm3435, %v3840, %v3836
        %v3842 = vlaneseq
        %v3843 = vshrl.u32 %v3842, 7
        %v3844 = vsub.s32 %v3437, %v3843
        %v3845 = vrot.slane %v3196, %v3844
        %v3846 = vsel %vm3442, %v3845, %v3841
        %v3847 = vlaneseq
        %v3848 = vshrl.u32 %v3847, 7
        %v3849 = vsub.s32 %v3444, %v3848
        %v3850 = vrot.slane %v3197, %v3849
        %v3851 = vsel %vm3449, %v3850, %v3846
        %v3852 = vlaneseq
        %v3853 = vshrl.u32 %v3852, 7
        %v3854 = vsub.s32 %v3451, %v3853
        %v3855 = vrot.slane %v3198, %v3854
        %v3856 = vsel %vm3456, %v3855, %v3851
        %v3857 = vlaneseq
        %v3858 = vshrl.u32 %v3857, 7
        %v3859 = vsub.s32 %v3458, %v3858
        %v3860 = vrot.slane %v3199, %v3859
        %v3861 = vsel %vm3463, %v3860, %v3856
        %v3862 = vlaneseq
        %v3863 = vshrl.u32 %v3862, 7
        %v3864 = vsub.s32 %v3465, %v3863
        %v3865 = vrot.slane %v3200, %v3864
        %v3866 = vsel %vm3470, %v3865, %v3861
        %v3867 = vlaneseq
        %v3868 = vshrl.u32 %v3867, 7
        %v3869 = vsub.s32 %v3362, %v3868
        %v3870 = vrot.slane %v3201, %v3869
        %v3871 = vlaneseq
        %v3872 = vshrl.u32 %v3871, 7
        %v3873 = vsub.s32 %v3367, %v3872
        %v3874 = vrot.slane %v3202, %v3873
        %v3875 = vsel %vm3372, %v3874, %v3870
        %v3876 = vlaneseq
        %v3877 = vshrl.u32 %v3876, 7
        %v3878 = vsub.s32 %v3374, %v3877
        %v3879 = vrot.slane %v3203, %v3878
        %v3880 = vsel %vm3379, %v3879, %v3875
        %v3881 = vlaneseq
        %v3882 = vshrl.u32 %v3881, 7
        %v3883 = vsub.s32 %v3381, %v3882
        %v3884 = vrot.slane %v3204, %v3883
        %v3885 = vsel %vm3386, %v3884, %v3880
        %v3886 = vlaneseq
        %v3887 = vshrl.u32 %v3886, 7
        %v3888 = vsub.s32 %v3388, %v3887
        %v3889 = vrot.slane %v3205, %v3888
        %v3890 = vsel %vm3393, %v3889, %v3885
        %v3891 = vlaneseq
        %v3892 = vshrl.u32 %v3891, 7
        %v3893 = vsub.s32 %v3395, %v3892
        %v3894 = vrot.slane %v3206, %v3893
        %v3895 = vsel %vm3400, %v3894, %v3890
        %v3896 = vlaneseq
        %v3897 = vshrl.u32 %v3896, 7
        %v3898 = vsub.s32 %v3402, %v3897
        %v3899 = vrot.slane %v3207, %v3898
        %v3900 = vsel %vm3407, %v3899, %v3895
        %v3901 = vlaneseq
        %v3902 = vshrl.u32 %v3901, 7
        %v3903 = vsub.s32 %v3409, %v3902
        %v3904 = vrot.slane %v3208, %v3903
        %v3905 = vsel %vm3414, %v3904, %v3900
        %v3906 = vlaneseq
        %v3907 = vshrl.u32 %v3906, 7
        %v3908 = vsub.s32 %v3416, %v3907
        %v3909 = vrot.slane %v3209, %v3908
        %v3910 = vsel %vm3421, %v3909, %v3905
        %v3911 = vlaneseq
        %v3912 = vshrl.u32 %v3911, 7
        %v3913 = vsub.s32 %v3423, %v3912
        %v3914 = vrot.slane %v3210, %v3913
        %v3915 = vsel %vm3428, %v3914, %v3910
        %v3916 = vlaneseq
        %v3917 = vshrl.u32 %v3916, 7
        %v3918 = vsub.s32 %v3430, %v3917
        %v3919 = vrot.slane %v3211, %v3918
        %v3920 = vsel %vm3435, %v3919, %v3915
        %v3921 = vlaneseq
        %v3922 = vshrl.u32 %v3921, 7
        %v3923 = vsub.s32 %v3437, %v3922
        %v3924 = vrot.slane %v3212, %v3923
        %v3925 = vsel %vm3442, %v3924, %v3920
        %v3926 = vlaneseq
        %v3927 = vshrl.u32 %v3926, 7
        %v3928 = vsub.s32 %v3444, %v3927
        %v3929 = vrot.slane %v3213, %v3928
        %v3930 = vsel %vm3449, %v3929, %v3925
        %v3931 = vlaneseq
        %v3932 = vshrl.u32 %v3931, 7
        %v3933 = vsub.s32 %v3451, %v3932
        %v3934 = vrot.slane %v3214, %v3933
        %v3935 = vsel %vm3456, %v3934, %v3930
        %v3936 = vlaneseq
        %v3937 = vshrl.u32 %v3936, 7
        %v3938 = vsub.s32 %v3458, %v3937
        %v3939 = vrot.slane %v3215, %v3938
        %v3940 = vsel %vm3463, %v3939, %v3935
        %v3941 = vlaneseq
        %v3942 = vshrl.u32 %v3941, 7
        %v3943 = vsub.s32 %v3465, %v3942
        %v3944 = vrot.slane %v3216, %v3943
        %v3945 = vsel %vm3470, %v3944, %v3940
        %v3946 = vlaneseq
        %v3947 = vshrl.u32 %v3946, 7
        %v3948 = vsub.s32 %v3362, %v3947
        %v3949 = vrot.slane %v3217, %v3948
        %v3950 = vlaneseq
        %v3951 = vshrl.u32 %v3950, 7
        %v3952 = vsub.s32 %v3367, %v3951
        %v3953 = vrot.slane %v3218, %v3952
        %v3954 = vsel %vm3372, %v3953, %v3949
        %v3955 = vlaneseq
        %v3956 = vshrl.u32 %v3955, 7
        %v3957 = vsub.s32 %v3374, %v3956
        %v3958 = vrot.slane %v3219, %v3957
        %v3959 = vsel %vm3379, %v3958, %v3954
        %v3960 = vlaneseq
        %v3961 = vshrl.u32 %v3960, 7
        %v3962 = vsub.s32 %v3381, %v3961
        %v3963 = vrot.slane %v3220, %v3962
        %v3964 = vsel %vm3386, %v3963, %v3959
        %v3965 = vlaneseq
        %v3966 = vshrl.u32 %v3965, 7
        %v3967 = vsub.s32 %v3388, %v3966
        %v3968 = vrot.slane %v3221, %v3967
        %v3969 = vsel %vm3393, %v3968, %v3964
        %v3970 = vlaneseq
        %v3971 = vshrl.u32 %v3970, 7
        %v3972 = vsub.s32 %v3395, %v3971
        %v3973 = vrot.slane %v3222, %v3972
        %v3974 = vsel %vm3400, %v3973, %v3969
        %v3975 = vlaneseq
        %v3976 = vshrl.u32 %v3975, 7
        %v3977 = vsub.s32 %v3402, %v3976
        %v3978 = vrot.slane %v3223, %v3977
        %v3979 = vsel %vm3407, %v3978, %v3974
        %v3980 = vlaneseq
        %v3981 = vshrl.u32 %v3980, 7
        %v3982 = vsub.s32 %v3409, %v3981
        %v3983 = vrot.slane %v3224, %v3982
        %v3984 = vsel %vm3414, %v3983, %v3979
        %v3985 = vlaneseq
        %v3986 = vshrl.u32 %v3985, 7
        %v3987 = vsub.s32 %v3416, %v3986
        %v3988 = vrot.slane %v3225, %v3987
        %v3989 = vsel %vm3421, %v3988, %v3984
        %v3990 = vlaneseq
        %v3991 = vshrl.u32 %v3990, 7
        %v3992 = vsub.s32 %v3423, %v3991
        %v3993 = vrot.slane %v3226, %v3992
        %v3994 = vsel %vm3428, %v3993, %v3989
        %v3995 = vlaneseq
        %v3996 = vshrl.u32 %v3995, 7
        %v3997 = vsub.s32 %v3430, %v3996
        %v3998 = vrot.slane %v3227, %v3997
        %v3999 = vsel %vm3435, %v3998, %v3994
        %v4000 = vlaneseq
        %v4001 = vshrl.u32 %v4000, 7
        %v4002 = vsub.s32 %v3437, %v4001
        %v4003 = vrot.slane %v3228, %v4002
        %v4004 = vsel %vm3442, %v4003, %v3999
        %v4005 = vlaneseq
        %v4006 = vshrl.u32 %v4005, 7
        %v4007 = vsub.s32 %v3444, %v4006
        %v4008 = vrot.slane %v3229, %v4007
        %v4009 = vsel %vm3449, %v4008, %v4004
        %v4010 = vlaneseq
        %v4011 = vshrl.u32 %v4010, 7
        %v4012 = vsub.s32 %v3451, %v4011
        %v4013 = vrot.slane %v3230, %v4012
        %v4014 = vsel %vm3456, %v4013, %v4009
        %v4015 = vlaneseq
        %v4016 = vshrl.u32 %v4015, 7
        %v4017 = vsub.s32 %v3458, %v4016
        %v4018 = vrot.slane %v3231, %v4017
        %v4019 = vsel %vm3463, %v4018, %v4014
        %v4020 = vlaneseq
        %v4021 = vshrl.u32 %v4020, 7
        %v4022 = vsub.s32 %v3465, %v4021
        %v4023 = vrot.slane %v3232, %v4022
        %v4024 = vsel %vm3470, %v4023, %v4019
        %vm4025 = vcmask 1041409
        %v4026 = vsel %vm4025, %v3550, %v3471
        %vm4027 = vcmask 1042434
        %v4028 = vsel %vm4027, %v3629, %v4026
        %vm4029 = vcmask 1043459
        %v4030 = vsel %vm4029, %v3708, %v4028
        %vm4031 = vcmask 1044484
        %v4032 = vsel %vm4031, %v3787, %v4030
        %vm4033 = vcmask 1045509
        %v4034 = vsel %vm4033, %v3866, %v4032
        %vm4035 = vcmask 1046534
        %v4036 = vsel %vm4035, %v3945, %v4034
        %vm4037 = vcmask 1047559
        %v4038 = vsel %vm4037, %v4024, %v4036
        %4040 = vst [vmem:[%s288] sm:$0xff] %v4038
        %s4041 = sand.u32 %s186, 1
        %s4042 = scalar_lea.sflag [#allocation3], %s4041
        %s4043 = sand.u32 %s186, 1
        %s4044 = smul.addr %s4043, 8
        %s4045 = scalar_lea.vmem [#allocation2], %s4044
        // Predicated region
        $region49: #{tpu_custom_call.1} parent=47 // pred_check
          %p4046 = pneg %p196
        $region50: #{tpu_custom_call.1} parent=47 // pred_check_branch
          %4048 = sbr.rel (%p4046) target = $region52
        $region51: #{tpu_custom_call.1} parent=47 // pred_region
          %s4050 = ssub.s32 128, 128
          %4051 = vsyncadd %s4042, %s4050
          %s4052 = smul.addr %s21, 128
          %s4053 = scalar_lea.hbm %s7, %s4052
          %s4055 = sshll.u32 %s4045, 4
          %s4056 = int_to_ptr.vmem [resolvable:$true] %s4055
          %4058 = dma.vmem_to_hbm [thread:$0]  %s4056, 128, %s4053, %s4042
        $region52: #{tpu_custom_call.1} parent=47 // pred_fallthru
          _
      $region48: #{tpu_custom_call.1} parent=5 // pred_fallthru
        _
      %p4059 = scmp.le.s32.totalorder 2, %s16
      // Predicated region
      $region53: #{tpu_custom_call.1} parent=5 // pred_check
        %p4060 = pneg %p4059
      $region54: #{tpu_custom_call.1} parent=5 // pred_check_branch
        %4062 = sbr.rel (%p4060) target = $region56
      $region55: #{tpu_custom_call.1} parent=5 // pred_region
        %s4063 = ssub.s32 %s16, 2
        // Predicated region
        $region57: #{tpu_custom_call.1} parent=55 // pred_check
          %p4064 = pneg %p202
        $region58: #{tpu_custom_call.1} parent=55 // pred_check_branch
          %4066 = sbr.rel (%p4064) target = $region60
        $region59: #{tpu_custom_call.1} parent=55 // pred_region
          %s4067 = sand.u32 %s187, 1
          %s4068 = scalar_lea.sflag [#allocation3], %s4067
          %s4069 = sand.u32 %s187, 1
          %s4070 = smul.addr %s4069, 8
          %s4071 = scalar_lea.vmem [#allocation2], %s4070
          %4072 = dma.done %s4068, 128
        $region60: #{tpu_custom_call.1} parent=55 // pred_fallthru
          _
      $region56: #{tpu_custom_call.1} parent=5 // pred_fallthru
        _
    $region6: #{tpu_custom_call.1} parent=1 // loop_footer
      %s20 = sadd.s32 1, %s16
    $region7: #{tpu_custom_call.1} parent=1 // loop_footer_branch
      %15 = sbr.rel target = $region3
    $region8: #{tpu_custom_call.1} parent=1 // loop_exit
      _
    %4073 = vsyncpa [#allocation3], 1
    %s4074 = scalar_lea.sflag [#allocation3], 1
    %4075 = vsyncpa %s4074, 1

</llo_original>
